<compile_context>
chip_gen: v7x
topology: tpu7x:2x2x1
jax: 0.10.0
libtpu: 0.0.40
codegen_flags: <defaults>
</compile_context>

<pallas_src>
import jax
import jax.numpy as jnp
from jax import lax
from jax.experimental import pallas as pl
from jax.experimental.pallas import tpu as pltpu


# ---------------------------------------------------------------------------
# Fused Pallas kernel: conv1+pool+relu -> conv2+pool+relu -> linear
# ---------------------------------------------------------------------------
def _net_kernel(p1_ref, w1_ref, b1_ref, w2_ref, b2_ref, wl_ref, bl_ref, o_ref):
    bt = o_ref.shape[0]
    f32 = jnp.float32

    # ---- stage 1: conv1 as one (bt*768, 25) @ (25, 128) matmul -------------
    # Rows per sample: 4 pool-offset groups x (12 x 16) pooled positions
    # (width padded 12 -> 16 for tile alignment; padded rows are never read).
    p1 = p1_ref[...].reshape(bt * 768, 25)                       # bf16
    y1 = jnp.dot(p1, w1_ref[...], preferred_element_type=f32)    # (bt*768, 128)
    y1 = y1.reshape(bt, 4, 192, 128)                             # (b, off, 12*16, ch)
    m1 = jnp.maximum(jnp.maximum(y1[:, 0], y1[:, 1]),
                     jnp.maximum(y1[:, 2], y1[:, 3]))            # maxpool over offsets
    h1 = jnp.maximum(m1 + b1_ref[...], 0.0)                      # bias + relu (f32)
    h1 = h1.reshape(bt, 12, 16, 128)                             # (b, i, j[12 real], ch)

    # ---- stage 2: in-kernel im2col + one (bt*64, 3200) @ (3200, 128) matmul
    cols = []
    for kh in range(5):
        for kw in range(5):
            c = h1[:, kh:kh + 8, kw:kw + 8, :]                   # (bt, 8, 8, 128)
            cols.append(c.reshape(bt * 64, 128).astype(jnp.bfloat16))
    p2 = jnp.concatenate(cols, axis=1)                           # (bt*64, 3200)
    y2 = jnp.dot(p2, w2_ref[...], preferred_element_type=f32)    # (bt*64, 128)

    # ---- 2x2 maxpool via shift-and-max (odd rows/cols never read) ----------
    shifted = jnp.concatenate([y2[1:], y2[:1]], axis=0)          # row r -> row r+1
    wpool = jnp.maximum(y2, shifted)                             # pairs (oj, oj+1)
    wpool = wpool.reshape(bt, 4, 2, 8, 128)                      # (b, oi//2, oi%2, oj, ch)
    hpool = jnp.maximum(wpool[:, :, 0], wpool[:, :, 1])          # (bt, 4, 8, 128)
    h2 = jnp.maximum(hpool + b2_ref[...], 0.0)                   # bias + relu (f32)

    # ---- linear: gather the 16 valid pooled positions, one matmul ----------
    feats = jnp.concatenate(
        [h2[:, p // 4, 2 * (p % 4), :] for p in range(16)], axis=1)
    feats = feats.astype(jnp.bfloat16)                           # (bt, 2048)
    out = jnp.dot(feats, wl_ref[...], preferred_element_type=f32)
    o_ref[...] = out + bl_ref[...]                               # (bt, 128)


# ---------------------------------------------------------------------------
# JAX glue: stage-1 im2col (pure data movement) + weight repacking
# ---------------------------------------------------------------------------
def _stage1_patches(x):
    """x: (B, 1, 28, 28) -> (B, 768, 25) bf16.

    Row layout per sample: pool-offset (a,c) outer [4 groups of 192 rows],
    then pooled position (i, j) with j padded 12 -> 16 (pad rows are zero and
    never read downstream). Feature order = (kh, kw), matching
    conv1.weight.reshape(10, 25)."""
    bsz = x.shape[0]
    cols = []
    for kh in range(5):
        for kw in range(5):
            cols.append(x[:, 0, kh:kh + 24, kw:kw + 24])
    patches = jnp.stack(cols, axis=-1)                 # (B, 24, 24, 25)
    groups = []
    for a in (0, 1):
        for c in (0, 1):
            sub = patches[:, a::2, c::2, :]            # (B, 12, 12, 25)
            sub = jnp.pad(sub, ((0, 0), (0, 0), (0, 4), (0, 0)))  # (B, 12, 16, 25)
            groups.append(sub.reshape(bsz, 192, 25))
    return jnp.concatenate(groups, axis=1).astype(jnp.bfloat16)


def _pack_params(params):
    w1, b1, w2, b2, wl, bl = params
    f32 = jnp.float32

    w1m = jnp.zeros((25, 128), f32).at[:, :10].set(w1.reshape(10, 25).T)
    b1v = jnp.zeros((1, 128), f32).at[0, :10].set(b1)

    # conv2: feature order (kh, kw, cin[pad 128]) -> cout[pad 128]
    w2t = jnp.transpose(w2, (2, 3, 1, 0))              # (5, 5, 10, 20)
    w2m = jnp.zeros((5, 5, 128, 128), f32).at[:, :, :10, :20].set(w2t)
    w2m = w2m.reshape(3200, 128)
    b2v = jnp.zeros((1, 128), f32).at[0, :20].set(b2)

    # linear: PyTorch flatten order is (c, h, w); kernel features are ordered
    # (pos = h*4 + w, channel[pad 128]) -> reorder the weight instead.
    wlt = jnp.transpose(wl.reshape(10, 20, 4, 4), (2, 3, 1, 0)).reshape(16, 20, 10)
    wlm = jnp.zeros((16, 128, 128), f32).at[:, :20, :10].set(wlt).reshape(2048, 128)
    blv = jnp.zeros((1, 128), f32).at[0, :10].set(bl)

    return (w1m.astype(jnp.bfloat16), b1v,
            w2m.astype(jnp.bfloat16), b2v,
            wlm.astype(jnp.bfloat16), blv)


@jax.jit
def net_forward(x, params):
    bsz = x.shape[0]                      # x: (B, 1, 28, 28)
    p1 = _stage1_patches(x)               # (B, 768, 25) bf16
    w1m, b1v, w2m, b2v, wlm, blv = _pack_params(params)

    bt = 8 if bsz % 8 == 0 else bsz       # batch tile (parallel grid axis)
    nb = bsz // bt

    out = pl.pallas_call(
        _net_kernel,
        out_shape=jax.ShapeDtypeStruct((bsz, 128), jnp.float32),
        grid=(nb,),
        in_specs=[
            pl.BlockSpec((bt, 768, 25), lambda i: (i, 0, 0)),
            pl.BlockSpec((25, 128), lambda i: (0, 0)),
            pl.BlockSpec((1, 128), lambda i: (0, 0)),
            pl.BlockSpec((3200, 128), lambda i: (0, 0)),
            pl.BlockSpec((1, 128), lambda i: (0, 0)),
            pl.BlockSpec((2048, 128), lambda i: (0, 0)),
            pl.BlockSpec((1, 128), lambda i: (0, 0)),
        ],
        out_specs=pl.BlockSpec((bt, 128), lambda i: (i, 0)),
        compiler_params=pltpu.CompilerParams(
            dimension_semantics=("parallel",)),
    )(p1, w1m, b1v, w2m, b2v, wlm, blv)

    return out[:, :10]                    # drop the lane padding


# ---------------------------------------------------------------------------
# Pure-JAX reference (for correctness check)
# ---------------------------------------------------------------------------
def net_reference(x, params):
    w1, b1, w2, b2, wl, bl = params
    dn = ("NCHW", "OIHW", "NCHW")

    def block(z, w, b):
        y = lax.conv_general_dilated(z, w, (1, 1), "VALID", dimension_numbers=dn,
                                     precision=lax.Precision.HIGHEST)
        y = y + b[None, :, None, None]
        y = lax.reduce_window(y, -jnp.inf, lax.max, (1, 1, 2, 2), (1, 1, 2, 2),
                              "VALID")
        return jnp.maximum(y, 0.0)

    y = block(x, w1, b1)
    y = block(y, w2, b2)
    y = y.reshape(x.shape[0], -1)
    return jnp.dot(y, wl.T, precision=lax.Precision.HIGHEST) + bl[None, :]


def init_params(key):
    ks = jax.random.split(key, 6)
    w1 = jax.random.normal(ks[0], (10, 1, 5, 5), jnp.float32) * 0.1
    b1 = jax.random.normal(ks[1], (10,), jnp.float32) * 0.1
    w2 = jax.random.normal(ks[2], (20, 10, 5, 5), jnp.float32) * 0.1
    b2 = jax.random.normal(ks[3], (20,), jnp.float32) * 0.1
    wl = jax.random.normal(ks[4], (10, 320), jnp.float32) * 0.1
    bl = jax.random.normal(ks[5], (10,), jnp.float32) * 0.1
    return (w1, b1, w2, b2, wl, bl)


if __name__ == "__main__":
    key = jax.random.PRNGKey(0)
    kx, kp = jax.random.split(key)
    batch = 2
    # MNIST geometry fixed by Linear(320, 10): input must be (B, 1, 28, 28).
    x = jax.random.normal(kx, (batch, 1, 28, 28), jnp.float32)
    params = init_params(kp)

    out = jax.block_until_ready(net_forward(x, params))
    ref = jax.block_until_ready(net_reference(x, params))

    assert out.shape == (batch, 10), out.shape
    # bf16 MXU operands with f32 accumulation -> compare at a bf16-appropriate
    # tolerance against the f32 HIGHEST-precision reference.
    assert jnp.allclose(out, ref, rtol=2e-2, atol=2e-2), (out, ref)
    print("KERNEL_OK")
</pallas_src>

<mosaic_0001>
module attributes {stable_mosaic.version = 11 : i64} {
  func.func @_net_kernel(%arg0: i32, %arg1: memref<2x768x25xbf16, #tpu.memory_space<vmem>>, %arg2: memref<25x128xbf16, #tpu.memory_space<vmem>>, %arg3: memref<1x128xf32, #tpu.memory_space<vmem>>, %arg4: memref<3200x128xbf16, #tpu.memory_space<vmem>>, %arg5: memref<1x128xf32, #tpu.memory_space<vmem>>, %arg6: memref<2048x128xbf16, #tpu.memory_space<vmem>>, %arg7: memref<1x128xf32, #tpu.memory_space<vmem>>, %arg8: memref<2x128xf32, #tpu.memory_space<vmem>>) attributes {dimension_semantics = [#tpu.dimension_semantics<parallel>], iteration_bounds = array<i64: 1>, scalar_prefetch = 0 : i64, scratch_operands = 0 : i64, tpu.core_type = #tpu.core_type<tc>, window_params = [{transform_indices = @transform_0, window_bounds = array<i64: 2, 768, 25>}, {pipeline_mode = #tpu.pipeline_mode<synchronous>, transform_indices = @transform_1, window_bounds = array<i64: 25, 128>}, {pipeline_mode = #tpu.pipeline_mode<synchronous>, transform_indices = @transform_2, window_bounds = array<i64: 1, 128>}, {pipeline_mode = #tpu.pipeline_mode<synchronous>, transform_indices = @transform_3, window_bounds = array<i64: 3200, 128>}, {pipeline_mode = #tpu.pipeline_mode<synchronous>, transform_indices = @transform_4, window_bounds = array<i64: 1, 128>}, {pipeline_mode = #tpu.pipeline_mode<synchronous>, transform_indices = @transform_5, window_bounds = array<i64: 2048, 128>}, {pipeline_mode = #tpu.pipeline_mode<synchronous>, transform_indices = @transform_6, window_bounds = array<i64: 1, 128>}, {transform_indices = @transform_7, window_bounds = array<i64: 2, 128>}]} {
    %c0 = arith.constant 0 : index
    %c0_0 = arith.constant 0 : index
    %c0_1 = arith.constant 0 : index
    %0 = vector.load %arg1[%c0, %c0_0, %c0_1] : memref<2x768x25xbf16, #tpu.memory_space<vmem>>, vector<2x768x25xbf16>
    %1 = vector.shape_cast %0 : vector<2x768x25xbf16> to vector<1536x25xbf16>
    %c0_2 = arith.constant 0 : index
    %c0_3 = arith.constant 0 : index
    %2 = vector.load %arg2[%c0_2, %c0_3] : memref<25x128xbf16, #tpu.memory_space<vmem>>, vector<25x128xbf16>
    %cst = arith.constant dense<0.000000e+00> : vector<1536x128xf32>
    %3 = tpu.matmul %1, %2, %cst {dimension_numbers = #tpu.dot_dimension_numbers<[1], [0], [0], [1], [0, 0, 1, 1], [], []>} : vector<1536x25xbf16>, vector<25x128xbf16>, vector<1536x128xf32> -> vector<1536x128xf32>
    %4 = vector.shape_cast %3 : vector<1536x128xf32> to vector<2x4x192x128xf32>
    %5 = vector.extract_strided_slice %4 {offsets = [0, 0, 0, 0], sizes = [2, 1, 192, 128], strides = [1, 1, 1, 1]} : vector<2x4x192x128xf32> to vector<2x1x192x128xf32>
    %6 = vector.shape_cast %5 : vector<2x1x192x128xf32> to vector<2x192x128xf32>
    %7 = vector.extract_strided_slice %4 {offsets = [0, 1, 0, 0], sizes = [2, 1, 192, 128], strides = [1, 1, 1, 1]} : vector<2x4x192x128xf32> to vector<2x1x192x128xf32>
    %8 = vector.shape_cast %7 : vector<2x1x192x128xf32> to vector<2x192x128xf32>
    %9 = arith.maximumf %6, %8 : vector<2x192x128xf32>
    %10 = vector.extract_strided_slice %4 {offsets = [0, 2, 0, 0], sizes = [2, 1, 192, 128], strides = [1, 1, 1, 1]} : vector<2x4x192x128xf32> to vector<2x1x192x128xf32>
    %11 = vector.shape_cast %10 : vector<2x1x192x128xf32> to vector<2x192x128xf32>
    %12 = vector.extract_strided_slice %4 {offsets = [0, 3, 0, 0], sizes = [2, 1, 192, 128], strides = [1, 1, 1, 1]} : vector<2x4x192x128xf32> to vector<2x1x192x128xf32>
    %13 = vector.shape_cast %12 : vector<2x1x192x128xf32> to vector<2x192x128xf32>
    %14 = arith.maximumf %11, %13 : vector<2x192x128xf32>
    %15 = arith.maximumf %9, %14 : vector<2x192x128xf32>
    %c0_4 = arith.constant 0 : index
    %c0_5 = arith.constant 0 : index
    %16 = vector.load %arg3[%c0_4, %c0_5] : memref<1x128xf32, #tpu.memory_space<vmem>>, vector<1x128xf32>
    %17 = vector.shape_cast %16 : vector<1x128xf32> to vector<1x1x128xf32>
    %18 = vector.broadcast %17 : vector<1x1x128xf32> to vector<2x192x128xf32>
    %19 = arith.addf %15, %18 : vector<2x192x128xf32>
    %cst_6 = arith.constant 0.000000e+00 : f32
    %20 = vector.broadcast %cst_6 : f32 to vector<2x192x128xf32>
    %21 = arith.maximumf %19, %20 : vector<2x192x128xf32>
    %22 = vector.shape_cast %21 : vector<2x192x128xf32> to vector<2x12x16x128xf32>
    %23 = vector.extract_strided_slice %22 {offsets = [0, 0, 0, 0], sizes = [2, 8, 8, 128], strides = [1, 1, 1, 1]} : vector<2x12x16x128xf32> to vector<2x8x8x128xf32>
    %24 = vector.shape_cast %23 : vector<2x8x8x128xf32> to vector<128x128xf32>
    %25 = arith.truncf %24 : vector<128x128xf32> to vector<128x128xbf16>
    %26 = vector.extract_strided_slice %22 {offsets = [0, 0, 1, 0], sizes = [2, 8, 8, 128], strides = [1, 1, 1, 1]} : vector<2x12x16x128xf32> to vector<2x8x8x128xf32>
    %27 = vector.shape_cast %26 : vector<2x8x8x128xf32> to vector<128x128xf32>
    %28 = arith.truncf %27 : vector<128x128xf32> to vector<128x128xbf16>
    %29 = vector.extract_strided_slice %22 {offsets = [0, 0, 2, 0], sizes = [2, 8, 8, 128], strides = [1, 1, 1, 1]} : vector<2x12x16x128xf32> to vector<2x8x8x128xf32>
    %30 = vector.shape_cast %29 : vector<2x8x8x128xf32> to vector<128x128xf32>
    %31 = arith.truncf %30 : vector<128x128xf32> to vector<128x128xbf16>
    %32 = vector.extract_strided_slice %22 {offsets = [0, 0, 3, 0], sizes = [2, 8, 8, 128], strides = [1, 1, 1, 1]} : vector<2x12x16x128xf32> to vector<2x8x8x128xf32>
    %33 = vector.shape_cast %32 : vector<2x8x8x128xf32> to vector<128x128xf32>
    %34 = arith.truncf %33 : vector<128x128xf32> to vector<128x128xbf16>
    %35 = vector.extract_strided_slice %22 {offsets = [0, 0, 4, 0], sizes = [2, 8, 8, 128], strides = [1, 1, 1, 1]} : vector<2x12x16x128xf32> to vector<2x8x8x128xf32>
    %36 = vector.shape_cast %35 : vector<2x8x8x128xf32> to vector<128x128xf32>
    %37 = arith.truncf %36 : vector<128x128xf32> to vector<128x128xbf16>
    %38 = vector.extract_strided_slice %22 {offsets = [0, 1, 0, 0], sizes = [2, 8, 8, 128], strides = [1, 1, 1, 1]} : vector<2x12x16x128xf32> to vector<2x8x8x128xf32>
    %39 = vector.shape_cast %38 : vector<2x8x8x128xf32> to vector<128x128xf32>
    %40 = arith.truncf %39 : vector<128x128xf32> to vector<128x128xbf16>
    %41 = vector.extract_strided_slice %22 {offsets = [0, 1, 1, 0], sizes = [2, 8, 8, 128], strides = [1, 1, 1, 1]} : vector<2x12x16x128xf32> to vector<2x8x8x128xf32>
    %42 = vector.shape_cast %41 : vector<2x8x8x128xf32> to vector<128x128xf32>
    %43 = arith.truncf %42 : vector<128x128xf32> to vector<128x128xbf16>
    %44 = vector.extract_strided_slice %22 {offsets = [0, 1, 2, 0], sizes = [2, 8, 8, 128], strides = [1, 1, 1, 1]} : vector<2x12x16x128xf32> to vector<2x8x8x128xf32>
    %45 = vector.shape_cast %44 : vector<2x8x8x128xf32> to vector<128x128xf32>
    %46 = arith.truncf %45 : vector<128x128xf32> to vector<128x128xbf16>
    %47 = vector.extract_strided_slice %22 {offsets = [0, 1, 3, 0], sizes = [2, 8, 8, 128], strides = [1, 1, 1, 1]} : vector<2x12x16x128xf32> to vector<2x8x8x128xf32>
    %48 = vector.shape_cast %47 : vector<2x8x8x128xf32> to vector<128x128xf32>
    %49 = arith.truncf %48 : vector<128x128xf32> to vector<128x128xbf16>
    %50 = vector.extract_strided_slice %22 {offsets = [0, 1, 4, 0], sizes = [2, 8, 8, 128], strides = [1, 1, 1, 1]} : vector<2x12x16x128xf32> to vector<2x8x8x128xf32>
    %51 = vector.shape_cast %50 : vector<2x8x8x128xf32> to vector<128x128xf32>
    %52 = arith.truncf %51 : vector<128x128xf32> to vector<128x128xbf16>
    %53 = vector.extract_strided_slice %22 {offsets = [0, 2, 0, 0], sizes = [2, 8, 8, 128], strides = [1, 1, 1, 1]} : vector<2x12x16x128xf32> to vector<2x8x8x128xf32>
    %54 = vector.shape_cast %53 : vector<2x8x8x128xf32> to vector<128x128xf32>
    %55 = arith.truncf %54 : vector<128x128xf32> to vector<128x128xbf16>
    %56 = vector.extract_strided_slice %22 {offsets = [0, 2, 1, 0], sizes = [2, 8, 8, 128], strides = [1, 1, 1, 1]} : vector<2x12x16x128xf32> to vector<2x8x8x128xf32>
    %57 = vector.shape_cast %56 : vector<2x8x8x128xf32> to vector<128x128xf32>
    %58 = arith.truncf %57 : vector<128x128xf32> to vector<128x128xbf16>
    %59 = vector.extract_strided_slice %22 {offsets = [0, 2, 2, 0], sizes = [2, 8, 8, 128], strides = [1, 1, 1, 1]} : vector<2x12x16x128xf32> to vector<2x8x8x128xf32>
    %60 = vector.shape_cast %59 : vector<2x8x8x128xf32> to vector<128x128xf32>
    %61 = arith.truncf %60 : vector<128x128xf32> to vector<128x128xbf16>
    %62 = vector.extract_strided_slice %22 {offsets = [0, 2, 3, 0], sizes = [2, 8, 8, 128], strides = [1, 1, 1, 1]} : vector<2x12x16x128xf32> to vector<2x8x8x128xf32>
    %63 = vector.shape_cast %62 : vector<2x8x8x128xf32> to vector<128x128xf32>
    %64 = arith.truncf %63 : vector<128x128xf32> to vector<128x128xbf16>
    %65 = vector.extract_strided_slice %22 {offsets = [0, 2, 4, 0], sizes = [2, 8, 8, 128], strides = [1, 1, 1, 1]} : vector<2x12x16x128xf32> to vector<2x8x8x128xf32>
    %66 = vector.shape_cast %65 : vector<2x8x8x128xf32> to vector<128x128xf32>
    %67 = arith.truncf %66 : vector<128x128xf32> to vector<128x128xbf16>
    %68 = vector.extract_strided_slice %22 {offsets = [0, 3, 0, 0], sizes = [2, 8, 8, 128], strides = [1, 1, 1, 1]} : vector<2x12x16x128xf32> to vector<2x8x8x128xf32>
    %69 = vector.shape_cast %68 : vector<2x8x8x128xf32> to vector<128x128xf32>
    %70 = arith.truncf %69 : vector<128x128xf32> to vector<128x128xbf16>
    %71 = vector.extract_strided_slice %22 {offsets = [0, 3, 1, 0], sizes = [2, 8, 8, 128], strides = [1, 1, 1, 1]} : vector<2x12x16x128xf32> to vector<2x8x8x128xf32>
    %72 = vector.shape_cast %71 : vector<2x8x8x128xf32> to vector<128x128xf32>
    %73 = arith.truncf %72 : vector<128x128xf32> to vector<128x128xbf16>
    %74 = vector.extract_strided_slice %22 {offsets = [0, 3, 2, 0], sizes = [2, 8, 8, 128], strides = [1, 1, 1, 1]} : vector<2x12x16x128xf32> to vector<2x8x8x128xf32>
    %75 = vector.shape_cast %74 : vector<2x8x8x128xf32> to vector<128x128xf32>
    %76 = arith.truncf %75 : vector<128x128xf32> to vector<128x128xbf16>
    %77 = vector.extract_strided_slice %22 {offsets = [0, 3, 3, 0], sizes = [2, 8, 8, 128], strides = [1, 1, 1, 1]} : vector<2x12x16x128xf32> to vector<2x8x8x128xf32>
    %78 = vector.shape_cast %77 : vector<2x8x8x128xf32> to vector<128x128xf32>
    %79 = arith.truncf %78 : vector<128x128xf32> to vector<128x128xbf16>
    %80 = vector.extract_strided_slice %22 {offsets = [0, 3, 4, 0], sizes = [2, 8, 8, 128], strides = [1, 1, 1, 1]} : vector<2x12x16x128xf32> to vector<2x8x8x128xf32>
    %81 = vector.shape_cast %80 : vector<2x8x8x128xf32> to vector<128x128xf32>
    %82 = arith.truncf %81 : vector<128x128xf32> to vector<128x128xbf16>
    %83 = vector.extract_strided_slice %22 {offsets = [0, 4, 0, 0], sizes = [2, 8, 8, 128], strides = [1, 1, 1, 1]} : vector<2x12x16x128xf32> to vector<2x8x8x128xf32>
    %84 = vector.shape_cast %83 : vector<2x8x8x128xf32> to vector<128x128xf32>
    %85 = arith.truncf %84 : vector<128x128xf32> to vector<128x128xbf16>
    %86 = vector.extract_strided_slice %22 {offsets = [0, 4, 1, 0], sizes = [2, 8, 8, 128], strides = [1, 1, 1, 1]} : vector<2x12x16x128xf32> to vector<2x8x8x128xf32>
    %87 = vector.shape_cast %86 : vector<2x8x8x128xf32> to vector<128x128xf32>
    %88 = arith.truncf %87 : vector<128x128xf32> to vector<128x128xbf16>
    %89 = vector.extract_strided_slice %22 {offsets = [0, 4, 2, 0], sizes = [2, 8, 8, 128], strides = [1, 1, 1, 1]} : vector<2x12x16x128xf32> to vector<2x8x8x128xf32>
    %90 = vector.shape_cast %89 : vector<2x8x8x128xf32> to vector<128x128xf32>
    %91 = arith.truncf %90 : vector<128x128xf32> to vector<128x128xbf16>
    %92 = vector.extract_strided_slice %22 {offsets = [0, 4, 3, 0], sizes = [2, 8, 8, 128], strides = [1, 1, 1, 1]} : vector<2x12x16x128xf32> to vector<2x8x8x128xf32>
    %93 = vector.shape_cast %92 : vector<2x8x8x128xf32> to vector<128x128xf32>
    %94 = arith.truncf %93 : vector<128x128xf32> to vector<128x128xbf16>
    %95 = vector.extract_strided_slice %22 {offsets = [0, 4, 4, 0], sizes = [2, 8, 8, 128], strides = [1, 1, 1, 1]} : vector<2x12x16x128xf32> to vector<2x8x8x128xf32>
    %96 = vector.shape_cast %95 : vector<2x8x8x128xf32> to vector<128x128xf32>
    %97 = arith.truncf %96 : vector<128x128xf32> to vector<128x128xbf16>
    %98 = tpu.concatenate %25, %28, %31, %34, %37, %40, %43, %46, %49, %52, %55, %58, %61, %64, %67, %70 in 1 : vector<128x128xbf16>, vector<128x128xbf16>, vector<128x128xbf16>, vector<128x128xbf16>, vector<128x128xbf16>, vector<128x128xbf16>, vector<128x128xbf16>, vector<128x128xbf16>, vector<128x128xbf16>, vector<128x128xbf16>, vector<128x128xbf16>, vector<128x128xbf16>, vector<128x128xbf16>, vector<128x128xbf16>, vector<128x128xbf16>, vector<128x128xbf16> -> vector<128x2048xbf16>
    %99 = tpu.concatenate %73, %76, %79, %82, %85, %88, %91, %94, %97 in 1 : vector<128x128xbf16>, vector<128x128xbf16>, vector<128x128xbf16>, vector<128x128xbf16>, vector<128x128xbf16>, vector<128x128xbf16>, vector<128x128xbf16>, vector<128x128xbf16>, vector<128x128xbf16> -> vector<128x1152xbf16>
    %100 = tpu.concatenate %98, %99 in 1 : vector<128x2048xbf16>, vector<128x1152xbf16> -> vector<128x3200xbf16>
    %c0_7 = arith.constant 0 : index
    %c0_8 = arith.constant 0 : index
    %101 = vector.load %arg4[%c0_7, %c0_8] : memref<3200x128xbf16, #tpu.memory_space<vmem>>, vector<3200x128xbf16>
    %cst_9 = arith.constant dense<0.000000e+00> : vector<128x128xf32>
    %102 = tpu.matmul %100, %101, %cst_9 {dimension_numbers = #tpu.dot_dimension_numbers<[1], [0], [0], [1], [0, 0, 1, 1], [], []>} : vector<128x3200xbf16>, vector<3200x128xbf16>, vector<128x128xf32> -> vector<128x128xf32>
    %103 = vector.extract_strided_slice %102 {offsets = [1, 0], sizes = [127, 128], strides = [1, 1]} : vector<128x128xf32> to vector<127x128xf32>
    %104 = vector.extract_strided_slice %102 {offsets = [0, 0], sizes = [1, 128], strides = [1, 1]} : vector<128x128xf32> to vector<1x128xf32>
    %105 = tpu.concatenate %103, %104 in 0 : vector<127x128xf32>, vector<1x128xf32> -> vector<128x128xf32>
    %106 = arith.maximumf %102, %105 : vector<128x128xf32>
    %107 = vector.shape_cast %106 : vector<128x128xf32> to vector<2x4x2x8x128xf32>
    %108 = vector.extract_strided_slice %107 {offsets = [0, 0, 0, 0, 0], sizes = [2, 4, 1, 8, 128], strides = [1, 1, 1, 1, 1]} : vector<2x4x2x8x128xf32> to vector<2x4x1x8x128xf32>
    %109 = vector.shape_cast %108 : vector<2x4x1x8x128xf32> to vector<2x4x8x128xf32>
    %110 = vector.extract_strided_slice %107 {offsets = [0, 0, 1, 0, 0], sizes = [2, 4, 1, 8, 128], strides = [1, 1, 1, 1, 1]} : vector<2x4x2x8x128xf32> to vector<2x4x1x8x128xf32>
    %111 = vector.shape_cast %110 : vector<2x4x1x8x128xf32> to vector<2x4x8x128xf32>
    %112 = arith.maximumf %109, %111 : vector<2x4x8x128xf32>
    %c0_10 = arith.constant 0 : index
    %c0_11 = arith.constant 0 : index
    %113 = vector.load %arg5[%c0_10, %c0_11] : memref<1x128xf32, #tpu.memory_space<vmem>>, vector<1x128xf32>
    %114 = vector.shape_cast %113 : vector<1x128xf32> to vector<1x1x1x128xf32>
    %115 = vector.broadcast %114 : vector<1x1x1x128xf32> to vector<2x4x8x128xf32>
    %116 = arith.addf %112, %115 : vector<2x4x8x128xf32>
    %cst_12 = arith.constant 0.000000e+00 : f32
    %117 = vector.broadcast %cst_12 : f32 to vector<2x4x8x128xf32>
    %118 = arith.maximumf %116, %117 : vector<2x4x8x128xf32>
    %119 = vector.extract_strided_slice %118 {offsets = [0, 0, 0, 0], sizes = [2, 1, 1, 128], strides = [1, 1, 1, 1]} : vector<2x4x8x128xf32> to vector<2x1x1x128xf32>
    %120 = vector.shape_cast %119 : vector<2x1x1x128xf32> to vector<2x128xf32>
    %121 = vector.extract_strided_slice %118 {offsets = [0, 0, 2, 0], sizes = [2, 1, 1, 128], strides = [1, 1, 1, 1]} : vector<2x4x8x128xf32> to vector<2x1x1x128xf32>
    %122 = vector.shape_cast %121 : vector<2x1x1x128xf32> to vector<2x128xf32>
    %123 = vector.extract_strided_slice %118 {offsets = [0, 0, 4, 0], sizes = [2, 1, 1, 128], strides = [1, 1, 1, 1]} : vector<2x4x8x128xf32> to vector<2x1x1x128xf32>
    %124 = vector.shape_cast %123 : vector<2x1x1x128xf32> to vector<2x128xf32>
    %125 = vector.extract_strided_slice %118 {offsets = [0, 0, 6, 0], sizes = [2, 1, 1, 128], strides = [1, 1, 1, 1]} : vector<2x4x8x128xf32> to vector<2x1x1x128xf32>
    %126 = vector.shape_cast %125 : vector<2x1x1x128xf32> to vector<2x128xf32>
    %127 = vector.extract_strided_slice %118 {offsets = [0, 1, 0, 0], sizes = [2, 1, 1, 128], strides = [1, 1, 1, 1]} : vector<2x4x8x128xf32> to vector<2x1x1x128xf32>
    %128 = vector.shape_cast %127 : vector<2x1x1x128xf32> to vector<2x128xf32>
    %129 = vector.extract_strided_slice %118 {offsets = [0, 1, 2, 0], sizes = [2, 1, 1, 128], strides = [1, 1, 1, 1]} : vector<2x4x8x128xf32> to vector<2x1x1x128xf32>
    %130 = vector.shape_cast %129 : vector<2x1x1x128xf32> to vector<2x128xf32>
    %131 = vector.extract_strided_slice %118 {offsets = [0, 1, 4, 0], sizes = [2, 1, 1, 128], strides = [1, 1, 1, 1]} : vector<2x4x8x128xf32> to vector<2x1x1x128xf32>
    %132 = vector.shape_cast %131 : vector<2x1x1x128xf32> to vector<2x128xf32>
    %133 = vector.extract_strided_slice %118 {offsets = [0, 1, 6, 0], sizes = [2, 1, 1, 128], strides = [1, 1, 1, 1]} : vector<2x4x8x128xf32> to vector<2x1x1x128xf32>
    %134 = vector.shape_cast %133 : vector<2x1x1x128xf32> to vector<2x128xf32>
    %135 = vector.extract_strided_slice %118 {offsets = [0, 2, 0, 0], sizes = [2, 1, 1, 128], strides = [1, 1, 1, 1]} : vector<2x4x8x128xf32> to vector<2x1x1x128xf32>
    %136 = vector.shape_cast %135 : vector<2x1x1x128xf32> to vector<2x128xf32>
    %137 = vector.extract_strided_slice %118 {offsets = [0, 2, 2, 0], sizes = [2, 1, 1, 128], strides = [1, 1, 1, 1]} : vector<2x4x8x128xf32> to vector<2x1x1x128xf32>
    %138 = vector.shape_cast %137 : vector<2x1x1x128xf32> to vector<2x128xf32>
    %139 = vector.extract_strided_slice %118 {offsets = [0, 2, 4, 0], sizes = [2, 1, 1, 128], strides = [1, 1, 1, 1]} : vector<2x4x8x128xf32> to vector<2x1x1x128xf32>
    %140 = vector.shape_cast %139 : vector<2x1x1x128xf32> to vector<2x128xf32>
    %141 = vector.extract_strided_slice %118 {offsets = [0, 2, 6, 0], sizes = [2, 1, 1, 128], strides = [1, 1, 1, 1]} : vector<2x4x8x128xf32> to vector<2x1x1x128xf32>
    %142 = vector.shape_cast %141 : vector<2x1x1x128xf32> to vector<2x128xf32>
    %143 = vector.extract_strided_slice %118 {offsets = [0, 3, 0, 0], sizes = [2, 1, 1, 128], strides = [1, 1, 1, 1]} : vector<2x4x8x128xf32> to vector<2x1x1x128xf32>
    %144 = vector.shape_cast %143 : vector<2x1x1x128xf32> to vector<2x128xf32>
    %145 = vector.extract_strided_slice %118 {offsets = [0, 3, 2, 0], sizes = [2, 1, 1, 128], strides = [1, 1, 1, 1]} : vector<2x4x8x128xf32> to vector<2x1x1x128xf32>
    %146 = vector.shape_cast %145 : vector<2x1x1x128xf32> to vector<2x128xf32>
    %147 = vector.extract_strided_slice %118 {offsets = [0, 3, 4, 0], sizes = [2, 1, 1, 128], strides = [1, 1, 1, 1]} : vector<2x4x8x128xf32> to vector<2x1x1x128xf32>
    %148 = vector.shape_cast %147 : vector<2x1x1x128xf32> to vector<2x128xf32>
    %149 = vector.extract_strided_slice %118 {offsets = [0, 3, 6, 0], sizes = [2, 1, 1, 128], strides = [1, 1, 1, 1]} : vector<2x4x8x128xf32> to vector<2x1x1x128xf32>
    %150 = vector.shape_cast %149 : vector<2x1x1x128xf32> to vector<2x128xf32>
    %151 = tpu.concatenate %120, %122, %124, %126, %128, %130, %132, %134, %136, %138, %140, %142, %144, %146, %148, %150 in 1 : vector<2x128xf32>, vector<2x128xf32>, vector<2x128xf32>, vector<2x128xf32>, vector<2x128xf32>, vector<2x128xf32>, vector<2x128xf32>, vector<2x128xf32>, vector<2x128xf32>, vector<2x128xf32>, vector<2x128xf32>, vector<2x128xf32>, vector<2x128xf32>, vector<2x128xf32>, vector<2x128xf32>, vector<2x128xf32> -> vector<2x2048xf32>
    %152 = arith.truncf %151 : vector<2x2048xf32> to vector<2x2048xbf16>
    %c0_13 = arith.constant 0 : index
    %c0_14 = arith.constant 0 : index
    %153 = vector.load %arg6[%c0_13, %c0_14] : memref<2048x128xbf16, #tpu.memory_space<vmem>>, vector<2048x128xbf16>
    %cst_15 = arith.constant dense<0.000000e+00> : vector<2x128xf32>
    %154 = tpu.matmul %152, %153, %cst_15 {dimension_numbers = #tpu.dot_dimension_numbers<[1], [0], [0], [1], [0, 0, 1, 1], [], []>} : vector<2x2048xbf16>, vector<2048x128xbf16>, vector<2x128xf32> -> vector<2x128xf32>
    %c0_16 = arith.constant 0 : index
    %c0_17 = arith.constant 0 : index
    %155 = vector.load %arg7[%c0_16, %c0_17] : memref<1x128xf32, #tpu.memory_space<vmem>>, vector<1x128xf32>
    %156 = vector.broadcast %155 : vector<1x128xf32> to vector<2x128xf32>
    %157 = arith.addf %154, %156 : vector<2x128xf32>
    %c0_18 = arith.constant 0 : index
    %c0_19 = arith.constant 0 : index
    %158 = vector.load %arg8[%c0_18, %c0_19] : memref<2x128xf32, #tpu.memory_space<vmem>>, vector<2x128xf32>
    tpu.vector_store %arg8[%c0_18, %c0_19], %157 {strides = array<i32>} : memref<2x128xf32, #tpu.memory_space<vmem>>, vector<2x128xf32>,
    return
  }
  func.func @transform_0(%arg0: i32) -> (i32, i32, i32) {
    %c0_i32 = arith.constant 0 : i32
    %c0_i32_0 = arith.constant 0 : i32
    %c0_i32_1 = arith.constant 0 : i32
    return %arg0, %c0_i32, %c0_i32_0 : i32, i32, i32
  }
  func.func @transform_1(%arg0: i32) -> (i32, i32) {
    %c0_i32 = arith.constant 0 : i32
    %c0_i32_0 = arith.constant 0 : i32
    %c0_i32_1 = arith.constant 0 : i32
    return %c0_i32, %c0_i32_0 : i32, i32
  }
  func.func @transform_2(%arg0: i32) -> (i32, i32) {
    %c0_i32 = arith.constant 0 : i32
    %c0_i32_0 = arith.constant 0 : i32
    %c0_i32_1 = arith.constant 0 : i32
    return %c0_i32, %c0_i32_0 : i32, i32
  }
  func.func @transform_3(%arg0: i32) -> (i32, i32) {
    %c0_i32 = arith.constant 0 : i32
    %c0_i32_0 = arith.constant 0 : i32
    %c0_i32_1 = arith.constant 0 : i32
    return %c0_i32, %c0_i32_0 : i32, i32
  }
  func.func @transform_4(%arg0: i32) -> (i32, i32) {
    %c0_i32 = arith.constant 0 : i32
    %c0_i32_0 = arith.constant 0 : i32
    %c0_i32_1 = arith.constant 0 : i32
    return %c0_i32, %c0_i32_0 : i32, i32
  }
  func.func @transform_5(%arg0: i32) -> (i32, i32) {
    %c0_i32 = arith.constant 0 : i32
    %c0_i32_0 = arith.constant 0 : i32
    %c0_i32_1 = arith.constant 0 : i32
    return %c0_i32, %c0_i32_0 : i32, i32
  }
  func.func @transform_6(%arg0: i32) -> (i32, i32) {
    %c0_i32 = arith.constant 0 : i32
    %c0_i32_0 = arith.constant 0 : i32
    %c0_i32_1 = arith.constant 0 : i32
    return %c0_i32, %c0_i32_0 : i32, i32
  }
  func.func @transform_7(%arg0: i32) -> (i32, i32) {
    %c0_i32 = arith.constant 0 : i32
    %c0_i32_0 = arith.constant 0 : i32
    return %arg0, %c0_i32 : i32, i32
  }
}

</mosaic_0001>

<llo_original>
// kernel: net_forward.1
$region0: #{net_forward.1}
  #allocation0 [shape = 'u32[]', space=smem, size = 0x4, offset = 0x4, fixed_abs, tag = 'smem constant byte address 0x4 - core index']
  #allocation1 [shape = 'u32[144,128]{1,0:T(1,128)}', space=vmem, size = 0x12000, scoped, tag = 'internal scratch']
  %s0 = inlined_call_operand.vmem [shape: bf16[2,768,25], index: 0, kind: input, shape index: {}]
  %s1 = inlined_call_operand.vmem [shape: bf16[25,128], index: 1, kind: input, shape index: {}]
  %s2 = inlined_call_operand.vmem [shape: f32[1,128], index: 2, kind: input, shape index: {}]
  %s3 = inlined_call_operand.vmem [shape: bf16[3200,128], index: 3, kind: input, shape index: {}]
  %s4 = inlined_call_operand.vmem [shape: f32[1,128], index: 4, kind: input, shape index: {}]
  %s5 = inlined_call_operand.vmem [shape: bf16[2048,128], index: 5, kind: input, shape index: {}]
  %s6 = inlined_call_operand.vmem [shape: f32[1,128], index: 6, kind: input, shape index: {}]
  %s7 = inlined_call_operand.hbm [shape: f32[2,128], index: 7, kind: output, shape index: {}]
  %s8 = sld [smem:[#allocation0]]
  $region38: #{net_forward.1} parent=0
    _
  %s10 = ssub.s32 1, %s8
  %s11 = scalar_select 0, %s10, %s8
  $region1: #{net_forward.1} parent=0
    #allocation2 [shape = 'u8[1024]{0}', space=vmem, size = 0x400, scoped, tag = 'output window, operand 0, single buffered']
    #allocation3 [shape = 's32[1]{0}', space=sflag, size = 0x4, scoped, tag = 'scoped memory for net_forward.1']
    %12 = vsyncpa [#allocation3], 0
    // Predicated region
    $region2: #{net_forward.1} parent=1 // pred_check
      _
    $region3: #{net_forward.1} parent=1 // pred_check_branch
      %14 = sbr.rel (0) target = $region5
    $region4: #{net_forward.1} parent=1 // pred_region
      _
    $region5: #{net_forward.1} parent=1 // pred_fallthru
      _
    // Predicated region
    $region6: #{net_forward.1} parent=1 // pred_check
      _
    $region7: #{net_forward.1} parent=1 // pred_check_branch
      %16 = sbr.rel (0) target = $region9
    $region8: #{net_forward.1} parent=1 // pred_region
      _
    $region9: #{net_forward.1} parent=1 // pred_fallthru
      _
    // Predicated region
    $region10: #{net_forward.1} parent=1 // pred_check
      _
    $region11: #{net_forward.1} parent=1 // pred_check_branch
      %18 = sbr.rel (0) target = $region13
    $region12: #{net_forward.1} parent=1 // pred_region
      _
    $region13: #{net_forward.1} parent=1 // pred_fallthru
      _
    // Predicated region
    $region14: #{net_forward.1} parent=1 // pred_check
      _
    $region15: #{net_forward.1} parent=1 // pred_check_branch
      %20 = sbr.rel (0) target = $region17
    $region16: #{net_forward.1} parent=1 // pred_region
      _
    $region17: #{net_forward.1} parent=1 // pred_fallthru
      _
    // Predicated region
    $region18: #{net_forward.1} parent=1 // pred_check
      _
    $region19: #{net_forward.1} parent=1 // pred_check_branch
      %22 = sbr.rel (0) target = $region21
    $region20: #{net_forward.1} parent=1 // pred_region
      _
    $region21: #{net_forward.1} parent=1 // pred_fallthru
      _
    // Predicated region
    $region22: #{net_forward.1} parent=1 // pred_check
      _
    $region23: #{net_forward.1} parent=1 // pred_check_branch
      %24 = sbr.rel (0) target = $region25
    $region24: #{net_forward.1} parent=1 // pred_region
      _
    $region25: #{net_forward.1} parent=1 // pred_fallthru
      _
    // Predicated region
    $region26: #{net_forward.1} parent=1 // pred_check
      _
    $region27: #{net_forward.1} parent=1 // pred_check_branch
      %26 = sbr.rel (0) target = $region29
    $region28: #{net_forward.1} parent=1 // pred_region
      _
    $region29: #{net_forward.1} parent=1 // pred_fallthru
      _
    %v28 = vld [vmem:[%s0] sm:$0xf]
    %v29 = vld [vmem:[%s0 + $0x4] sm:$0xf]
    %v30 = vld [vmem:[%s0 + $0x8] sm:$0xf]
    %v31 = vld [vmem:[%s0 + $0xc] sm:$0xf]
    %v32 = vld [vmem:[%s0 + $0x10] sm:$0xf]
    %v33 = vld [vmem:[%s0 + $0x14] sm:$0xf]
    %v34 = vld [vmem:[%s0 + $0x18] sm:$0xf]
    %v35 = vld [vmem:[%s0 + $0x1c] sm:$0xf]
    %v36 = vld [vmem:[%s0 + $0x20] sm:$0xf]
    %v37 = vld [vmem:[%s0 + $0x24] sm:$0xf]
    %v38 = vld [vmem:[%s0 + $0x28] sm:$0xf]
    %v39 = vld [vmem:[%s0 + $0x2c] sm:$0xf]
    %v40 = vld [vmem:[%s0 + $0x30] sm:$0xf]
    %v41 = vld [vmem:[%s0 + $0x34] sm:$0xf]
    %v42 = vld [vmem:[%s0 + $0x38] sm:$0xf]
    %v43 = vld [vmem:[%s0 + $0x3c] sm:$0xf]
    %v44 = vld [vmem:[%s0 + $0x40] sm:$0xf]
    %v45 = vld [vmem:[%s0 + $0x44] sm:$0xf]
    %v46 = vld [vmem:[%s0 + $0x48] sm:$0xf]
    %v47 = vld [vmem:[%s0 + $0x4c] sm:$0xf]
    %v48 = vld [vmem:[%s0 + $0x50] sm:$0xf]
    %v49 = vld [vmem:[%s0 + $0x54] sm:$0xf]
    %v50 = vld [vmem:[%s0 + $0x58] sm:$0xf]
    %v51 = vld [vmem:[%s0 + $0x5c] sm:$0xf]
    %v52 = vld [vmem:[%s0 + $0x60] sm:$0xf]
    %v53 = vld [vmem:[%s0 + $0x64] sm:$0xf]
    %v54 = vld [vmem:[%s0 + $0x68] sm:$0xf]
    %v55 = vld [vmem:[%s0 + $0x6c] sm:$0xf]
    %v56 = vld [vmem:[%s0 + $0x70] sm:$0xf]
    %v57 = vld [vmem:[%s0 + $0x74] sm:$0xf]
    %v58 = vld [vmem:[%s0 + $0x78] sm:$0xf]
    %v59 = vld [vmem:[%s0 + $0x7c] sm:$0xf]
    %v60 = vld [vmem:[%s0 + $0x80] sm:$0xf]
    %v61 = vld [vmem:[%s0 + $0x84] sm:$0xf]
    %v62 = vld [vmem:[%s0 + $0x88] sm:$0xf]
    %v63 = vld [vmem:[%s0 + $0x8c] sm:$0xf]
    %v64 = vld [vmem:[%s0 + $0x90] sm:$0xf]
    %v65 = vld [vmem:[%s0 + $0x94] sm:$0xf]
    %v66 = vld [vmem:[%s0 + $0x98] sm:$0xf]
    %v67 = vld [vmem:[%s0 + $0x9c] sm:$0xf]
    %v68 = vld [vmem:[%s0 + $0xa0] sm:$0xf]
    %v69 = vld [vmem:[%s0 + $0xa4] sm:$0xf]
    %v70 = vld [vmem:[%s0 + $0xa8] sm:$0xf]
    %v71 = vld [vmem:[%s0 + $0xac] sm:$0xf]
    %v72 = vld [vmem:[%s0 + $0xb0] sm:$0xf]
    %v73 = vld [vmem:[%s0 + $0xb4] sm:$0xf]
    %v74 = vld [vmem:[%s0 + $0xb8] sm:$0xf]
    %v75 = vld [vmem:[%s0 + $0xbc] sm:$0xf]
    %v76 = vld [vmem:[%s0 + $0xc0] sm:$0xf]
    %v77 = vld [vmem:[%s0 + $0xc4] sm:$0xf]
    %v78 = vld [vmem:[%s0 + $0xc8] sm:$0xf]
    %v79 = vld [vmem:[%s0 + $0xcc] sm:$0xf]
    %v80 = vld [vmem:[%s0 + $0xd0] sm:$0xf]
    %v81 = vld [vmem:[%s0 + $0xd4] sm:$0xf]
    %v82 = vld [vmem:[%s0 + $0xd8] sm:$0xf]
    %v83 = vld [vmem:[%s0 + $0xdc] sm:$0xf]
    %v84 = vld [vmem:[%s0 + $0xe0] sm:$0xf]
    %v85 = vld [vmem:[%s0 + $0xe4] sm:$0xf]
    %v86 = vld [vmem:[%s0 + $0xe8] sm:$0xf]
    %v87 = vld [vmem:[%s0 + $0xec] sm:$0xf]
    %v88 = vld [vmem:[%s0 + $0xf0] sm:$0xf]
    %v89 = vld [vmem:[%s0 + $0xf4] sm:$0xf]
    %v90 = vld [vmem:[%s0 + $0xf8] sm:$0xf]
    %v91 = vld [vmem:[%s0 + $0xfc] sm:$0xf]
    %v92 = vld [vmem:[%s0 + $0x100] sm:$0xf]
    %v93 = vld [vmem:[%s0 + $0x104] sm:$0xf]
    %v94 = vld [vmem:[%s0 + $0x108] sm:$0xf]
    %v95 = vld [vmem:[%s0 + $0x10c] sm:$0xf]
    %v96 = vld [vmem:[%s0 + $0x110] sm:$0xf]
    %v97 = vld [vmem:[%s0 + $0x114] sm:$0xf]
    %v98 = vld [vmem:[%s0 + $0x118] sm:$0xf]
    %v99 = vld [vmem:[%s0 + $0x11c] sm:$0xf]
    %v100 = vld [vmem:[%s0 + $0x120] sm:$0xf]
    %v101 = vld [vmem:[%s0 + $0x124] sm:$0xf]
    %v102 = vld [vmem:[%s0 + $0x128] sm:$0xf]
    %v103 = vld [vmem:[%s0 + $0x12c] sm:$0xf]
    %v104 = vld [vmem:[%s0 + $0x130] sm:$0xf]
    %v105 = vld [vmem:[%s0 + $0x134] sm:$0xf]
    %v106 = vld [vmem:[%s0 + $0x138] sm:$0xf]
    %v107 = vld [vmem:[%s0 + $0x13c] sm:$0xf]
    %v108 = vld [vmem:[%s0 + $0x140] sm:$0xf]
    %v109 = vld [vmem:[%s0 + $0x144] sm:$0xf]
    %v110 = vld [vmem:[%s0 + $0x148] sm:$0xf]
    %v111 = vld [vmem:[%s0 + $0x14c] sm:$0xf]
    %v112 = vld [vmem:[%s0 + $0x150] sm:$0xf]
    %v113 = vld [vmem:[%s0 + $0x154] sm:$0xf]
    %v114 = vld [vmem:[%s0 + $0x158] sm:$0xf]
    %v115 = vld [vmem:[%s0 + $0x15c] sm:$0xf]
    %v116 = vld [vmem:[%s0 + $0x160] sm:$0xf]
    %v117 = vld [vmem:[%s0 + $0x164] sm:$0xf]
    %v118 = vld [vmem:[%s0 + $0x168] sm:$0xf]
    %v119 = vld [vmem:[%s0 + $0x16c] sm:$0xf]
    %v120 = vld [vmem:[%s0 + $0x170] sm:$0xf]
    %v121 = vld [vmem:[%s0 + $0x174] sm:$0xf]
    %v122 = vld [vmem:[%s0 + $0x178] sm:$0xf]
    %v123 = vld [vmem:[%s0 + $0x17c] sm:$0xf]
    %v124 = vld [vmem:[%s0 + $0x180] sm:$0xf]
    %v125 = vld [vmem:[%s0 + $0x184] sm:$0xf]
    %v126 = vld [vmem:[%s0 + $0x188] sm:$0xf]
    %v127 = vld [vmem:[%s0 + $0x18c] sm:$0xf]
    %v128 = vld [vmem:[%s0 + $0x190] sm:$0xf]
    %v129 = vld [vmem:[%s0 + $0x194] sm:$0xf]
    %v130 = vld [vmem:[%s0 + $0x198] sm:$0xf]
    %v131 = vld [vmem:[%s0 + $0x19c] sm:$0xf]
    %v132 = vld [vmem:[%s0 + $0x1a0] sm:$0xf]
    %v133 = vld [vmem:[%s0 + $0x1a4] sm:$0xf]
    %v134 = vld [vmem:[%s0 + $0x1a8] sm:$0xf]
    %v135 = vld [vmem:[%s0 + $0x1ac] sm:$0xf]
    %v136 = vld [vmem:[%s0 + $0x1b0] sm:$0xf]
    %v137 = vld [vmem:[%s0 + $0x1b4] sm:$0xf]
    %v138 = vld [vmem:[%s0 + $0x1b8] sm:$0xf]
    %v139 = vld [vmem:[%s0 + $0x1bc] sm:$0xf]
    %v140 = vld [vmem:[%s0 + $0x1c0] sm:$0xf]
    %v141 = vld [vmem:[%s0 + $0x1c4] sm:$0xf]
    %v142 = vld [vmem:[%s0 + $0x1c8] sm:$0xf]
    %v143 = vld [vmem:[%s0 + $0x1cc] sm:$0xf]
    %v144 = vld [vmem:[%s0 + $0x1d0] sm:$0xf]
    %v145 = vld [vmem:[%s0 + $0x1d4] sm:$0xf]
    %v146 = vld [vmem:[%s0 + $0x1d8] sm:$0xf]
    %v147 = vld [vmem:[%s0 + $0x1dc] sm:$0xf]
    %v148 = vld [vmem:[%s0 + $0x1e0] sm:$0xf]
    %v149 = vld [vmem:[%s0 + $0x1e4] sm:$0xf]
    %v150 = vld [vmem:[%s0 + $0x1e8] sm:$0xf]
    %v151 = vld [vmem:[%s0 + $0x1ec] sm:$0xf]
    %v152 = vld [vmem:[%s0 + $0x1f0] sm:$0xf]
    %v153 = vld [vmem:[%s0 + $0x1f4] sm:$0xf]
    %v154 = vld [vmem:[%s0 + $0x1f8] sm:$0xf]
    %v155 = vld [vmem:[%s0 + $0x1fc] sm:$0xf]
    %v156 = vld [vmem:[%s0 + $0x200] sm:$0xf]
    %v157 = vld [vmem:[%s0 + $0x204] sm:$0xf]
    %v158 = vld [vmem:[%s0 + $0x208] sm:$0xf]
    %v159 = vld [vmem:[%s0 + $0x20c] sm:$0xf]
    %v160 = vld [vmem:[%s0 + $0x210] sm:$0xf]
    %v161 = vld [vmem:[%s0 + $0x214] sm:$0xf]
    %v162 = vld [vmem:[%s0 + $0x218] sm:$0xf]
    %v163 = vld [vmem:[%s0 + $0x21c] sm:$0xf]
    %v164 = vld [vmem:[%s0 + $0x220] sm:$0xf]
    %v165 = vld [vmem:[%s0 + $0x224] sm:$0xf]
    %v166 = vld [vmem:[%s0 + $0x228] sm:$0xf]
    %v167 = vld [vmem:[%s0 + $0x22c] sm:$0xf]
    %v168 = vld [vmem:[%s0 + $0x230] sm:$0xf]
    %v169 = vld [vmem:[%s0 + $0x234] sm:$0xf]
    %v170 = vld [vmem:[%s0 + $0x238] sm:$0xf]
    %v171 = vld [vmem:[%s0 + $0x23c] sm:$0xf]
    %v172 = vld [vmem:[%s0 + $0x240] sm:$0xf]
    %v173 = vld [vmem:[%s0 + $0x244] sm:$0xf]
    %v174 = vld [vmem:[%s0 + $0x248] sm:$0xf]
    %v175 = vld [vmem:[%s0 + $0x24c] sm:$0xf]
    %v176 = vld [vmem:[%s0 + $0x250] sm:$0xf]
    %v177 = vld [vmem:[%s0 + $0x254] sm:$0xf]
    %v178 = vld [vmem:[%s0 + $0x258] sm:$0xf]
    %v179 = vld [vmem:[%s0 + $0x25c] sm:$0xf]
    %v180 = vld [vmem:[%s0 + $0x260] sm:$0xf]
    %v181 = vld [vmem:[%s0 + $0x264] sm:$0xf]
    %v182 = vld [vmem:[%s0 + $0x268] sm:$0xf]
    %v183 = vld [vmem:[%s0 + $0x26c] sm:$0xf]
    %v184 = vld [vmem:[%s0 + $0x270] sm:$0xf]
    %v185 = vld [vmem:[%s0 + $0x274] sm:$0xf]
    %v186 = vld [vmem:[%s0 + $0x278] sm:$0xf]
    %v187 = vld [vmem:[%s0 + $0x27c] sm:$0xf]
    %v188 = vld [vmem:[%s0 + $0x280] sm:$0xf]
    %v189 = vld [vmem:[%s0 + $0x284] sm:$0xf]
    %v190 = vld [vmem:[%s0 + $0x288] sm:$0xf]
    %v191 = vld [vmem:[%s0 + $0x28c] sm:$0xf]
    %v192 = vld [vmem:[%s0 + $0x290] sm:$0xf]
    %v193 = vld [vmem:[%s0 + $0x294] sm:$0xf]
    %v194 = vld [vmem:[%s0 + $0x298] sm:$0xf]
    %v195 = vld [vmem:[%s0 + $0x29c] sm:$0xf]
    %v196 = vld [vmem:[%s0 + $0x2a0] sm:$0xf]
    %v197 = vld [vmem:[%s0 + $0x2a4] sm:$0xf]
    %v198 = vld [vmem:[%s0 + $0x2a8] sm:$0xf]
    %v199 = vld [vmem:[%s0 + $0x2ac] sm:$0xf]
    %v200 = vld [vmem:[%s0 + $0x2b0] sm:$0xf]
    %v201 = vld [vmem:[%s0 + $0x2b4] sm:$0xf]
    %v202 = vld [vmem:[%s0 + $0x2b8] sm:$0xf]
    %v203 = vld [vmem:[%s0 + $0x2bc] sm:$0xf]
    %v204 = vld [vmem:[%s0 + $0x2c0] sm:$0xf]
    %v205 = vld [vmem:[%s0 + $0x2c4] sm:$0xf]
    %v206 = vld [vmem:[%s0 + $0x2c8] sm:$0xf]
    %v207 = vld [vmem:[%s0 + $0x2cc] sm:$0xf]
    %v208 = vld [vmem:[%s0 + $0x2d0] sm:$0xf]
    %v209 = vld [vmem:[%s0 + $0x2d4] sm:$0xf]
    %v210 = vld [vmem:[%s0 + $0x2d8] sm:$0xf]
    %v211 = vld [vmem:[%s0 + $0x2dc] sm:$0xf]
    %v212 = vld [vmem:[%s0 + $0x2e0] sm:$0xf]
    %v213 = vld [vmem:[%s0 + $0x2e4] sm:$0xf]
    %v214 = vld [vmem:[%s0 + $0x2e8] sm:$0xf]
    %v215 = vld [vmem:[%s0 + $0x2ec] sm:$0xf]
    %v216 = vld [vmem:[%s0 + $0x2f0] sm:$0xf]
    %v217 = vld [vmem:[%s0 + $0x2f4] sm:$0xf]
    %v218 = vld [vmem:[%s0 + $0x2f8] sm:$0xf]
    %v219 = vld [vmem:[%s0 + $0x2fc] sm:$0xf]
    %v220 = vld [vmem:[%s1] sm:$0xf]
    %v221 = vld [vmem:[%s1 + $0x4] sm:$0xf]
    %v222 = vld [vmem:[%s1 + $0x8] sm:$0xf]
    %v223 = vld [vmem:[%s1 + $0xc] sm:$0x1]
    %v416 = vunpack.c.l.b16 %v28
    %v417 = vunpack.c.l.b16 %v29
    %v418 = vunpack.c.l.b16 %v30
    %v419 = vunpack.c.l.b16 %v31
    %v420 = vunpack.c.l.b16 %v32
    %v421 = vunpack.c.l.b16 %v33
    %v422 = vunpack.c.l.b16 %v34
    %v423 = vunpack.c.l.b16 %v35
    %v424 = vunpack.c.l.b16 %v36
    %v425 = vunpack.c.l.b16 %v37
    %v426 = vunpack.c.l.b16 %v38
    %v427 = vunpack.c.l.b16 %v39
    %v428 = vunpack.c.l.b16 %v40
    %v429 = vunpack.c.l.b16 %v41
    %v430 = vunpack.c.l.b16 %v42
    %v431 = vunpack.c.l.b16 %v43
    %v432 = vunpack.c.l.b16 %v44
    %v433 = vunpack.c.l.b16 %v45
    %v434 = vunpack.c.l.b16 %v46
    %v435 = vunpack.c.l.b16 %v47
    %v436 = vunpack.c.l.b16 %v48
    %v437 = vunpack.c.l.b16 %v49
    %v438 = vunpack.c.l.b16 %v50
    %v439 = vunpack.c.l.b16 %v51
    %v440 = vunpack.c.l.b16 %v52
    %v441 = vunpack.c.l.b16 %v53
    %v442 = vunpack.c.l.b16 %v54
    %v443 = vunpack.c.l.b16 %v55
    %v444 = vunpack.c.l.b16 %v56
    %v445 = vunpack.c.l.b16 %v57
    %v446 = vunpack.c.l.b16 %v58
    %v447 = vunpack.c.l.b16 %v59
    %v448 = vunpack.c.l.b16 %v60
    %v449 = vunpack.c.l.b16 %v61
    %v450 = vunpack.c.l.b16 %v62
    %v451 = vunpack.c.l.b16 %v63
    %v452 = vunpack.c.l.b16 %v64
    %v453 = vunpack.c.l.b16 %v65
    %v454 = vunpack.c.l.b16 %v66
    %v455 = vunpack.c.l.b16 %v67
    %v456 = vunpack.c.l.b16 %v68
    %v457 = vunpack.c.l.b16 %v69
    %v458 = vunpack.c.l.b16 %v70
    %v459 = vunpack.c.l.b16 %v71
    %v460 = vunpack.c.l.b16 %v72
    %v461 = vunpack.c.l.b16 %v73
    %v462 = vunpack.c.l.b16 %v74
    %v463 = vunpack.c.l.b16 %v75
    %v464 = vunpack.c.l.b16 %v76
    %v465 = vunpack.c.l.b16 %v77
    %v466 = vunpack.c.l.b16 %v78
    %v467 = vunpack.c.l.b16 %v79
    %v468 = vunpack.c.l.b16 %v80
    %v469 = vunpack.c.l.b16 %v81
    %v470 = vunpack.c.l.b16 %v82
    %v471 = vunpack.c.l.b16 %v83
    %v472 = vunpack.c.l.b16 %v84
    %v473 = vunpack.c.l.b16 %v85
    %v474 = vunpack.c.l.b16 %v86
    %v475 = vunpack.c.l.b16 %v87
    %v476 = vunpack.c.l.b16 %v88
    %v477 = vunpack.c.l.b16 %v89
    %v478 = vunpack.c.l.b16 %v90
    %v479 = vunpack.c.l.b16 %v91
    %v480 = vunpack.c.l.b16 %v92
    %v481 = vunpack.c.l.b16 %v93
    %v482 = vunpack.c.l.b16 %v94
    %v483 = vunpack.c.l.b16 %v95
    %v484 = vunpack.c.l.b16 %v96
    %v485 = vunpack.c.l.b16 %v97
    %v486 = vunpack.c.l.b16 %v98
    %v487 = vunpack.c.l.b16 %v99
    %v488 = vunpack.c.l.b16 %v100
    %v489 = vunpack.c.l.b16 %v101
    %v490 = vunpack.c.l.b16 %v102
    %v491 = vunpack.c.l.b16 %v103
    %v492 = vunpack.c.l.b16 %v104
    %v493 = vunpack.c.l.b16 %v105
    %v494 = vunpack.c.l.b16 %v106
    %v495 = vunpack.c.l.b16 %v107
    %v496 = vunpack.c.l.b16 %v108
    %v497 = vunpack.c.l.b16 %v109
    %v498 = vunpack.c.l.b16 %v110
    %v499 = vunpack.c.l.b16 %v111
    %v500 = vunpack.c.l.b16 %v112
    %v501 = vunpack.c.l.b16 %v113
    %v502 = vunpack.c.l.b16 %v114
    %v503 = vunpack.c.l.b16 %v115
    %v504 = vunpack.c.l.b16 %v116
    %v505 = vunpack.c.l.b16 %v117
    %v506 = vunpack.c.l.b16 %v118
    %v507 = vunpack.c.l.b16 %v119
    %v508 = vunpack.c.l.b16 %v120
    %v509 = vunpack.c.l.b16 %v121
    %v510 = vunpack.c.l.b16 %v122
    %v511 = vunpack.c.l.b16 %v123
    %v512 = vunpack.c.l.b16 %v124
    %v513 = vunpack.c.l.b16 %v125
    %v514 = vunpack.c.l.b16 %v126
    %v515 = vunpack.c.l.b16 %v127
    %v516 = vunpack.c.l.b16 %v128
    %v517 = vunpack.c.l.b16 %v129
    %v518 = vunpack.c.l.b16 %v130
    %v519 = vunpack.c.l.b16 %v131
    %v520 = vunpack.c.l.b16 %v132
    %v521 = vunpack.c.l.b16 %v133
    %v522 = vunpack.c.l.b16 %v134
    %v523 = vunpack.c.l.b16 %v135
    %v524 = vunpack.c.l.b16 %v136
    %v525 = vunpack.c.l.b16 %v137
    %v526 = vunpack.c.l.b16 %v138
    %v527 = vunpack.c.l.b16 %v139
    %v528 = vunpack.c.l.b16 %v140
    %v529 = vunpack.c.l.b16 %v141
    %v530 = vunpack.c.l.b16 %v142
    %v531 = vunpack.c.l.b16 %v143
    %v532 = vunpack.c.l.b16 %v144
    %v533 = vunpack.c.l.b16 %v145
    %v534 = vunpack.c.l.b16 %v146
    %v535 = vunpack.c.l.b16 %v147
    %v536 = vunpack.c.l.b16 %v148
    %v537 = vunpack.c.l.b16 %v149
    %v538 = vunpack.c.l.b16 %v150
    %v539 = vunpack.c.l.b16 %v151
    %v540 = vunpack.c.l.b16 %v152
    %v541 = vunpack.c.l.b16 %v153
    %v542 = vunpack.c.l.b16 %v154
    %v543 = vunpack.c.l.b16 %v155
    %v544 = vunpack.c.l.b16 %v156
    %v545 = vunpack.c.l.b16 %v157
    %v546 = vunpack.c.l.b16 %v158
    %v547 = vunpack.c.l.b16 %v159
    %v548 = vunpack.c.l.b16 %v160
    %v549 = vunpack.c.l.b16 %v161
    %v550 = vunpack.c.l.b16 %v162
    %v551 = vunpack.c.l.b16 %v163
    %v552 = vunpack.c.l.b16 %v164
    %v553 = vunpack.c.l.b16 %v165
    %v554 = vunpack.c.l.b16 %v166
    %v555 = vunpack.c.l.b16 %v167
    %v556 = vunpack.c.l.b16 %v168
    %v557 = vunpack.c.l.b16 %v169
    %v558 = vunpack.c.l.b16 %v170
    %v559 = vunpack.c.l.b16 %v171
    %v560 = vunpack.c.l.b16 %v172
    %v561 = vunpack.c.l.b16 %v173
    %v562 = vunpack.c.l.b16 %v174
    %v563 = vunpack.c.l.b16 %v175
    %v564 = vunpack.c.l.b16 %v176
    %v565 = vunpack.c.l.b16 %v177
    %v566 = vunpack.c.l.b16 %v178
    %v567 = vunpack.c.l.b16 %v179
    %v568 = vunpack.c.l.b16 %v180
    %v569 = vunpack.c.l.b16 %v181
    %v570 = vunpack.c.l.b16 %v182
    %v571 = vunpack.c.l.b16 %v183
    %v572 = vunpack.c.l.b16 %v184
    %v573 = vunpack.c.l.b16 %v185
    %v574 = vunpack.c.l.b16 %v186
    %v575 = vunpack.c.l.b16 %v187
    %v576 = vunpack.c.l.b16 %v188
    %v577 = vunpack.c.l.b16 %v189
    %v578 = vunpack.c.l.b16 %v190
    %v579 = vunpack.c.l.b16 %v191
    %v580 = vunpack.c.l.b16 %v192
    %v581 = vunpack.c.l.b16 %v193
    %v582 = vunpack.c.l.b16 %v194
    %v583 = vunpack.c.l.b16 %v195
    %v584 = vunpack.c.l.b16 %v196
    %v585 = vunpack.c.l.b16 %v197
    %v586 = vunpack.c.l.b16 %v198
    %v587 = vunpack.c.l.b16 %v199
    %v588 = vunpack.c.l.b16 %v200
    %v589 = vunpack.c.l.b16 %v201
    %v590 = vunpack.c.l.b16 %v202
    %v591 = vunpack.c.l.b16 %v203
    %v592 = vunpack.c.l.b16 %v204
    %v593 = vunpack.c.l.b16 %v205
    %v594 = vunpack.c.l.b16 %v206
    %v595 = vunpack.c.l.b16 %v207
    %v596 = vunpack.c.l.b16 %v208
    %v597 = vunpack.c.l.b16 %v209
    %v598 = vunpack.c.l.b16 %v210
    %v599 = vunpack.c.l.b16 %v211
    %v600 = vunpack.c.l.b16 %v212
    %v601 = vunpack.c.l.b16 %v213
    %v602 = vunpack.c.l.b16 %v214
    %v603 = vunpack.c.l.b16 %v215
    %v604 = vunpack.c.l.b16 %v216
    %v605 = vunpack.c.l.b16 %v217
    %v606 = vunpack.c.l.b16 %v218
    %v607 = vunpack.c.l.b16 %v219
    %v608 = vpack.c.b16 %v417, %v416
    %v609 = vpack.c.b16 %v419, %v418
    %v610 = vpack.c.b16 %v421, %v420
    %v611 = vpack.c.b16 %v423, %v422
    %v612 = vpack.c.b16 %v425, %v424
    %v613 = vpack.c.b16 %v427, %v426
    %v614 = vpack.c.b16 %v429, %v428
    %v615 = vpack.c.b16 %v431, %v430
    %v616 = vpack.c.b16 %v433, %v432
    %v617 = vpack.c.b16 %v435, %v434
    %v618 = vpack.c.b16 %v437, %v436
    %v619 = vpack.c.b16 %v439, %v438
    %v620 = vpack.c.b16 %v441, %v440
    %v621 = vpack.c.b16 %v443, %v442
    %v622 = vpack.c.b16 %v445, %v444
    %v623 = vpack.c.b16 %v447, %v446
    %v624 = vpack.c.b16 %v449, %v448
    %v625 = vpack.c.b16 %v451, %v450
    %v626 = vpack.c.b16 %v453, %v452
    %v627 = vpack.c.b16 %v455, %v454
    %v628 = vpack.c.b16 %v457, %v456
    %v629 = vpack.c.b16 %v459, %v458
    %v630 = vpack.c.b16 %v461, %v460
    %v631 = vpack.c.b16 %v463, %v462
    %v632 = vpack.c.b16 %v465, %v464
    %v633 = vpack.c.b16 %v467, %v466
    %v634 = vpack.c.b16 %v469, %v468
    %v635 = vpack.c.b16 %v471, %v470
    %v636 = vpack.c.b16 %v473, %v472
    %v637 = vpack.c.b16 %v475, %v474
    %v638 = vpack.c.b16 %v477, %v476
    %v639 = vpack.c.b16 %v479, %v478
    %v640 = vpack.c.b16 %v481, %v480
    %v641 = vpack.c.b16 %v483, %v482
    %v642 = vpack.c.b16 %v485, %v484
    %v643 = vpack.c.b16 %v487, %v486
    %v644 = vpack.c.b16 %v489, %v488
    %v645 = vpack.c.b16 %v491, %v490
    %v646 = vpack.c.b16 %v493, %v492
    %v647 = vpack.c.b16 %v495, %v494
    %v648 = vpack.c.b16 %v497, %v496
    %v649 = vpack.c.b16 %v499, %v498
    %v650 = vpack.c.b16 %v501, %v500
    %v651 = vpack.c.b16 %v503, %v502
    %v652 = vpack.c.b16 %v505, %v504
    %v653 = vpack.c.b16 %v507, %v506
    %v654 = vpack.c.b16 %v509, %v508
    %v655 = vpack.c.b16 %v511, %v510
    %v656 = vpack.c.b16 %v513, %v512
    %v657 = vpack.c.b16 %v515, %v514
    %v658 = vpack.c.b16 %v517, %v516
    %v659 = vpack.c.b16 %v519, %v518
    %v660 = vpack.c.b16 %v521, %v520
    %v661 = vpack.c.b16 %v523, %v522
    %v662 = vpack.c.b16 %v525, %v524
    %v663 = vpack.c.b16 %v527, %v526
    %v664 = vpack.c.b16 %v529, %v528
    %v665 = vpack.c.b16 %v531, %v530
    %v666 = vpack.c.b16 %v533, %v532
    %v667 = vpack.c.b16 %v535, %v534
    %v668 = vpack.c.b16 %v537, %v536
    %v669 = vpack.c.b16 %v539, %v538
    %v670 = vpack.c.b16 %v541, %v540
    %v671 = vpack.c.b16 %v543, %v542
    %v672 = vpack.c.b16 %v545, %v544
    %v673 = vpack.c.b16 %v547, %v546
    %v674 = vpack.c.b16 %v549, %v548
    %v675 = vpack.c.b16 %v551, %v550
    %v676 = vpack.c.b16 %v553, %v552
    %v677 = vpack.c.b16 %v555, %v554
    %v678 = vpack.c.b16 %v557, %v556
    %v679 = vpack.c.b16 %v559, %v558
    %v680 = vpack.c.b16 %v561, %v560
    %v681 = vpack.c.b16 %v563, %v562
    %v682 = vpack.c.b16 %v565, %v564
    %v683 = vpack.c.b16 %v567, %v566
    %v684 = vpack.c.b16 %v569, %v568
    %v685 = vpack.c.b16 %v571, %v570
    %v686 = vpack.c.b16 %v573, %v572
    %v687 = vpack.c.b16 %v575, %v574
    %v688 = vpack.c.b16 %v577, %v576
    %v689 = vpack.c.b16 %v579, %v578
    %v690 = vpack.c.b16 %v581, %v580
    %v691 = vpack.c.b16 %v583, %v582
    %v692 = vpack.c.b16 %v585, %v584
    %v693 = vpack.c.b16 %v587, %v586
    %v694 = vpack.c.b16 %v589, %v588
    %v695 = vpack.c.b16 %v591, %v590
    %v696 = vpack.c.b16 %v593, %v592
    %v697 = vpack.c.b16 %v595, %v594
    %v698 = vpack.c.b16 %v597, %v596
    %v699 = vpack.c.b16 %v599, %v598
    %v700 = vpack.c.b16 %v601, %v600
    %v701 = vpack.c.b16 %v603, %v602
    %v702 = vpack.c.b16 %v605, %v604
    %v703 = vpack.c.b16 %v607, %v606
    %v708 = vunpack.c.l.b16 %v220
    %v709 = vunpack.c.l.b16 %v221
    %v710 = vunpack.c.l.b16 %v222
    %v711 = vunpack.c.l.b16 %v223
    %v712 = vpack.c.b16 %v709, %v708
    %v713 = vpack.c.b16 %v711, %v710
    %vm715 = vcmask 203776
    %v717 = vsel %vm715, %v608, 0
    %v720 = vsel %vm715, %v609, 0
    %v723 = vsel %vm715, %v610, 0
    %v726 = vsel %vm715, %v611, 0
    %v729 = vsel %vm715, %v612, 0
    %v732 = vsel %vm715, %v613, 0
    %v735 = vsel %vm715, %v614, 0
    %v738 = vsel %vm715, %v615, 0
    %v741 = vsel %vm715, %v616, 0
    %v744 = vsel %vm715, %v617, 0
    %v747 = vsel %vm715, %v618, 0
    %v750 = vsel %vm715, %v619, 0
    %v753 = vsel %vm715, %v620, 0
    %v756 = vsel %vm715, %v621, 0
    %v759 = vsel %vm715, %v622, 0
    %v762 = vsel %vm715, %v623, 0
    %v765 = vsel %vm715, %v624, 0
    %v768 = vsel %vm715, %v625, 0
    %v771 = vsel %vm715, %v626, 0
    %v774 = vsel %vm715, %v627, 0
    %v777 = vsel %vm715, %v628, 0
    %v780 = vsel %vm715, %v629, 0
    %v783 = vsel %vm715, %v630, 0
    %v786 = vsel %vm715, %v631, 0
    %v789 = vsel %vm715, %v632, 0
    %v792 = vsel %vm715, %v633, 0
    %v795 = vsel %vm715, %v634, 0
    %v798 = vsel %vm715, %v635, 0
    %v801 = vsel %vm715, %v636, 0
    %v804 = vsel %vm715, %v637, 0
    %v807 = vsel %vm715, %v638, 0
    %v810 = vsel %vm715, %v639, 0
    %v813 = vsel %vm715, %v640, 0
    %v816 = vsel %vm715, %v641, 0
    %v819 = vsel %vm715, %v642, 0
    %v822 = vsel %vm715, %v643, 0
    %v825 = vsel %vm715, %v644, 0
    %v828 = vsel %vm715, %v645, 0
    %v831 = vsel %vm715, %v646, 0
    %v834 = vsel %vm715, %v647, 0
    %v837 = vsel %vm715, %v648, 0
    %v840 = vsel %vm715, %v649, 0
    %v843 = vsel %vm715, %v650, 0
    %v846 = vsel %vm715, %v651, 0
    %v849 = vsel %vm715, %v652, 0
    %v852 = vsel %vm715, %v653, 0
    %v855 = vsel %vm715, %v654, 0
    %v858 = vsel %vm715, %v655, 0
    %v861 = vsel %vm715, %v656, 0
    %v864 = vsel %vm715, %v657, 0
    %v867 = vsel %vm715, %v658, 0
    %v870 = vsel %vm715, %v659, 0
    %v873 = vsel %vm715, %v660, 0
    %v876 = vsel %vm715, %v661, 0
    %v879 = vsel %vm715, %v662, 0
    %v882 = vsel %vm715, %v663, 0
    %v885 = vsel %vm715, %v664, 0
    %v888 = vsel %vm715, %v665, 0
    %v891 = vsel %vm715, %v666, 0
    %v894 = vsel %vm715, %v667, 0
    %v897 = vsel %vm715, %v668, 0
    %v900 = vsel %vm715, %v669, 0
    %v903 = vsel %vm715, %v670, 0
    %v906 = vsel %vm715, %v671, 0
    %v909 = vsel %vm715, %v672, 0
    %v912 = vsel %vm715, %v673, 0
    %v915 = vsel %vm715, %v674, 0
    %v918 = vsel %vm715, %v675, 0
    %v921 = vsel %vm715, %v676, 0
    %v924 = vsel %vm715, %v677, 0
    %v927 = vsel %vm715, %v678, 0
    %v930 = vsel %vm715, %v679, 0
    %v933 = vsel %vm715, %v680, 0
    %v936 = vsel %vm715, %v681, 0
    %v939 = vsel %vm715, %v682, 0
    %v942 = vsel %vm715, %v683, 0
    %v945 = vsel %vm715, %v684, 0
    %v948 = vsel %vm715, %v685, 0
    %v951 = vsel %vm715, %v686, 0
    %v954 = vsel %vm715, %v687, 0
    %v957 = vsel %vm715, %v688, 0
    %v960 = vsel %vm715, %v689, 0
    %v963 = vsel %vm715, %v690, 0
    %v966 = vsel %vm715, %v691, 0
    %v969 = vsel %vm715, %v692, 0
    %v972 = vsel %vm715, %v693, 0
    %v975 = vsel %vm715, %v694, 0
    %v978 = vsel %vm715, %v695, 0
    %v981 = vsel %vm715, %v696, 0
    %v984 = vsel %vm715, %v697, 0
    %v987 = vsel %vm715, %v698, 0
    %v990 = vsel %vm715, %v699, 0
    %v993 = vsel %vm715, %v700, 0
    %v996 = vsel %vm715, %v701, 0
    %v999 = vsel %vm715, %v702, 0
    %v1002 = vsel %vm715, %v703, 0
    %vm1004 = vcmask 1043456
    %vm1005 = vcmask 1044480
    %v1006 = vsel %vm1004, 4294967295, 65535
    %v1007 = vsel %vm1005, %v1006, 0
    %v1009 = vand.u32 %v713, %v1007
    %1011 = vmatprep.subr.bf16.mxu0 0
    %1012 = vmatpush1.bf16.msra.mxu0 %v712
    %1013 = vmatprep.subr.bf16.mxu0 0
    %1014 = vmatpush1.bf16.msra.mxu0 %v1009
    %1015 = vmatprep.subr.bf16.mxu0 0
    %1016 = vmatpush1.bf16.msra.mxu0 0
    %1017 = vmatprep.subr.bf16.mxu0 0
    %1018 = vmatpush1.bf16.msra.mxu0 0
    %1019 = vmatprep.subr.bf16.mxu0 0
    %1020 = vmatpush1.bf16.msra.mxu0 0
    %1021 = vmatprep.subr.bf16.mxu0 0
    %1022 = vmatpush1.bf16.msra.mxu0 0
    %1023 = vmatprep.subr.bf16.mxu0 0
    %1024 = vmatpush1.bf16.msra.mxu0 0
    %1025 = vmatprep.subr.bf16.mxu0 0
    %1026 = vmatpush1.bf16.msra.mxu0 0
    %1027 = vmatprep.subr.bf16.mxu0 0
    %1028 = vmatpush1.bf16.msra.mxu0 0
    %1029 = vmatprep.subr.bf16.mxu0 0
    %1030 = vmatpush1.bf16.msra.mxu0 0
    %1031 = vmatprep.subr.bf16.mxu0 0
    %1032 = vmatpush1.bf16.msra.mxu0 0
    %1033 = vmatprep.subr.bf16.mxu0 0
    %1034 = vmatpush1.bf16.msra.mxu0 0
    %1035 = vmatprep.subr.bf16.mxu0 0
    %1036 = vmatpush1.bf16.msra.mxu0 0
    %1037 = vmatprep.subr.bf16.mxu0 0
    %1038 = vmatpush1.bf16.msra.mxu0 0
    %1039 = vmatprep.subr.bf16.mxu0 0
    %1040 = vmatpush1.bf16.msra.mxu0 0
    %1041 = vmatprep.subr.bf16.mxu0 0
    %1042 = vmatpush1.bf16.msra.mxu0 0
    %1043 = vmatprep.mubr.bf16.mxu0 0
    %1044 = vmatmul.mubr.bf16.gmra.mrb[0].mxu0 %v717
    %v1045 = vpop.f32.mrb[0].mxu0
    %v1046 = vadd.f32 0.0, %v1045
    %v1047 = vpop.f32.mrb[0].mxu0
    %v1048 = vpop.f32.mrb[0].mxu0
    %v1049 = vadd.f32 0.0, %v1048
    %v1050 = vpop.f32.mrb[0].mxu0
    %1051 = vmatprep.mubr.bf16.mxu0 0
    %1052 = vmatmul.mubr.bf16.gmra.mrb[0].mxu0 %v720
    %v1053 = vpop.f32.mrb[0].mxu0
    %v1054 = vadd.f32 0.0, %v1053
    %v1055 = vpop.f32.mrb[0].mxu0
    %v1056 = vpop.f32.mrb[0].mxu0
    %v1057 = vadd.f32 0.0, %v1056
    %v1058 = vpop.f32.mrb[0].mxu0
    %1059 = vmatprep.mubr.bf16.mxu0 0
    %1060 = vmatmul.mubr.bf16.gmra.mrb[0].mxu0 %v723
    %v1061 = vpop.f32.mrb[0].mxu0
    %v1062 = vadd.f32 0.0, %v1061
    %v1063 = vpop.f32.mrb[0].mxu0
    %v1064 = vpop.f32.mrb[0].mxu0
    %v1065 = vadd.f32 0.0, %v1064
    %v1066 = vpop.f32.mrb[0].mxu0
    %1067 = vmatprep.mubr.bf16.mxu0 0
    %1068 = vmatmul.mubr.bf16.gmra.mrb[0].mxu0 %v726
    %v1069 = vpop.f32.mrb[0].mxu0
    %v1070 = vadd.f32 0.0, %v1069
    %v1071 = vpop.f32.mrb[0].mxu0
    %v1072 = vpop.f32.mrb[0].mxu0
    %v1073 = vadd.f32 0.0, %v1072
    %v1074 = vpop.f32.mrb[0].mxu0
    %1075 = vmatprep.mubr.bf16.mxu0 0
    %1076 = vmatmul.mubr.bf16.gmra.mrb[0].mxu0 %v729
    %v1077 = vpop.f32.mrb[0].mxu0
    %v1078 = vadd.f32 0.0, %v1077
    %v1079 = vpop.f32.mrb[0].mxu0
    %v1080 = vpop.f32.mrb[0].mxu0
    %v1081 = vadd.f32 0.0, %v1080
    %v1082 = vpop.f32.mrb[0].mxu0
    %1083 = vmatprep.mubr.bf16.mxu0 0
    %1084 = vmatmul.mubr.bf16.gmra.mrb[0].mxu0 %v732
    %v1085 = vpop.f32.mrb[0].mxu0
    %v1086 = vadd.f32 0.0, %v1085
    %v1087 = vpop.f32.mrb[0].mxu0
    %v1088 = vpop.f32.mrb[0].mxu0
    %v1089 = vadd.f32 0.0, %v1088
    %v1090 = vpop.f32.mrb[0].mxu0
    %1091 = vmatprep.mubr.bf16.mxu0 0
    %1092 = vmatmul.mubr.bf16.gmra.mrb[0].mxu0 %v735
    %v1093 = vpop.f32.mrb[0].mxu0
    %v1094 = vadd.f32 0.0, %v1093
    %v1095 = vpop.f32.mrb[0].mxu0
    %v1096 = vpop.f32.mrb[0].mxu0
    %v1097 = vadd.f32 0.0, %v1096
    %v1098 = vpop.f32.mrb[0].mxu0
    %1099 = vmatprep.mubr.bf16.mxu0 0
    %1100 = vmatmul.mubr.bf16.gmra.mrb[0].mxu0 %v738
    %v1101 = vpop.f32.mrb[0].mxu0
    %v1102 = vadd.f32 0.0, %v1101
    %v1103 = vpop.f32.mrb[0].mxu0
    %v1104 = vpop.f32.mrb[0].mxu0
    %v1105 = vadd.f32 0.0, %v1104
    %v1106 = vpop.f32.mrb[0].mxu0
    %1107 = vmatprep.mubr.bf16.mxu0 0
    %1108 = vmatmul.mubr.bf16.gmra.mrb[0].mxu0 %v741
    %v1109 = vpop.f32.mrb[0].mxu0
    %v1110 = vadd.f32 0.0, %v1109
    %v1111 = vpop.f32.mrb[0].mxu0
    %v1112 = vpop.f32.mrb[0].mxu0
    %v1113 = vadd.f32 0.0, %v1112
    %v1114 = vpop.f32.mrb[0].mxu0
    %1115 = vmatprep.mubr.bf16.mxu0 0
    %1116 = vmatmul.mubr.bf16.gmra.mrb[0].mxu0 %v744
    %v1117 = vpop.f32.mrb[0].mxu0
    %v1118 = vadd.f32 0.0, %v1117
    %v1119 = vpop.f32.mrb[0].mxu0
    %v1120 = vpop.f32.mrb[0].mxu0
    %v1121 = vadd.f32 0.0, %v1120
    %v1122 = vpop.f32.mrb[0].mxu0
    %1123 = vmatprep.mubr.bf16.mxu0 0
    %1124 = vmatmul.mubr.bf16.gmra.mrb[0].mxu0 %v747
    %v1125 = vpop.f32.mrb[0].mxu0
    %v1126 = vadd.f32 0.0, %v1125
    %v1127 = vpop.f32.mrb[0].mxu0
    %v1128 = vpop.f32.mrb[0].mxu0
    %v1129 = vadd.f32 0.0, %v1128
    %v1130 = vpop.f32.mrb[0].mxu0
    %1131 = vmatprep.mubr.bf16.mxu0 0
    %1132 = vmatmul.mubr.bf16.gmra.mrb[0].mxu0 %v750
    %v1133 = vpop.f32.mrb[0].mxu0
    %v1134 = vadd.f32 0.0, %v1133
    %v1135 = vpop.f32.mrb[0].mxu0
    %v1136 = vpop.f32.mrb[0].mxu0
    %v1137 = vadd.f32 0.0, %v1136
    %v1138 = vpop.f32.mrb[0].mxu0
    %1139 = vmatprep.mubr.bf16.mxu0 0
    %1140 = vmatmul.mubr.bf16.gmra.mrb[0].mxu0 %v753
    %v1141 = vpop.f32.mrb[0].mxu0
    %v1142 = vadd.f32 0.0, %v1141
    %v1143 = vpop.f32.mrb[0].mxu0
    %v1144 = vpop.f32.mrb[0].mxu0
    %v1145 = vadd.f32 0.0, %v1144
    %v1146 = vpop.f32.mrb[0].mxu0
    %1147 = vmatprep.mubr.bf16.mxu0 0
    %1148 = vmatmul.mubr.bf16.gmra.mrb[0].mxu0 %v756
    %v1149 = vpop.f32.mrb[0].mxu0
    %v1150 = vadd.f32 0.0, %v1149
    %v1151 = vpop.f32.mrb[0].mxu0
    %v1152 = vpop.f32.mrb[0].mxu0
    %v1153 = vadd.f32 0.0, %v1152
    %v1154 = vpop.f32.mrb[0].mxu0
    %1155 = vmatprep.mubr.bf16.mxu0 0
    %1156 = vmatmul.mubr.bf16.gmra.mrb[0].mxu0 %v759
    %v1157 = vpop.f32.mrb[0].mxu0
    %v1158 = vadd.f32 0.0, %v1157
    %v1159 = vpop.f32.mrb[0].mxu0
    %v1160 = vpop.f32.mrb[0].mxu0
    %v1161 = vadd.f32 0.0, %v1160
    %v1162 = vpop.f32.mrb[0].mxu0
    %1163 = vmatprep.mubr.bf16.mxu0 0
    %1164 = vmatmul.mubr.bf16.gmra.mrb[0].mxu0 %v762
    %v1165 = vpop.f32.mrb[0].mxu0
    %v1166 = vadd.f32 0.0, %v1165
    %v1167 = vpop.f32.mrb[0].mxu0
    %v1168 = vpop.f32.mrb[0].mxu0
    %v1169 = vadd.f32 0.0, %v1168
    %v1170 = vpop.f32.mrb[0].mxu0
    %1171 = vmatprep.mubr.bf16.mxu0 0
    %1172 = vmatmul.mubr.bf16.gmra.mrb[0].mxu0 %v765
    %v1173 = vpop.f32.mrb[0].mxu0
    %v1174 = vadd.f32 0.0, %v1173
    %v1175 = vpop.f32.mrb[0].mxu0
    %v1176 = vpop.f32.mrb[0].mxu0
    %v1177 = vadd.f32 0.0, %v1176
    %v1178 = vpop.f32.mrb[0].mxu0
    %1179 = vmatprep.mubr.bf16.mxu0 0
    %1180 = vmatmul.mubr.bf16.gmra.mrb[0].mxu0 %v768
    %v1181 = vpop.f32.mrb[0].mxu0
    %v1182 = vadd.f32 0.0, %v1181
    %v1183 = vpop.f32.mrb[0].mxu0
    %v1184 = vpop.f32.mrb[0].mxu0
    %v1185 = vadd.f32 0.0, %v1184
    %v1186 = vpop.f32.mrb[0].mxu0
    %1187 = vmatprep.mubr.bf16.mxu0 0
    %1188 = vmatmul.mubr.bf16.gmra.mrb[0].mxu0 %v771
    %v1189 = vpop.f32.mrb[0].mxu0
    %v1190 = vadd.f32 0.0, %v1189
    %v1191 = vpop.f32.mrb[0].mxu0
    %v1192 = vpop.f32.mrb[0].mxu0
    %v1193 = vadd.f32 0.0, %v1192
    %v1194 = vpop.f32.mrb[0].mxu0
    %1195 = vmatprep.mubr.bf16.mxu0 0
    %1196 = vmatmul.mubr.bf16.gmra.mrb[0].mxu0 %v774
    %v1197 = vpop.f32.mrb[0].mxu0
    %v1198 = vadd.f32 0.0, %v1197
    %v1199 = vpop.f32.mrb[0].mxu0
    %v1200 = vpop.f32.mrb[0].mxu0
    %v1201 = vadd.f32 0.0, %v1200
    %v1202 = vpop.f32.mrb[0].mxu0
    %1203 = vmatprep.mubr.bf16.mxu0 0
    %1204 = vmatmul.mubr.bf16.gmra.mrb[0].mxu0 %v777
    %v1205 = vpop.f32.mrb[0].mxu0
    %v1206 = vadd.f32 0.0, %v1205
    %v1207 = vpop.f32.mrb[0].mxu0
    %v1208 = vpop.f32.mrb[0].mxu0
    %v1209 = vadd.f32 0.0, %v1208
    %v1210 = vpop.f32.mrb[0].mxu0
    %1211 = vmatprep.mubr.bf16.mxu0 0
    %1212 = vmatmul.mubr.bf16.gmra.mrb[0].mxu0 %v780
    %v1213 = vpop.f32.mrb[0].mxu0
    %v1214 = vadd.f32 0.0, %v1213
    %v1215 = vpop.f32.mrb[0].mxu0
    %v1216 = vpop.f32.mrb[0].mxu0
    %v1217 = vadd.f32 0.0, %v1216
    %v1218 = vpop.f32.mrb[0].mxu0
    %1219 = vmatprep.mubr.bf16.mxu0 0
    %1220 = vmatmul.mubr.bf16.gmra.mrb[0].mxu0 %v783
    %v1221 = vpop.f32.mrb[0].mxu0
    %v1222 = vadd.f32 0.0, %v1221
    %v1223 = vpop.f32.mrb[0].mxu0
    %v1224 = vpop.f32.mrb[0].mxu0
    %v1225 = vadd.f32 0.0, %v1224
    %v1226 = vpop.f32.mrb[0].mxu0
    %1227 = vmatprep.mubr.bf16.mxu0 0
    %1228 = vmatmul.mubr.bf16.gmra.mrb[0].mxu0 %v786
    %v1229 = vpop.f32.mrb[0].mxu0
    %v1230 = vadd.f32 0.0, %v1229
    %v1231 = vpop.f32.mrb[0].mxu0
    %v1232 = vpop.f32.mrb[0].mxu0
    %v1233 = vadd.f32 0.0, %v1232
    %v1234 = vpop.f32.mrb[0].mxu0
    %1235 = vmatprep.mubr.bf16.mxu0 0
    %1236 = vmatmul.mubr.bf16.gmra.mrb[0].mxu0 %v789
    %v1237 = vpop.f32.mrb[0].mxu0
    %v1238 = vadd.f32 0.0, %v1237
    %v1239 = vpop.f32.mrb[0].mxu0
    %v1240 = vpop.f32.mrb[0].mxu0
    %v1241 = vadd.f32 0.0, %v1240
    %v1242 = vpop.f32.mrb[0].mxu0
    %1243 = vmatprep.mubr.bf16.mxu0 0
    %1244 = vmatmul.mubr.bf16.gmra.mrb[0].mxu0 %v792
    %v1245 = vpop.f32.mrb[0].mxu0
    %v1246 = vadd.f32 0.0, %v1245
    %v1247 = vpop.f32.mrb[0].mxu0
    %v1248 = vpop.f32.mrb[0].mxu0
    %v1249 = vadd.f32 0.0, %v1248
    %v1250 = vpop.f32.mrb[0].mxu0
    %1251 = vmatprep.mubr.bf16.mxu0 0
    %1252 = vmatmul.mubr.bf16.gmra.mrb[0].mxu0 %v795
    %v1253 = vpop.f32.mrb[0].mxu0
    %v1254 = vadd.f32 0.0, %v1253
    %v1255 = vpop.f32.mrb[0].mxu0
    %v1256 = vpop.f32.mrb[0].mxu0
    %v1257 = vadd.f32 0.0, %v1256
    %v1258 = vpop.f32.mrb[0].mxu0
    %1259 = vmatprep.mubr.bf16.mxu0 0
    %1260 = vmatmul.mubr.bf16.gmra.mrb[0].mxu0 %v798
    %v1261 = vpop.f32.mrb[0].mxu0
    %v1262 = vadd.f32 0.0, %v1261
    %v1263 = vpop.f32.mrb[0].mxu0
    %v1264 = vpop.f32.mrb[0].mxu0
    %v1265 = vadd.f32 0.0, %v1264
    %v1266 = vpop.f32.mrb[0].mxu0
    %1267 = vmatprep.mubr.bf16.mxu0 0
    %1268 = vmatmul.mubr.bf16.gmra.mrb[0].mxu0 %v801
    %v1269 = vpop.f32.mrb[0].mxu0
    %v1270 = vadd.f32 0.0, %v1269
    %v1271 = vpop.f32.mrb[0].mxu0
    %v1272 = vpop.f32.mrb[0].mxu0
    %v1273 = vadd.f32 0.0, %v1272
    %v1274 = vpop.f32.mrb[0].mxu0
    %1275 = vmatprep.mubr.bf16.mxu0 0
    %1276 = vmatmul.mubr.bf16.gmra.mrb[0].mxu0 %v804
    %v1277 = vpop.f32.mrb[0].mxu0
    %v1278 = vadd.f32 0.0, %v1277
    %v1279 = vpop.f32.mrb[0].mxu0
    %v1280 = vpop.f32.mrb[0].mxu0
    %v1281 = vadd.f32 0.0, %v1280
    %v1282 = vpop.f32.mrb[0].mxu0
    %1283 = vmatprep.mubr.bf16.mxu0 0
    %1284 = vmatmul.mubr.bf16.gmra.mrb[0].mxu0 %v807
    %v1285 = vpop.f32.mrb[0].mxu0
    %v1286 = vadd.f32 0.0, %v1285
    %v1287 = vpop.f32.mrb[0].mxu0
    %v1288 = vpop.f32.mrb[0].mxu0
    %v1289 = vadd.f32 0.0, %v1288
    %v1290 = vpop.f32.mrb[0].mxu0
    %1291 = vmatprep.mubr.bf16.mxu0 0
    %1292 = vmatmul.mubr.bf16.gmra.mrb[0].mxu0 %v810
    %v1293 = vpop.f32.mrb[0].mxu0
    %v1294 = vadd.f32 0.0, %v1293
    %v1295 = vpop.f32.mrb[0].mxu0
    %v1296 = vpop.f32.mrb[0].mxu0
    %v1297 = vadd.f32 0.0, %v1296
    %v1298 = vpop.f32.mrb[0].mxu0
    %1299 = vmatprep.mubr.bf16.mxu0 0
    %1300 = vmatmul.mubr.bf16.gmra.mrb[0].mxu0 %v813
    %v1301 = vpop.f32.mrb[0].mxu0
    %v1302 = vadd.f32 0.0, %v1301
    %v1303 = vpop.f32.mrb[0].mxu0
    %v1304 = vpop.f32.mrb[0].mxu0
    %v1305 = vadd.f32 0.0, %v1304
    %v1306 = vpop.f32.mrb[0].mxu0
    %1307 = vmatprep.mubr.bf16.mxu0 0
    %1308 = vmatmul.mubr.bf16.gmra.mrb[0].mxu0 %v816
    %v1309 = vpop.f32.mrb[0].mxu0
    %v1310 = vadd.f32 0.0, %v1309
    %v1311 = vpop.f32.mrb[0].mxu0
    %v1312 = vpop.f32.mrb[0].mxu0
    %v1313 = vadd.f32 0.0, %v1312
    %v1314 = vpop.f32.mrb[0].mxu0
    %1315 = vmatprep.mubr.bf16.mxu0 0
    %1316 = vmatmul.mubr.bf16.gmra.mrb[0].mxu0 %v819
    %v1317 = vpop.f32.mrb[0].mxu0
    %v1318 = vadd.f32 0.0, %v1317
    %v1319 = vpop.f32.mrb[0].mxu0
    %v1320 = vpop.f32.mrb[0].mxu0
    %v1321 = vadd.f32 0.0, %v1320
    %v1322 = vpop.f32.mrb[0].mxu0
    %1323 = vmatprep.mubr.bf16.mxu0 0
    %1324 = vmatmul.mubr.bf16.gmra.mrb[0].mxu0 %v822
    %v1325 = vpop.f32.mrb[0].mxu0
    %v1326 = vadd.f32 0.0, %v1325
    %v1327 = vpop.f32.mrb[0].mxu0
    %v1328 = vpop.f32.mrb[0].mxu0
    %v1329 = vadd.f32 0.0, %v1328
    %v1330 = vpop.f32.mrb[0].mxu0
    %1331 = vmatprep.mubr.bf16.mxu0 0
    %1332 = vmatmul.mubr.bf16.gmra.mrb[0].mxu0 %v825
    %v1333 = vpop.f32.mrb[0].mxu0
    %v1334 = vadd.f32 0.0, %v1333
    %v1335 = vpop.f32.mrb[0].mxu0
    %v1336 = vpop.f32.mrb[0].mxu0
    %v1337 = vadd.f32 0.0, %v1336
    %v1338 = vpop.f32.mrb[0].mxu0
    %1339 = vmatprep.mubr.bf16.mxu0 0
    %1340 = vmatmul.mubr.bf16.gmra.mrb[0].mxu0 %v828
    %v1341 = vpop.f32.mrb[0].mxu0
    %v1342 = vadd.f32 0.0, %v1341
    %v1343 = vpop.f32.mrb[0].mxu0
    %v1344 = vpop.f32.mrb[0].mxu0
    %v1345 = vadd.f32 0.0, %v1344
    %v1346 = vpop.f32.mrb[0].mxu0
    %1347 = vmatprep.mubr.bf16.mxu0 0
    %1348 = vmatmul.mubr.bf16.gmra.mrb[0].mxu0 %v831
    %v1349 = vpop.f32.mrb[0].mxu0
    %v1350 = vadd.f32 0.0, %v1349
    %v1351 = vpop.f32.mrb[0].mxu0
    %v1352 = vpop.f32.mrb[0].mxu0
    %v1353 = vadd.f32 0.0, %v1352
    %v1354 = vpop.f32.mrb[0].mxu0
    %1355 = vmatprep.mubr.bf16.mxu0 0
    %1356 = vmatmul.mubr.bf16.gmra.mrb[0].mxu0 %v834
    %v1357 = vpop.f32.mrb[0].mxu0
    %v1358 = vadd.f32 0.0, %v1357
    %v1359 = vpop.f32.mrb[0].mxu0
    %v1360 = vpop.f32.mrb[0].mxu0
    %v1361 = vadd.f32 0.0, %v1360
    %v1362 = vpop.f32.mrb[0].mxu0
    %1363 = vmatprep.mubr.bf16.mxu0 0
    %1364 = vmatmul.mubr.bf16.gmra.mrb[0].mxu0 %v837
    %v1365 = vpop.f32.mrb[0].mxu0
    %v1366 = vadd.f32 0.0, %v1365
    %v1367 = vpop.f32.mrb[0].mxu0
    %v1368 = vpop.f32.mrb[0].mxu0
    %v1369 = vadd.f32 0.0, %v1368
    %v1370 = vpop.f32.mrb[0].mxu0
    %1371 = vmatprep.mubr.bf16.mxu0 0
    %1372 = vmatmul.mubr.bf16.gmra.mrb[0].mxu0 %v840
    %v1373 = vpop.f32.mrb[0].mxu0
    %v1374 = vadd.f32 0.0, %v1373
    %v1375 = vpop.f32.mrb[0].mxu0
    %v1376 = vpop.f32.mrb[0].mxu0
    %v1377 = vadd.f32 0.0, %v1376
    %v1378 = vpop.f32.mrb[0].mxu0
    %1379 = vmatprep.mubr.bf16.mxu0 0
    %1380 = vmatmul.mubr.bf16.gmra.mrb[0].mxu0 %v843
    %v1381 = vpop.f32.mrb[0].mxu0
    %v1382 = vadd.f32 0.0, %v1381
    %v1383 = vpop.f32.mrb[0].mxu0
    %v1384 = vpop.f32.mrb[0].mxu0
    %v1385 = vadd.f32 0.0, %v1384
    %v1386 = vpop.f32.mrb[0].mxu0
    %1387 = vmatprep.mubr.bf16.mxu0 0
    %1388 = vmatmul.mubr.bf16.gmra.mrb[0].mxu0 %v846
    %v1389 = vpop.f32.mrb[0].mxu0
    %v1390 = vadd.f32 0.0, %v1389
    %v1391 = vpop.f32.mrb[0].mxu0
    %v1392 = vpop.f32.mrb[0].mxu0
    %v1393 = vadd.f32 0.0, %v1392
    %v1394 = vpop.f32.mrb[0].mxu0
    %1395 = vmatprep.mubr.bf16.mxu0 0
    %1396 = vmatmul.mubr.bf16.gmra.mrb[0].mxu0 %v849
    %v1397 = vpop.f32.mrb[0].mxu0
    %v1398 = vadd.f32 0.0, %v1397
    %v1399 = vpop.f32.mrb[0].mxu0
    %v1400 = vpop.f32.mrb[0].mxu0
    %v1401 = vadd.f32 0.0, %v1400
    %v1402 = vpop.f32.mrb[0].mxu0
    %1403 = vmatprep.mubr.bf16.mxu0 0
    %1404 = vmatmul.mubr.bf16.gmra.mrb[0].mxu0 %v852
    %v1405 = vpop.f32.mrb[0].mxu0
    %v1406 = vadd.f32 0.0, %v1405
    %v1407 = vpop.f32.mrb[0].mxu0
    %v1408 = vpop.f32.mrb[0].mxu0
    %v1409 = vadd.f32 0.0, %v1408
    %v1410 = vpop.f32.mrb[0].mxu0
    %1411 = vmatprep.mubr.bf16.mxu0 0
    %1412 = vmatmul.mubr.bf16.gmra.mrb[0].mxu0 %v855
    %v1413 = vpop.f32.mrb[0].mxu0
    %v1414 = vadd.f32 0.0, %v1413
    %v1415 = vpop.f32.mrb[0].mxu0
    %v1416 = vpop.f32.mrb[0].mxu0
    %v1417 = vadd.f32 0.0, %v1416
    %v1418 = vpop.f32.mrb[0].mxu0
    %1419 = vmatprep.mubr.bf16.mxu0 0
    %1420 = vmatmul.mubr.bf16.gmra.mrb[0].mxu0 %v858
    %v1421 = vpop.f32.mrb[0].mxu0
    %v1422 = vadd.f32 0.0, %v1421
    %v1423 = vpop.f32.mrb[0].mxu0
    %v1424 = vpop.f32.mrb[0].mxu0
    %v1425 = vadd.f32 0.0, %v1424
    %v1426 = vpop.f32.mrb[0].mxu0
    %1427 = vmatprep.mubr.bf16.mxu0 0
    %1428 = vmatmul.mubr.bf16.gmra.mrb[0].mxu0 %v861
    %v1429 = vpop.f32.mrb[0].mxu0
    %v1430 = vadd.f32 0.0, %v1429
    %v1431 = vpop.f32.mrb[0].mxu0
    %v1432 = vpop.f32.mrb[0].mxu0
    %v1433 = vadd.f32 0.0, %v1432
    %v1434 = vpop.f32.mrb[0].mxu0
    %1435 = vmatprep.mubr.bf16.mxu0 0
    %1436 = vmatmul.mubr.bf16.gmra.mrb[0].mxu0 %v864
    %v1437 = vpop.f32.mrb[0].mxu0
    %v1438 = vadd.f32 0.0, %v1437
    %v1439 = vpop.f32.mrb[0].mxu0
    %v1440 = vpop.f32.mrb[0].mxu0
    %v1441 = vadd.f32 0.0, %v1440
    %v1442 = vpop.f32.mrb[0].mxu0
    %1443 = vmatprep.mubr.bf16.mxu0 0
    %1444 = vmatmul.mubr.bf16.gmra.mrb[0].mxu0 %v867
    %v1445 = vpop.f32.mrb[0].mxu0
    %v1446 = vadd.f32 0.0, %v1445
    %v1447 = vpop.f32.mrb[0].mxu0
    %v1448 = vpop.f32.mrb[0].mxu0
    %v1449 = vadd.f32 0.0, %v1448
    %v1450 = vpop.f32.mrb[0].mxu0
    %1451 = vmatprep.mubr.bf16.mxu0 0
    %1452 = vmatmul.mubr.bf16.gmra.mrb[0].mxu0 %v870
    %v1453 = vpop.f32.mrb[0].mxu0
    %v1454 = vadd.f32 0.0, %v1453
    %v1455 = vpop.f32.mrb[0].mxu0
    %v1456 = vpop.f32.mrb[0].mxu0
    %v1457 = vadd.f32 0.0, %v1456
    %v1458 = vpop.f32.mrb[0].mxu0
    %1459 = vmatprep.mubr.bf16.mxu0 0
    %1460 = vmatmul.mubr.bf16.gmra.mrb[0].mxu0 %v873
    %v1461 = vpop.f32.mrb[0].mxu0
    %v1462 = vadd.f32 0.0, %v1461
    %v1463 = vpop.f32.mrb[0].mxu0
    %v1464 = vpop.f32.mrb[0].mxu0
    %v1465 = vadd.f32 0.0, %v1464
    %v1466 = vpop.f32.mrb[0].mxu0
    %1467 = vmatprep.mubr.bf16.mxu0 0
    %1468 = vmatmul.mubr.bf16.gmra.mrb[0].mxu0 %v876
    %v1469 = vpop.f32.mrb[0].mxu0
    %v1470 = vadd.f32 0.0, %v1469
    %v1471 = vpop.f32.mrb[0].mxu0
    %v1472 = vpop.f32.mrb[0].mxu0
    %v1473 = vadd.f32 0.0, %v1472
    %v1474 = vpop.f32.mrb[0].mxu0
    %1475 = vmatprep.mubr.bf16.mxu0 0
    %1476 = vmatmul.mubr.bf16.gmra.mrb[0].mxu0 %v879
    %v1477 = vpop.f32.mrb[0].mxu0
    %v1478 = vadd.f32 0.0, %v1477
    %v1479 = vpop.f32.mrb[0].mxu0
    %v1480 = vpop.f32.mrb[0].mxu0
    %v1481 = vadd.f32 0.0, %v1480
    %v1482 = vpop.f32.mrb[0].mxu0
    %1483 = vmatprep.mubr.bf16.mxu0 0
    %1484 = vmatmul.mubr.bf16.gmra.mrb[0].mxu0 %v882
    %v1485 = vpop.f32.mrb[0].mxu0
    %v1486 = vadd.f32 0.0, %v1485
    %v1487 = vpop.f32.mrb[0].mxu0
    %v1488 = vpop.f32.mrb[0].mxu0
    %v1489 = vadd.f32 0.0, %v1488
    %v1490 = vpop.f32.mrb[0].mxu0
    %1491 = vmatprep.mubr.bf16.mxu0 0
    %1492 = vmatmul.mubr.bf16.gmra.mrb[0].mxu0 %v885
    %v1493 = vpop.f32.mrb[0].mxu0
    %v1494 = vadd.f32 0.0, %v1493
    %v1495 = vpop.f32.mrb[0].mxu0
    %v1496 = vpop.f32.mrb[0].mxu0
    %v1497 = vadd.f32 0.0, %v1496
    %v1498 = vpop.f32.mrb[0].mxu0
    %1499 = vmatprep.mubr.bf16.mxu0 0
    %1500 = vmatmul.mubr.bf16.gmra.mrb[0].mxu0 %v888
    %v1501 = vpop.f32.mrb[0].mxu0
    %v1502 = vadd.f32 0.0, %v1501
    %v1503 = vpop.f32.mrb[0].mxu0
    %v1504 = vpop.f32.mrb[0].mxu0
    %v1505 = vadd.f32 0.0, %v1504
    %v1506 = vpop.f32.mrb[0].mxu0
    %1507 = vmatprep.mubr.bf16.mxu0 0
    %1508 = vmatmul.mubr.bf16.gmra.mrb[0].mxu0 %v891
    %v1509 = vpop.f32.mrb[0].mxu0
    %v1510 = vadd.f32 0.0, %v1509
    %v1511 = vpop.f32.mrb[0].mxu0
    %v1512 = vpop.f32.mrb[0].mxu0
    %v1513 = vadd.f32 0.0, %v1512
    %v1514 = vpop.f32.mrb[0].mxu0
    %1515 = vmatprep.mubr.bf16.mxu0 0
    %1516 = vmatmul.mubr.bf16.gmra.mrb[0].mxu0 %v894
    %v1517 = vpop.f32.mrb[0].mxu0
    %v1518 = vadd.f32 0.0, %v1517
    %v1519 = vpop.f32.mrb[0].mxu0
    %v1520 = vpop.f32.mrb[0].mxu0
    %v1521 = vadd.f32 0.0, %v1520
    %v1522 = vpop.f32.mrb[0].mxu0
    %1523 = vmatprep.mubr.bf16.mxu0 0
    %1524 = vmatmul.mubr.bf16.gmra.mrb[0].mxu0 %v897
    %v1525 = vpop.f32.mrb[0].mxu0
    %v1526 = vadd.f32 0.0, %v1525
    %v1527 = vpop.f32.mrb[0].mxu0
    %v1528 = vpop.f32.mrb[0].mxu0
    %v1529 = vadd.f32 0.0, %v1528
    %v1530 = vpop.f32.mrb[0].mxu0
    %1531 = vmatprep.mubr.bf16.mxu0 0
    %1532 = vmatmul.mubr.bf16.gmra.mrb[0].mxu0 %v900
    %v1533 = vpop.f32.mrb[0].mxu0
    %v1534 = vadd.f32 0.0, %v1533
    %v1535 = vpop.f32.mrb[0].mxu0
    %v1536 = vpop.f32.mrb[0].mxu0
    %v1537 = vadd.f32 0.0, %v1536
    %v1538 = vpop.f32.mrb[0].mxu0
    %1539 = vmatprep.mubr.bf16.mxu0 0
    %1540 = vmatmul.mubr.bf16.gmra.mrb[0].mxu0 %v903
    %v1541 = vpop.f32.mrb[0].mxu0
    %v1542 = vadd.f32 0.0, %v1541
    %v1543 = vpop.f32.mrb[0].mxu0
    %v1544 = vpop.f32.mrb[0].mxu0
    %v1545 = vadd.f32 0.0, %v1544
    %v1546 = vpop.f32.mrb[0].mxu0
    %1547 = vmatprep.mubr.bf16.mxu0 0
    %1548 = vmatmul.mubr.bf16.gmra.mrb[0].mxu0 %v906
    %v1549 = vpop.f32.mrb[0].mxu0
    %v1550 = vadd.f32 0.0, %v1549
    %v1551 = vpop.f32.mrb[0].mxu0
    %v1552 = vpop.f32.mrb[0].mxu0
    %v1553 = vadd.f32 0.0, %v1552
    %v1554 = vpop.f32.mrb[0].mxu0
    %1555 = vmatprep.mubr.bf16.mxu0 0
    %1556 = vmatmul.mubr.bf16.gmra.mrb[0].mxu0 %v909
    %v1557 = vpop.f32.mrb[0].mxu0
    %v1558 = vadd.f32 0.0, %v1557
    %v1559 = vpop.f32.mrb[0].mxu0
    %v1560 = vpop.f32.mrb[0].mxu0
    %v1561 = vadd.f32 0.0, %v1560
    %v1562 = vpop.f32.mrb[0].mxu0
    %1563 = vmatprep.mubr.bf16.mxu0 0
    %1564 = vmatmul.mubr.bf16.gmra.mrb[0].mxu0 %v912
    %v1565 = vpop.f32.mrb[0].mxu0
    %v1566 = vadd.f32 0.0, %v1565
    %v1567 = vpop.f32.mrb[0].mxu0
    %v1568 = vpop.f32.mrb[0].mxu0
    %v1569 = vadd.f32 0.0, %v1568
    %v1570 = vpop.f32.mrb[0].mxu0
    %1571 = vmatprep.mubr.bf16.mxu0 0
    %1572 = vmatmul.mubr.bf16.gmra.mrb[0].mxu0 %v915
    %v1573 = vpop.f32.mrb[0].mxu0
    %v1574 = vadd.f32 0.0, %v1573
    %v1575 = vpop.f32.mrb[0].mxu0
    %v1576 = vpop.f32.mrb[0].mxu0
    %v1577 = vadd.f32 0.0, %v1576
    %v1578 = vpop.f32.mrb[0].mxu0
    %1579 = vmatprep.mubr.bf16.mxu0 0
    %1580 = vmatmul.mubr.bf16.gmra.mrb[0].mxu0 %v918
    %v1581 = vpop.f32.mrb[0].mxu0
    %v1582 = vadd.f32 0.0, %v1581
    %v1583 = vpop.f32.mrb[0].mxu0
    %v1584 = vpop.f32.mrb[0].mxu0
    %v1585 = vadd.f32 0.0, %v1584
    %v1586 = vpop.f32.mrb[0].mxu0
    %1587 = vmatprep.mubr.bf16.mxu0 0
    %1588 = vmatmul.mubr.bf16.gmra.mrb[0].mxu0 %v921
    %v1589 = vpop.f32.mrb[0].mxu0
    %v1590 = vadd.f32 0.0, %v1589
    %v1591 = vpop.f32.mrb[0].mxu0
    %v1592 = vpop.f32.mrb[0].mxu0
    %v1593 = vadd.f32 0.0, %v1592
    %v1594 = vpop.f32.mrb[0].mxu0
    %1595 = vmatprep.mubr.bf16.mxu0 0
    %1596 = vmatmul.mubr.bf16.gmra.mrb[0].mxu0 %v924
    %v1597 = vpop.f32.mrb[0].mxu0
    %v1598 = vadd.f32 0.0, %v1597
    %v1599 = vpop.f32.mrb[0].mxu0
    %v1600 = vpop.f32.mrb[0].mxu0
    %v1601 = vadd.f32 0.0, %v1600
    %v1602 = vpop.f32.mrb[0].mxu0
    %1603 = vmatprep.mubr.bf16.mxu0 0
    %1604 = vmatmul.mubr.bf16.gmra.mrb[0].mxu0 %v927
    %v1605 = vpop.f32.mrb[0].mxu0
    %v1606 = vadd.f32 0.0, %v1605
    %v1607 = vpop.f32.mrb[0].mxu0
    %v1608 = vpop.f32.mrb[0].mxu0
    %v1609 = vadd.f32 0.0, %v1608
    %v1610 = vpop.f32.mrb[0].mxu0
    %1611 = vmatprep.mubr.bf16.mxu0 0
    %1612 = vmatmul.mubr.bf16.gmra.mrb[0].mxu0 %v930
    %v1613 = vpop.f32.mrb[0].mxu0
    %v1614 = vadd.f32 0.0, %v1613
    %v1615 = vpop.f32.mrb[0].mxu0
    %v1616 = vpop.f32.mrb[0].mxu0
    %v1617 = vadd.f32 0.0, %v1616
    %v1618 = vpop.f32.mrb[0].mxu0
    %1619 = vmatprep.mubr.bf16.mxu0 0
    %1620 = vmatmul.mubr.bf16.gmra.mrb[0].mxu0 %v933
    %v1621 = vpop.f32.mrb[0].mxu0
    %v1622 = vadd.f32 0.0, %v1621
    %v1623 = vpop.f32.mrb[0].mxu0
    %v1624 = vpop.f32.mrb[0].mxu0
    %v1625 = vadd.f32 0.0, %v1624
    %v1626 = vpop.f32.mrb[0].mxu0
    %1627 = vmatprep.mubr.bf16.mxu0 0
    %1628 = vmatmul.mubr.bf16.gmra.mrb[0].mxu0 %v936
    %v1629 = vpop.f32.mrb[0].mxu0
    %v1630 = vadd.f32 0.0, %v1629
    %v1631 = vpop.f32.mrb[0].mxu0
    %v1632 = vpop.f32.mrb[0].mxu0
    %v1633 = vadd.f32 0.0, %v1632
    %v1634 = vpop.f32.mrb[0].mxu0
    %1635 = vmatprep.mubr.bf16.mxu0 0
    %1636 = vmatmul.mubr.bf16.gmra.mrb[0].mxu0 %v939
    %v1637 = vpop.f32.mrb[0].mxu0
    %v1638 = vadd.f32 0.0, %v1637
    %v1639 = vpop.f32.mrb[0].mxu0
    %v1640 = vpop.f32.mrb[0].mxu0
    %v1641 = vadd.f32 0.0, %v1640
    %v1642 = vpop.f32.mrb[0].mxu0
    %1643 = vmatprep.mubr.bf16.mxu0 0
    %1644 = vmatmul.mubr.bf16.gmra.mrb[0].mxu0 %v942
    %v1645 = vpop.f32.mrb[0].mxu0
    %v1646 = vadd.f32 0.0, %v1645
    %v1647 = vpop.f32.mrb[0].mxu0
    %v1648 = vpop.f32.mrb[0].mxu0
    %v1649 = vadd.f32 0.0, %v1648
    %v1650 = vpop.f32.mrb[0].mxu0
    %1651 = vmatprep.mubr.bf16.mxu0 0
    %1652 = vmatmul.mubr.bf16.gmra.mrb[0].mxu0 %v945
    %v1653 = vpop.f32.mrb[0].mxu0
    %v1654 = vadd.f32 0.0, %v1653
    %v1655 = vpop.f32.mrb[0].mxu0
    %v1656 = vpop.f32.mrb[0].mxu0
    %v1657 = vadd.f32 0.0, %v1656
    %v1658 = vpop.f32.mrb[0].mxu0
    %1659 = vmatprep.mubr.bf16.mxu0 0
    %1660 = vmatmul.mubr.bf16.gmra.mrb[0].mxu0 %v948
    %v1661 = vpop.f32.mrb[0].mxu0
    %v1662 = vadd.f32 0.0, %v1661
    %v1663 = vpop.f32.mrb[0].mxu0
    %v1664 = vpop.f32.mrb[0].mxu0
    %v1665 = vadd.f32 0.0, %v1664
    %v1666 = vpop.f32.mrb[0].mxu0
    %1667 = vmatprep.mubr.bf16.mxu0 0
    %1668 = vmatmul.mubr.bf16.gmra.mrb[0].mxu0 %v951
    %v1669 = vpop.f32.mrb[0].mxu0
    %v1670 = vadd.f32 0.0, %v1669
    %v1671 = vpop.f32.mrb[0].mxu0
    %v1672 = vpop.f32.mrb[0].mxu0
    %v1673 = vadd.f32 0.0, %v1672
    %v1674 = vpop.f32.mrb[0].mxu0
    %1675 = vmatprep.mubr.bf16.mxu0 0
    %1676 = vmatmul.mubr.bf16.gmra.mrb[0].mxu0 %v954
    %v1677 = vpop.f32.mrb[0].mxu0
    %v1678 = vadd.f32 0.0, %v1677
    %v1679 = vpop.f32.mrb[0].mxu0
    %v1680 = vpop.f32.mrb[0].mxu0
    %v1681 = vadd.f32 0.0, %v1680
    %v1682 = vpop.f32.mrb[0].mxu0
    %1683 = vmatprep.mubr.bf16.mxu0 0
    %1684 = vmatmul.mubr.bf16.gmra.mrb[0].mxu0 %v957
    %v1685 = vpop.f32.mrb[0].mxu0
    %v1686 = vadd.f32 0.0, %v1685
    %v1687 = vpop.f32.mrb[0].mxu0
    %v1688 = vpop.f32.mrb[0].mxu0
    %v1689 = vadd.f32 0.0, %v1688
    %v1690 = vpop.f32.mrb[0].mxu0
    %1691 = vmatprep.mubr.bf16.mxu0 0
    %1692 = vmatmul.mubr.bf16.gmra.mrb[0].mxu0 %v960
    %v1693 = vpop.f32.mrb[0].mxu0
    %v1694 = vadd.f32 0.0, %v1693
    %v1695 = vpop.f32.mrb[0].mxu0
    %v1696 = vpop.f32.mrb[0].mxu0
    %v1697 = vadd.f32 0.0, %v1696
    %v1698 = vpop.f32.mrb[0].mxu0
    %1699 = vmatprep.mubr.bf16.mxu0 0
    %1700 = vmatmul.mubr.bf16.gmra.mrb[0].mxu0 %v963
    %v1701 = vpop.f32.mrb[0].mxu0
    %v1702 = vadd.f32 0.0, %v1701
    %v1703 = vpop.f32.mrb[0].mxu0
    %v1704 = vpop.f32.mrb[0].mxu0
    %v1705 = vadd.f32 0.0, %v1704
    %v1706 = vpop.f32.mrb[0].mxu0
    %1707 = vmatprep.mubr.bf16.mxu0 0
    %1708 = vmatmul.mubr.bf16.gmra.mrb[0].mxu0 %v966
    %v1709 = vpop.f32.mrb[0].mxu0
    %v1710 = vadd.f32 0.0, %v1709
    %v1711 = vpop.f32.mrb[0].mxu0
    %v1712 = vpop.f32.mrb[0].mxu0
    %v1713 = vadd.f32 0.0, %v1712
    %v1714 = vpop.f32.mrb[0].mxu0
    %1715 = vmatprep.mubr.bf16.mxu0 0
    %1716 = vmatmul.mubr.bf16.gmra.mrb[0].mxu0 %v969
    %v1717 = vpop.f32.mrb[0].mxu0
    %v1718 = vadd.f32 0.0, %v1717
    %v1719 = vpop.f32.mrb[0].mxu0
    %v1720 = vpop.f32.mrb[0].mxu0
    %v1721 = vadd.f32 0.0, %v1720
    %v1722 = vpop.f32.mrb[0].mxu0
    %1723 = vmatprep.mubr.bf16.mxu0 0
    %1724 = vmatmul.mubr.bf16.gmra.mrb[0].mxu0 %v972
    %v1725 = vpop.f32.mrb[0].mxu0
    %v1726 = vadd.f32 0.0, %v1725
    %v1727 = vpop.f32.mrb[0].mxu0
    %v1728 = vpop.f32.mrb[0].mxu0
    %v1729 = vadd.f32 0.0, %v1728
    %v1730 = vpop.f32.mrb[0].mxu0
    %1731 = vmatprep.mubr.bf16.mxu0 0
    %1732 = vmatmul.mubr.bf16.gmra.mrb[0].mxu0 %v975
    %v1733 = vpop.f32.mrb[0].mxu0
    %v1734 = vadd.f32 0.0, %v1733
    %v1735 = vpop.f32.mrb[0].mxu0
    %v1736 = vpop.f32.mrb[0].mxu0
    %v1737 = vadd.f32 0.0, %v1736
    %v1738 = vpop.f32.mrb[0].mxu0
    %1739 = vmatprep.mubr.bf16.mxu0 0
    %1740 = vmatmul.mubr.bf16.gmra.mrb[0].mxu0 %v978
    %v1741 = vpop.f32.mrb[0].mxu0
    %v1742 = vadd.f32 0.0, %v1741
    %v1743 = vpop.f32.mrb[0].mxu0
    %v1744 = vpop.f32.mrb[0].mxu0
    %v1745 = vadd.f32 0.0, %v1744
    %v1746 = vpop.f32.mrb[0].mxu0
    %1747 = vmatprep.mubr.bf16.mxu0 0
    %1748 = vmatmul.mubr.bf16.gmra.mrb[0].mxu0 %v981
    %v1749 = vpop.f32.mrb[0].mxu0
    %v1750 = vadd.f32 0.0, %v1749
    %v1751 = vpop.f32.mrb[0].mxu0
    %v1752 = vpop.f32.mrb[0].mxu0
    %v1753 = vadd.f32 0.0, %v1752
    %v1754 = vpop.f32.mrb[0].mxu0
    %1755 = vmatprep.mubr.bf16.mxu0 0
    %1756 = vmatmul.mubr.bf16.gmra.mrb[0].mxu0 %v984
    %v1757 = vpop.f32.mrb[0].mxu0
    %v1758 = vadd.f32 0.0, %v1757
    %v1759 = vpop.f32.mrb[0].mxu0
    %v1760 = vpop.f32.mrb[0].mxu0
    %v1761 = vadd.f32 0.0, %v1760
    %v1762 = vpop.f32.mrb[0].mxu0
    %1763 = vmatprep.mubr.bf16.mxu0 0
    %1764 = vmatmul.mubr.bf16.gmra.mrb[0].mxu0 %v987
    %v1765 = vpop.f32.mrb[0].mxu0
    %v1766 = vadd.f32 0.0, %v1765
    %v1767 = vpop.f32.mrb[0].mxu0
    %v1768 = vpop.f32.mrb[0].mxu0
    %v1769 = vadd.f32 0.0, %v1768
    %v1770 = vpop.f32.mrb[0].mxu0
    %1771 = vmatprep.mubr.bf16.mxu0 0
    %1772 = vmatmul.mubr.bf16.gmra.mrb[0].mxu0 %v990
    %v1773 = vpop.f32.mrb[0].mxu0
    %v1774 = vadd.f32 0.0, %v1773
    %v1775 = vpop.f32.mrb[0].mxu0
    %v1776 = vpop.f32.mrb[0].mxu0
    %v1777 = vadd.f32 0.0, %v1776
    %v1778 = vpop.f32.mrb[0].mxu0
    %1779 = vmatprep.mubr.bf16.mxu0 0
    %1780 = vmatmul.mubr.bf16.gmra.mrb[0].mxu0 %v993
    %v1781 = vpop.f32.mrb[0].mxu0
    %v1782 = vadd.f32 0.0, %v1781
    %v1783 = vpop.f32.mrb[0].mxu0
    %v1784 = vpop.f32.mrb[0].mxu0
    %v1785 = vadd.f32 0.0, %v1784
    %v1786 = vpop.f32.mrb[0].mxu0
    %1787 = vmatprep.mubr.bf16.mxu0 0
    %1788 = vmatmul.mubr.bf16.gmra.mrb[0].mxu0 %v996
    %v1789 = vpop.f32.mrb[0].mxu0
    %v1790 = vadd.f32 0.0, %v1789
    %v1791 = vpop.f32.mrb[0].mxu0
    %v1792 = vpop.f32.mrb[0].mxu0
    %v1793 = vadd.f32 0.0, %v1792
    %v1794 = vpop.f32.mrb[0].mxu0
    %1795 = vmatprep.mubr.bf16.mxu0 0
    %1796 = vmatmul.mubr.bf16.gmra.mrb[0].mxu0 %v999
    %v1797 = vpop.f32.mrb[0].mxu0
    %v1798 = vadd.f32 0.0, %v1797
    %v1799 = vpop.f32.mrb[0].mxu0
    %v1800 = vpop.f32.mrb[0].mxu0
    %v1801 = vadd.f32 0.0, %v1800
    %v1802 = vpop.f32.mrb[0].mxu0
    %1803 = vmatprep.mubr.bf16.mxu0 0
    %1804 = vmatmul.mubr.bf16.gmra.mrb[0].mxu0 %v1002
    %v1805 = vpop.f32.mrb[0].mxu0
    %v1806 = vadd.f32 0.0, %v1805
    %v1807 = vpop.f32.mrb[0].mxu0
    %v1808 = vpop.f32.mrb[0].mxu0
    %v1809 = vadd.f32 0.0, %v1808
    %v1810 = vpop.f32.mrb[0].mxu0
    %1811 = vdwg.mxu0
    %v1812 = vmax.f32 %v1046, %v1142
    %v1813 = vmax.f32 %v1049, %v1145
    %v1814 = vmax.f32 %v1054, %v1150
    %v1815 = vmax.f32 %v1057, %v1153
    %v1816 = vmax.f32 %v1062, %v1158
    %v1817 = vmax.f32 %v1065, %v1161
    %v1818 = vmax.f32 %v1070, %v1166
    %v1819 = vmax.f32 %v1073, %v1169
    %v1820 = vmax.f32 %v1078, %v1174
    %v1821 = vmax.f32 %v1081, %v1177
    %v1822 = vmax.f32 %v1086, %v1182
    %v1823 = vmax.f32 %v1089, %v1185
    %v1824 = vmax.f32 %v1094, %v1190
    %v1825 = vmax.f32 %v1097, %v1193
    %v1826 = vmax.f32 %v1102, %v1198
    %v1827 = vmax.f32 %v1105, %v1201
    %v1828 = vmax.f32 %v1110, %v1206
    %v1829 = vmax.f32 %v1113, %v1209
    %v1830 = vmax.f32 %v1118, %v1214
    %v1831 = vmax.f32 %v1121, %v1217
    %v1832 = vmax.f32 %v1126, %v1222
    %v1833 = vmax.f32 %v1129, %v1225
    %v1834 = vmax.f32 %v1134, %v1230
    %v1835 = vmax.f32 %v1137, %v1233
    %v1836 = vmax.f32 %v1430, %v1526
    %v1837 = vmax.f32 %v1433, %v1529
    %v1838 = vmax.f32 %v1438, %v1534
    %v1839 = vmax.f32 %v1441, %v1537
    %v1840 = vmax.f32 %v1446, %v1542
    %v1841 = vmax.f32 %v1449, %v1545
    %v1842 = vmax.f32 %v1454, %v1550
    %v1843 = vmax.f32 %v1457, %v1553
    %v1844 = vmax.f32 %v1462, %v1558
    %v1845 = vmax.f32 %v1465, %v1561
    %v1846 = vmax.f32 %v1470, %v1566
    %v1847 = vmax.f32 %v1473, %v1569
    %v1848 = vmax.f32 %v1478, %v1574
    %v1849 = vmax.f32 %v1481, %v1577
    %v1850 = vmax.f32 %v1486, %v1582
    %v1851 = vmax.f32 %v1489, %v1585
    %v1852 = vmax.f32 %v1494, %v1590
    %v1853 = vmax.f32 %v1497, %v1593
    %v1854 = vmax.f32 %v1502, %v1598
    %v1855 = vmax.f32 %v1505, %v1601
    %v1856 = vmax.f32 %v1510, %v1606
    %v1857 = vmax.f32 %v1513, %v1609
    %v1858 = vmax.f32 %v1518, %v1614
    %v1859 = vmax.f32 %v1521, %v1617
    %v1860 = vmax.f32 %v1238, %v1334
    %v1861 = vmax.f32 %v1241, %v1337
    %v1862 = vmax.f32 %v1246, %v1342
    %v1863 = vmax.f32 %v1249, %v1345
    %v1864 = vmax.f32 %v1254, %v1350
    %v1865 = vmax.f32 %v1257, %v1353
    %v1866 = vmax.f32 %v1262, %v1358
    %v1867 = vmax.f32 %v1265, %v1361
    %v1868 = vmax.f32 %v1270, %v1366
    %v1869 = vmax.f32 %v1273, %v1369
    %v1870 = vmax.f32 %v1278, %v1374
    %v1871 = vmax.f32 %v1281, %v1377
    %v1872 = vmax.f32 %v1286, %v1382
    %v1873 = vmax.f32 %v1289, %v1385
    %v1874 = vmax.f32 %v1294, %v1390
    %v1875 = vmax.f32 %v1297, %v1393
    %v1876 = vmax.f32 %v1302, %v1398
    %v1877 = vmax.f32 %v1305, %v1401
    %v1878 = vmax.f32 %v1310, %v1406
    %v1879 = vmax.f32 %v1313, %v1409
    %v1880 = vmax.f32 %v1318, %v1414
    %v1881 = vmax.f32 %v1321, %v1417
    %v1882 = vmax.f32 %v1326, %v1422
    %v1883 = vmax.f32 %v1329, %v1425
    %v1884 = vmax.f32 %v1622, %v1718
    %v1885 = vmax.f32 %v1625, %v1721
    %v1886 = vmax.f32 %v1630, %v1726
    %v1887 = vmax.f32 %v1633, %v1729
    %v1888 = vmax.f32 %v1638, %v1734
    %v1889 = vmax.f32 %v1641, %v1737
    %v1890 = vmax.f32 %v1646, %v1742
    %v1891 = vmax.f32 %v1649, %v1745
    %v1892 = vmax.f32 %v1654, %v1750
    %v1893 = vmax.f32 %v1657, %v1753
    %v1894 = vmax.f32 %v1662, %v1758
    %v1895 = vmax.f32 %v1665, %v1761
    %v1896 = vmax.f32 %v1670, %v1766
    %v1897 = vmax.f32 %v1673, %v1769
    %v1898 = vmax.f32 %v1678, %v1774
    %v1899 = vmax.f32 %v1681, %v1777
    %v1900 = vmax.f32 %v1686, %v1782
    %v1901 = vmax.f32 %v1689, %v1785
    %v1902 = vmax.f32 %v1694, %v1790
    %v1903 = vmax.f32 %v1697, %v1793
    %v1904 = vmax.f32 %v1702, %v1798
    %v1905 = vmax.f32 %v1705, %v1801
    %v1906 = vmax.f32 %v1710, %v1806
    %v1907 = vmax.f32 %v1713, %v1809
    %v1908 = vmax.f32 %v1812, %v1860
    %v1909 = vmax.f32 %v1813, %v1861
    %v1910 = vmax.f32 %v1814, %v1862
    %v1911 = vmax.f32 %v1815, %v1863
    %v1912 = vmax.f32 %v1816, %v1864
    %v1913 = vmax.f32 %v1817, %v1865
    %v1914 = vmax.f32 %v1818, %v1866
    %v1915 = vmax.f32 %v1819, %v1867
    %v1916 = vmax.f32 %v1820, %v1868
    %v1917 = vmax.f32 %v1821, %v1869
    %v1918 = vmax.f32 %v1822, %v1870
    %v1919 = vmax.f32 %v1823, %v1871
    %v1920 = vmax.f32 %v1824, %v1872
    %v1921 = vmax.f32 %v1825, %v1873
    %v1922 = vmax.f32 %v1826, %v1874
    %v1923 = vmax.f32 %v1827, %v1875
    %v1924 = vmax.f32 %v1828, %v1876
    %v1925 = vmax.f32 %v1829, %v1877
    %v1926 = vmax.f32 %v1830, %v1878
    %v1927 = vmax.f32 %v1831, %v1879
    %v1928 = vmax.f32 %v1832, %v1880
    %v1929 = vmax.f32 %v1833, %v1881
    %v1930 = vmax.f32 %v1834, %v1882
    %v1931 = vmax.f32 %v1835, %v1883
    %v1932 = vmax.f32 %v1836, %v1884
    %v1933 = vmax.f32 %v1837, %v1885
    %v1934 = vmax.f32 %v1838, %v1886
    %v1935 = vmax.f32 %v1839, %v1887
    %v1936 = vmax.f32 %v1840, %v1888
    %v1937 = vmax.f32 %v1841, %v1889
    %v1938 = vmax.f32 %v1842, %v1890
    %v1939 = vmax.f32 %v1843, %v1891
    %v1940 = vmax.f32 %v1844, %v1892
    %v1941 = vmax.f32 %v1845, %v1893
    %v1942 = vmax.f32 %v1846, %v1894
    %v1943 = vmax.f32 %v1847, %v1895
    %v1944 = vmax.f32 %v1848, %v1896
    %v1945 = vmax.f32 %v1849, %v1897
    %v1946 = vmax.f32 %v1850, %v1898
    %v1947 = vmax.f32 %v1851, %v1899
    %v1948 = vmax.f32 %v1852, %v1900
    %v1949 = vmax.f32 %v1853, %v1901
    %v1950 = vmax.f32 %v1854, %v1902
    %v1951 = vmax.f32 %v1855, %v1903
    %v1952 = vmax.f32 %v1856, %v1904
    %v1953 = vmax.f32 %v1857, %v1905
    %v1954 = vmax.f32 %v1858, %v1906
    %v1955 = vmax.f32 %v1859, %v1907
    %v1956 = vld [vmem:[%s2] sm:$0x1]
    %v1958 = vlaneseq
    %v1959 = vshrl.u32 %v1958, 7
    %v1960 = vsub.s32 0, %v1959
    %v1961 = vrot.slane %v1956, %v1960
    %v1963 = vadd.f32 %v1908, %v1961
    %v1964 = vadd.f32 %v1909, %v1961
    %v1965 = vadd.f32 %v1910, %v1961
    %v1966 = vadd.f32 %v1911, %v1961
    %v1967 = vadd.f32 %v1912, %v1961
    %v1968 = vadd.f32 %v1913, %v1961
    %v1969 = vadd.f32 %v1914, %v1961
    %v1970 = vadd.f32 %v1915, %v1961
    %v1971 = vadd.f32 %v1916, %v1961
    %v1972 = vadd.f32 %v1917, %v1961
    %v1973 = vadd.f32 %v1918, %v1961
    %v1974 = vadd.f32 %v1919, %v1961
    %v1975 = vadd.f32 %v1920, %v1961
    %v1976 = vadd.f32 %v1921, %v1961
    %v1977 = vadd.f32 %v1922, %v1961
    %v1978 = vadd.f32 %v1923, %v1961
    %v1979 = vadd.f32 %v1924, %v1961
    %v1980 = vadd.f32 %v1925, %v1961
    %v1981 = vadd.f32 %v1926, %v1961
    %v1982 = vadd.f32 %v1927, %v1961
    %v1983 = vadd.f32 %v1928, %v1961
    %v1984 = vadd.f32 %v1929, %v1961
    %v1985 = vadd.f32 %v1930, %v1961
    %v1986 = vadd.f32 %v1931, %v1961
    %v1987 = vadd.f32 %v1932, %v1961
    %v1988 = vadd.f32 %v1933, %v1961
    %v1989 = vadd.f32 %v1934, %v1961
    %v1990 = vadd.f32 %v1935, %v1961
    %v1991 = vadd.f32 %v1936, %v1961
    %v1992 = vadd.f32 %v1937, %v1961
    %v1993 = vadd.f32 %v1938, %v1961
    %v1994 = vadd.f32 %v1939, %v1961
    %v1995 = vadd.f32 %v1940, %v1961
    %v1996 = vadd.f32 %v1941, %v1961
    %v1997 = vadd.f32 %v1942, %v1961
    %v1998 = vadd.f32 %v1943, %v1961
    %v1999 = vadd.f32 %v1944, %v1961
    %v2000 = vadd.f32 %v1945, %v1961
    %v2001 = vadd.f32 %v1946, %v1961
    %v2002 = vadd.f32 %v1947, %v1961
    %v2003 = vadd.f32 %v1948, %v1961
    %v2004 = vadd.f32 %v1949, %v1961
    %v2005 = vadd.f32 %v1950, %v1961
    %v2006 = vadd.f32 %v1951, %v1961
    %v2007 = vadd.f32 %v1952, %v1961
    %v2008 = vadd.f32 %v1953, %v1961
    %v2009 = vadd.f32 %v1954, %v1961
    %v2010 = vadd.f32 %v1955, %v1961
    %v2011 = vmax.f32 %v1963, 0.0
    %v2012 = vmax.f32 %v1964, 0.0
    %v2013 = vmax.f32 %v1965, 0.0
    %v2014 = vmax.f32 %v1966, 0.0
    %v2015 = vmax.f32 %v1967, 0.0
    %v2016 = vmax.f32 %v1968, 0.0
    %v2017 = vmax.f32 %v1969, 0.0
    %v2018 = vmax.f32 %v1970, 0.0
    %v2019 = vmax.f32 %v1971, 0.0
    %v2020 = vmax.f32 %v1972, 0.0
    %v2021 = vmax.f32 %v1973, 0.0
    %v2022 = vmax.f32 %v1974, 0.0
    %v2023 = vmax.f32 %v1975, 0.0
    %v2024 = vmax.f32 %v1976, 0.0
    %v2025 = vmax.f32 %v1977, 0.0
    %v2026 = vmax.f32 %v1978, 0.0
    %v2027 = vmax.f32 %v1979, 0.0
    %v2028 = vmax.f32 %v1980, 0.0
    %v2029 = vmax.f32 %v1981, 0.0
    %v2030 = vmax.f32 %v1982, 0.0
    %v2031 = vmax.f32 %v1983, 0.0
    %v2032 = vmax.f32 %v1984, 0.0
    %v2033 = vmax.f32 %v1985, 0.0
    %v2034 = vmax.f32 %v1986, 0.0
    %v2035 = vmax.f32 %v1987, 0.0
    %v2036 = vmax.f32 %v1988, 0.0
    %v2037 = vmax.f32 %v1989, 0.0
    %v2038 = vmax.f32 %v1990, 0.0
    %v2039 = vmax.f32 %v1991, 0.0
    %v2040 = vmax.f32 %v1992, 0.0
    %v2041 = vmax.f32 %v1993, 0.0
    %v2042 = vmax.f32 %v1994, 0.0
    %v2043 = vmax.f32 %v1995, 0.0
    %v2044 = vmax.f32 %v1996, 0.0
    %v2045 = vmax.f32 %v1997, 0.0
    %v2046 = vmax.f32 %v1998, 0.0
    %v2047 = vmax.f32 %v1999, 0.0
    %v2048 = vmax.f32 %v2000, 0.0
    %v2049 = vmax.f32 %v2001, 0.0
    %v2050 = vmax.f32 %v2002, 0.0
    %v2051 = vmax.f32 %v2003, 0.0
    %v2052 = vmax.f32 %v2004, 0.0
    %v2053 = vmax.f32 %v2005, 0.0
    %v2054 = vmax.f32 %v2006, 0.0
    %v2055 = vmax.f32 %v2007, 0.0
    %v2056 = vmax.f32 %v2008, 0.0
    %v2057 = vmax.f32 %v2009, 0.0
    %v2058 = vmax.f32 %v2010, 0.0
    %v2059 = vpack.c.bf16 %v2013, %v2011
    %v2060 = vpack.c.bf16 %v2017, %v2015
    %v2061 = vpack.c.bf16 %v2021, %v2019
    %v2062 = vpack.c.bf16 %v2025, %v2023
    %v2063 = vpack.c.bf16 %v2037, %v2035
    %v2064 = vpack.c.bf16 %v2041, %v2039
    %v2065 = vpack.c.bf16 %v2045, %v2043
    %v2066 = vpack.c.bf16 %v2049, %v2047
    %vm2099 = vcmask 1046528
    %v2100 = vrot.slane %v2011, 1
    %v2101 = vrot.slane %v2012, 1
    %v2102 = vsel %vm2099, %v2100, %v2101
    %v2103 = vrot.slane %v2013, 1
    %v2104 = vrot.slane %v2014, 1
    %v2105 = vsel %vm2099, %v2103, %v2104
    %v2106 = vrot.slane %v2015, 1
    %v2107 = vrot.slane %v2016, 1
    %v2108 = vsel %vm2099, %v2106, %v2107
    %v2109 = vrot.slane %v2017, 1
    %v2110 = vrot.slane %v2018, 1
    %v2111 = vsel %vm2099, %v2109, %v2110
    %v2112 = vrot.slane %v2019, 1
    %v2113 = vrot.slane %v2020, 1
    %v2114 = vsel %vm2099, %v2112, %v2113
    %v2115 = vrot.slane %v2021, 1
    %v2116 = vrot.slane %v2022, 1
    %v2117 = vsel %vm2099, %v2115, %v2116
    %v2118 = vrot.slane %v2023, 1
    %v2119 = vrot.slane %v2024, 1
    %v2120 = vsel %vm2099, %v2118, %v2119
    %v2121 = vrot.slane %v2025, 1
    %v2122 = vrot.slane %v2026, 1
    %v2123 = vsel %vm2099, %v2121, %v2122
    %v2124 = vrot.slane %v2035, 1
    %v2125 = vrot.slane %v2036, 1
    %v2126 = vsel %vm2099, %v2124, %v2125
    %v2127 = vrot.slane %v2037, 1
    %v2128 = vrot.slane %v2038, 1
    %v2129 = vsel %vm2099, %v2127, %v2128
    %v2130 = vrot.slane %v2039, 1
    %v2131 = vrot.slane %v2040, 1
    %v2132 = vsel %vm2099, %v2130, %v2131
    %v2133 = vrot.slane %v2041, 1
    %v2134 = vrot.slane %v2042, 1
    %v2135 = vsel %vm2099, %v2133, %v2134
    %v2136 = vrot.slane %v2043, 1
    %v2137 = vrot.slane %v2044, 1
    %v2138 = vsel %vm2099, %v2136, %v2137
    %v2139 = vrot.slane %v2045, 1
    %v2140 = vrot.slane %v2046, 1
    %v2141 = vsel %vm2099, %v2139, %v2140
    %v2142 = vrot.slane %v2047, 1
    %v2143 = vrot.slane %v2048, 1
    %v2144 = vsel %vm2099, %v2142, %v2143
    %v2145 = vrot.slane %v2049, 1
    %v2146 = vrot.slane %v2050, 1
    %v2147 = vsel %vm2099, %v2145, %v2146
    %v2164 = vpack.c.bf16 %v2105, %v2102
    %v2165 = vpack.c.bf16 %v2111, %v2108
    %v2166 = vpack.c.bf16 %v2117, %v2114
    %v2167 = vpack.c.bf16 %v2123, %v2120
    %v2168 = vpack.c.bf16 %v2129, %v2126
    %v2169 = vpack.c.bf16 %v2135, %v2132
    %v2170 = vpack.c.bf16 %v2141, %v2138
    %v2171 = vpack.c.bf16 %v2147, %v2144
    %vm2172 = vcmask 1045504
    %v2173 = vrot.slane %v2011, 2
    %v2174 = vrot.slane %v2012, 2
    %v2175 = vsel %vm2172, %v2173, %v2174
    %v2176 = vrot.slane %v2013, 2
    %v2177 = vrot.slane %v2014, 2
    %v2178 = vsel %vm2172, %v2176, %v2177
    %v2179 = vrot.slane %v2015, 2
    %v2180 = vrot.slane %v2016, 2
    %v2181 = vsel %vm2172, %v2179, %v2180
    %v2182 = vrot.slane %v2017, 2
    %v2183 = vrot.slane %v2018, 2
    %v2184 = vsel %vm2172, %v2182, %v2183
    %v2185 = vrot.slane %v2019, 2
    %v2186 = vrot.slane %v2020, 2
    %v2187 = vsel %vm2172, %v2185, %v2186
    %v2188 = vrot.slane %v2021, 2
    %v2189 = vrot.slane %v2022, 2
    %v2190 = vsel %vm2172, %v2188, %v2189
    %v2191 = vrot.slane %v2023, 2
    %v2192 = vrot.slane %v2024, 2
    %v2193 = vsel %vm2172, %v2191, %v2192
    %v2194 = vrot.slane %v2025, 2
    %v2195 = vrot.slane %v2026, 2
    %v2196 = vsel %vm2172, %v2194, %v2195
    %v2197 = vrot.slane %v2035, 2
    %v2198 = vrot.slane %v2036, 2
    %v2199 = vsel %vm2172, %v2197, %v2198
    %v2200 = vrot.slane %v2037, 2
    %v2201 = vrot.slane %v2038, 2
    %v2202 = vsel %vm2172, %v2200, %v2201
    %v2203 = vrot.slane %v2039, 2
    %v2204 = vrot.slane %v2040, 2
    %v2205 = vsel %vm2172, %v2203, %v2204
    %v2206 = vrot.slane %v2041, 2
    %v2207 = vrot.slane %v2042, 2
    %v2208 = vsel %vm2172, %v2206, %v2207
    %v2209 = vrot.slane %v2043, 2
    %v2210 = vrot.slane %v2044, 2
    %v2211 = vsel %vm2172, %v2209, %v2210
    %v2212 = vrot.slane %v2045, 2
    %v2213 = vrot.slane %v2046, 2
    %v2214 = vsel %vm2172, %v2212, %v2213
    %v2215 = vrot.slane %v2047, 2
    %v2216 = vrot.slane %v2048, 2
    %v2217 = vsel %vm2172, %v2215, %v2216
    %v2218 = vrot.slane %v2049, 2
    %v2219 = vrot.slane %v2050, 2
    %v2220 = vsel %vm2172, %v2218, %v2219
    %v2237 = vpack.c.bf16 %v2178, %v2175
    %v2238 = vpack.c.bf16 %v2184, %v2181
    %v2239 = vpack.c.bf16 %v2190, %v2187
    %v2240 = vpack.c.bf16 %v2196, %v2193
    %v2241 = vpack.c.bf16 %v2202, %v2199
    %v2242 = vpack.c.bf16 %v2208, %v2205
    %v2243 = vpack.c.bf16 %v2214, %v2211
    %v2244 = vpack.c.bf16 %v2220, %v2217
    %v2245 = vrot.slane %v2011, 3
    %v2246 = vrot.slane %v2012, 3
    %v2247 = vsel %vm1005, %v2245, %v2246
    %v2248 = vrot.slane %v2013, 3
    %v2249 = vrot.slane %v2014, 3
    %v2250 = vsel %vm1005, %v2248, %v2249
    %v2251 = vrot.slane %v2015, 3
    %v2252 = vrot.slane %v2016, 3
    %v2253 = vsel %vm1005, %v2251, %v2252
    %v2254 = vrot.slane %v2017, 3
    %v2255 = vrot.slane %v2018, 3
    %v2256 = vsel %vm1005, %v2254, %v2255
    %v2257 = vrot.slane %v2019, 3
    %v2258 = vrot.slane %v2020, 3
    %v2259 = vsel %vm1005, %v2257, %v2258
    %v2260 = vrot.slane %v2021, 3
    %v2261 = vrot.slane %v2022, 3
    %v2262 = vsel %vm1005, %v2260, %v2261
    %v2263 = vrot.slane %v2023, 3
    %v2264 = vrot.slane %v2024, 3
    %v2265 = vsel %vm1005, %v2263, %v2264
    %v2266 = vrot.slane %v2025, 3
    %v2267 = vrot.slane %v2026, 3
    %v2268 = vsel %vm1005, %v2266, %v2267
    %v2269 = vrot.slane %v2035, 3
    %v2270 = vrot.slane %v2036, 3
    %v2271 = vsel %vm1005, %v2269, %v2270
    %v2272 = vrot.slane %v2037, 3
    %v2273 = vrot.slane %v2038, 3
    %v2274 = vsel %vm1005, %v2272, %v2273
    %v2275 = vrot.slane %v2039, 3
    %v2276 = vrot.slane %v2040, 3
    %v2277 = vsel %vm1005, %v2275, %v2276
    %v2278 = vrot.slane %v2041, 3
    %v2279 = vrot.slane %v2042, 3
    %v2280 = vsel %vm1005, %v2278, %v2279
    %v2281 = vrot.slane %v2043, 3
    %v2282 = vrot.slane %v2044, 3
    %v2283 = vsel %vm1005, %v2281, %v2282
    %v2284 = vrot.slane %v2045, 3
    %v2285 = vrot.slane %v2046, 3
    %v2286 = vsel %vm1005, %v2284, %v2285
    %v2287 = vrot.slane %v2047, 3
    %v2288 = vrot.slane %v2048, 3
    %v2289 = vsel %vm1005, %v2287, %v2288
    %v2290 = vrot.slane %v2049, 3
    %v2291 = vrot.slane %v2050, 3
    %v2292 = vsel %vm1005, %v2290, %v2291
    %v2309 = vpack.c.bf16 %v2250, %v2247
    %v2310 = vpack.c.bf16 %v2256, %v2253
    %v2311 = vpack.c.bf16 %v2262, %v2259
    %v2312 = vpack.c.bf16 %v2268, %v2265
    %v2313 = vpack.c.bf16 %v2274, %v2271
    %v2314 = vpack.c.bf16 %v2280, %v2277
    %v2315 = vpack.c.bf16 %v2286, %v2283
    %v2316 = vpack.c.bf16 %v2292, %v2289
    %v2317 = vrot.slane %v2011, 4
    %v2318 = vrot.slane %v2012, 4
    %v2319 = vsel %vm1004, %v2317, %v2318
    %v2320 = vrot.slane %v2013, 4
    %v2321 = vrot.slane %v2014, 4
    %v2322 = vsel %vm1004, %v2320, %v2321
    %v2323 = vrot.slane %v2015, 4
    %v2324 = vrot.slane %v2016, 4
    %v2325 = vsel %vm1004, %v2323, %v2324
    %v2326 = vrot.slane %v2017, 4
    %v2327 = vrot.slane %v2018, 4
    %v2328 = vsel %vm1004, %v2326, %v2327
    %v2329 = vrot.slane %v2019, 4
    %v2330 = vrot.slane %v2020, 4
    %v2331 = vsel %vm1004, %v2329, %v2330
    %v2332 = vrot.slane %v2021, 4
    %v2333 = vrot.slane %v2022, 4
    %v2334 = vsel %vm1004, %v2332, %v2333
    %v2335 = vrot.slane %v2023, 4
    %v2336 = vrot.slane %v2024, 4
    %v2337 = vsel %vm1004, %v2335, %v2336
    %v2338 = vrot.slane %v2025, 4
    %v2339 = vrot.slane %v2026, 4
    %v2340 = vsel %vm1004, %v2338, %v2339
    %v2341 = vrot.slane %v2035, 4
    %v2342 = vrot.slane %v2036, 4
    %v2343 = vsel %vm1004, %v2341, %v2342
    %v2344 = vrot.slane %v2037, 4
    %v2345 = vrot.slane %v2038, 4
    %v2346 = vsel %vm1004, %v2344, %v2345
    %v2347 = vrot.slane %v2039, 4
    %v2348 = vrot.slane %v2040, 4
    %v2349 = vsel %vm1004, %v2347, %v2348
    %v2350 = vrot.slane %v2041, 4
    %v2351 = vrot.slane %v2042, 4
    %v2352 = vsel %vm1004, %v2350, %v2351
    %v2353 = vrot.slane %v2043, 4
    %v2354 = vrot.slane %v2044, 4
    %v2355 = vsel %vm1004, %v2353, %v2354
    %v2356 = vrot.slane %v2045, 4
    %v2357 = vrot.slane %v2046, 4
    %v2358 = vsel %vm1004, %v2356, %v2357
    %v2359 = vrot.slane %v2047, 4
    %v2360 = vrot.slane %v2048, 4
    %v2361 = vsel %vm1004, %v2359, %v2360
    %v2362 = vrot.slane %v2049, 4
    %v2363 = vrot.slane %v2050, 4
    %v2364 = vsel %vm1004, %v2362, %v2363
    %v2381 = vpack.c.bf16 %v2322, %v2319
    %v2382 = vpack.c.bf16 %v2328, %v2325
    %v2383 = vpack.c.bf16 %v2334, %v2331
    %v2384 = vpack.c.bf16 %v2340, %v2337
    %v2385 = vpack.c.bf16 %v2346, %v2343
    %v2386 = vpack.c.bf16 %v2352, %v2349
    %v2387 = vpack.c.bf16 %v2358, %v2355
    %v2388 = vpack.c.bf16 %v2364, %v2361
    %v2389 = vpack.c.bf16 %v2015, %v2013
    %v2390 = vpack.c.bf16 %v2019, %v2017
    %v2391 = vpack.c.bf16 %v2023, %v2021
    %v2392 = vpack.c.bf16 %v2027, %v2025
    %v2393 = vpack.c.bf16 %v2039, %v2037
    %v2394 = vpack.c.bf16 %v2043, %v2041
    %v2395 = vpack.c.bf16 %v2047, %v2045
    %v2396 = vpack.c.bf16 %v2051, %v2049
    %v2401 = vrot.slane %v2027, 1
    %v2402 = vrot.slane %v2028, 1
    %v2403 = vsel %vm2099, %v2401, %v2402
    %v2404 = vrot.slane %v2051, 1
    %v2405 = vrot.slane %v2052, 1
    %v2406 = vsel %vm2099, %v2404, %v2405
    %v2409 = vpack.c.bf16 %v2108, %v2105
    %v2410 = vpack.c.bf16 %v2114, %v2111
    %v2411 = vpack.c.bf16 %v2120, %v2117
    %v2412 = vpack.c.bf16 %v2403, %v2123
    %v2413 = vpack.c.bf16 %v2132, %v2129
    %v2414 = vpack.c.bf16 %v2138, %v2135
    %v2415 = vpack.c.bf16 %v2144, %v2141
    %v2416 = vpack.c.bf16 %v2406, %v2147
    %v2417 = vrot.slane %v2027, 2
    %v2418 = vrot.slane %v2028, 2
    %v2419 = vsel %vm2172, %v2417, %v2418
    %v2420 = vrot.slane %v2051, 2
    %v2421 = vrot.slane %v2052, 2
    %v2422 = vsel %vm2172, %v2420, %v2421
    %v2425 = vpack.c.bf16 %v2181, %v2178
    %v2426 = vpack.c.bf16 %v2187, %v2184
    %v2427 = vpack.c.bf16 %v2193, %v2190
    %v2428 = vpack.c.bf16 %v2419, %v2196
    %v2429 = vpack.c.bf16 %v2205, %v2202
    %v2430 = vpack.c.bf16 %v2211, %v2208
    %v2431 = vpack.c.bf16 %v2217, %v2214
    %v2432 = vpack.c.bf16 %v2422, %v2220
    %v2433 = vrot.slane %v2027, 3
    %v2434 = vrot.slane %v2028, 3
    %v2435 = vsel %vm1005, %v2433, %v2434
    %v2436 = vrot.slane %v2051, 3
    %v2437 = vrot.slane %v2052, 3
    %v2438 = vsel %vm1005, %v2436, %v2437
    %v2441 = vpack.c.bf16 %v2253, %v2250
    %v2442 = vpack.c.bf16 %v2259, %v2256
    %v2443 = vpack.c.bf16 %v2265, %v2262
    %v2444 = vpack.c.bf16 %v2435, %v2268
    %v2445 = vpack.c.bf16 %v2277, %v2274
    %v2446 = vpack.c.bf16 %v2283, %v2280
    %v2447 = vpack.c.bf16 %v2289, %v2286
    %v2448 = vpack.c.bf16 %v2438, %v2292
    %v2449 = vrot.slane %v2027, 4
    %v2450 = vrot.slane %v2028, 4
    %v2451 = vsel %vm1004, %v2449, %v2450
    %v2452 = vrot.slane %v2051, 4
    %v2453 = vrot.slane %v2052, 4
    %v2454 = vsel %vm1004, %v2452, %v2453
    %v2457 = vpack.c.bf16 %v2325, %v2322
    %v2458 = vpack.c.bf16 %v2331, %v2328
    %v2459 = vpack.c.bf16 %v2337, %v2334
    %v2460 = vpack.c.bf16 %v2451, %v2340
    %v2461 = vpack.c.bf16 %v2349, %v2346
    %v2462 = vpack.c.bf16 %v2355, %v2352
    %v2463 = vpack.c.bf16 %v2361, %v2358
    %v2464 = vpack.c.bf16 %v2454, %v2364
    %v2465 = vpack.c.bf16 %v2029, %v2027
    %v2466 = vpack.c.bf16 %v2053, %v2051
    %v2471 = vrot.slane %v2029, 1
    %v2472 = vrot.slane %v2030, 1
    %v2473 = vsel %vm2099, %v2471, %v2472
    %v2474 = vrot.slane %v2053, 1
    %v2475 = vrot.slane %v2054, 1
    %v2476 = vsel %vm2099, %v2474, %v2475
    %v2479 = vpack.c.bf16 %v2473, %v2403
    %v2480 = vpack.c.bf16 %v2476, %v2406
    %v2481 = vrot.slane %v2029, 2
    %v2482 = vrot.slane %v2030, 2
    %v2483 = vsel %vm2172, %v2481, %v2482
    %v2484 = vrot.slane %v2053, 2
    %v2485 = vrot.slane %v2054, 2
    %v2486 = vsel %vm2172, %v2484, %v2485
    %v2489 = vpack.c.bf16 %v2483, %v2419
    %v2490 = vpack.c.bf16 %v2486, %v2422
    %v2491 = vrot.slane %v2029, 3
    %v2492 = vrot.slane %v2030, 3
    %v2493 = vsel %vm1005, %v2491, %v2492
    %v2494 = vrot.slane %v2053, 3
    %v2495 = vrot.slane %v2054, 3
    %v2496 = vsel %vm1005, %v2494, %v2495
    %v2499 = vpack.c.bf16 %v2493, %v2435
    %v2500 = vpack.c.bf16 %v2496, %v2438
    %v2501 = vrot.slane %v2029, 4
    %v2502 = vrot.slane %v2030, 4
    %v2503 = vsel %vm1004, %v2501, %v2502
    %v2504 = vrot.slane %v2053, 4
    %v2505 = vrot.slane %v2054, 4
    %v2506 = vsel %vm1004, %v2504, %v2505
    %v2509 = vpack.c.bf16 %v2503, %v2451
    %v2510 = vpack.c.bf16 %v2506, %v2454
    %v2511 = vpack.c.bf16 %v2031, %v2029
    %v2512 = vpack.c.bf16 %v2055, %v2053
    %v2517 = vrot.slane %v2031, 1
    %v2518 = vrot.slane %v2032, 1
    %v2519 = vsel %vm2099, %v2517, %v2518
    %v2520 = vrot.slane %v2055, 1
    %v2521 = vrot.slane %v2056, 1
    %v2522 = vsel %vm2099, %v2520, %v2521
    %v2525 = vpack.c.bf16 %v2519, %v2473
    %v2526 = vpack.c.bf16 %v2522, %v2476
    %v2527 = vrot.slane %v2031, 2
    %v2528 = vrot.slane %v2032, 2
    %v2529 = vsel %vm2172, %v2527, %v2528
    %v2530 = vrot.slane %v2055, 2
    %v2531 = vrot.slane %v2056, 2
    %v2532 = vsel %vm2172, %v2530, %v2531
    %v2535 = vpack.c.bf16 %v2529, %v2483
    %v2536 = vpack.c.bf16 %v2532, %v2486
    %v2537 = vrot.slane %v2031, 3
    %v2538 = vrot.slane %v2032, 3
    %v2539 = vsel %vm1005, %v2537, %v2538
    %v2540 = vrot.slane %v2055, 3
    %v2541 = vrot.slane %v2056, 3
    %v2542 = vsel %vm1005, %v2540, %v2541
    %v2545 = vpack.c.bf16 %v2539, %v2493
    %v2546 = vpack.c.bf16 %v2542, %v2496
    %v2547 = vrot.slane %v2031, 4
    %v2548 = vrot.slane %v2032, 4
    %v2549 = vsel %vm1004, %v2547, %v2548
    %v2550 = vrot.slane %v2055, 4
    %v2551 = vrot.slane %v2056, 4
    %v2552 = vsel %vm1004, %v2550, %v2551
    %v2555 = vpack.c.bf16 %v2549, %v2503
    %v2556 = vpack.c.bf16 %v2552, %v2506
    %v2557 = vpack.c.bf16 %v2033, %v2031
    %v2558 = vpack.c.bf16 %v2057, %v2055
    %v2563 = vrot.slane %v2033, 1
    %v2564 = vrot.slane %v2034, 1
    %v2565 = vsel %vm2099, %v2563, %v2564
    %v2566 = vrot.slane %v2057, 1
    %v2567 = vrot.slane %v2058, 1
    %v2568 = vsel %vm2099, %v2566, %v2567
    %v2571 = vpack.c.bf16 %v2565, %v2519
    %v2572 = vpack.c.bf16 %v2568, %v2522
    %v2573 = vrot.slane %v2033, 2
    %v2574 = vrot.slane %v2034, 2
    %v2575 = vsel %vm2172, %v2573, %v2574
    %v2576 = vrot.slane %v2057, 2
    %v2577 = vrot.slane %v2058, 2
    %v2578 = vsel %vm2172, %v2576, %v2577
    %v2581 = vpack.c.bf16 %v2575, %v2529
    %v2582 = vpack.c.bf16 %v2578, %v2532
    %v2583 = vrot.slane %v2033, 3
    %v2584 = vrot.slane %v2034, 3
    %v2585 = vsel %vm1005, %v2583, %v2584
    %v2586 = vrot.slane %v2057, 3
    %v2587 = vrot.slane %v2058, 3
    %v2588 = vsel %vm1005, %v2586, %v2587
    %v2591 = vpack.c.bf16 %v2585, %v2539
    %v2592 = vpack.c.bf16 %v2588, %v2542
    %v2593 = vrot.slane %v2033, 4
    %v2594 = vrot.slane %v2034, 4
    %v2595 = vsel %vm1004, %v2593, %v2594
    %v2596 = vrot.slane %v2057, 4
    %v2597 = vrot.slane %v2058, 4
    %v2598 = vsel %vm1004, %v2596, %v2597
    %v2601 = vpack.c.bf16 %v2595, %v2549
    %v2602 = vpack.c.bf16 %v2598, %v2552
    %v2603 = vld [vmem:[%s3] sm:$0xf]
    %v2604 = vld [vmem:[%s3 + $0x4] sm:$0xf]
    %v2605 = vld [vmem:[%s3 + $0x8] sm:$0xf]
    %v2606 = vld [vmem:[%s3 + $0xc] sm:$0xf]
    %v2607 = vld [vmem:[%s3 + $0x10] sm:$0xf]
    %v2608 = vld [vmem:[%s3 + $0x14] sm:$0xf]
    %v2609 = vld [vmem:[%s3 + $0x18] sm:$0xf]
    %v2610 = vld [vmem:[%s3 + $0x1c] sm:$0xf]
    %v2611 = vld [vmem:[%s3 + $0x20] sm:$0xf]
    %v2612 = vld [vmem:[%s3 + $0x24] sm:$0xf]
    %v2613 = vld [vmem:[%s3 + $0x28] sm:$0xf]
    %v2614 = vld [vmem:[%s3 + $0x2c] sm:$0xf]
    %v2615 = vld [vmem:[%s3 + $0x30] sm:$0xf]
    %v2616 = vld [vmem:[%s3 + $0x34] sm:$0xf]
    %v2617 = vld [vmem:[%s3 + $0x38] sm:$0xf]
    %v2618 = vld [vmem:[%s3 + $0x3c] sm:$0xf]
    %v2619 = vld [vmem:[%s3 + $0x40] sm:$0xf]
    %v2620 = vld [vmem:[%s3 + $0x44] sm:$0xf]
    %v2621 = vld [vmem:[%s3 + $0x48] sm:$0xf]
    %v2622 = vld [vmem:[%s3 + $0x4c] sm:$0xf]
    %v2623 = vld [vmem:[%s3 + $0x50] sm:$0xf]
    %v2624 = vld [vmem:[%s3 + $0x54] sm:$0xf]
    %v2625 = vld [vmem:[%s3 + $0x58] sm:$0xf]
    %v2626 = vld [vmem:[%s3 + $0x5c] sm:$0xf]
    %v2627 = vld [vmem:[%s3 + $0x60] sm:$0xf]
    %v2628 = vld [vmem:[%s3 + $0x64] sm:$0xf]
    %v2629 = vld [vmem:[%s3 + $0x68] sm:$0xf]
    %v2630 = vld [vmem:[%s3 + $0x6c] sm:$0xf]
    %v2631 = vld [vmem:[%s3 + $0x70] sm:$0xf]
    %v2632 = vld [vmem:[%s3 + $0x74] sm:$0xf]
    %v2633 = vld [vmem:[%s3 + $0x78] sm:$0xf]
    %v2634 = vld [vmem:[%s3 + $0x7c] sm:$0xf]
    %v2635 = vld [vmem:[%s3 + $0x80] sm:$0xf]
    %v2636 = vld [vmem:[%s3 + $0x84] sm:$0xf]
    %v2637 = vld [vmem:[%s3 + $0x88] sm:$0xf]
    %v2638 = vld [vmem:[%s3 + $0x8c] sm:$0xf]
    %v2639 = vld [vmem:[%s3 + $0x90] sm:$0xf]
    %v2640 = vld [vmem:[%s3 + $0x94] sm:$0xf]
    %v2641 = vld [vmem:[%s3 + $0x98] sm:$0xf]
    %v2642 = vld [vmem:[%s3 + $0x9c] sm:$0xf]
    %v2643 = vld [vmem:[%s3 + $0xa0] sm:$0xf]
    %v2644 = vld [vmem:[%s3 + $0xa4] sm:$0xf]
    %v2645 = vld [vmem:[%s3 + $0xa8] sm:$0xf]
    %v2646 = vld [vmem:[%s3 + $0xac] sm:$0xf]
    %v2647 = vld [vmem:[%s3 + $0xb0] sm:$0xf]
    %v2648 = vld [vmem:[%s3 + $0xb4] sm:$0xf]
    %v2649 = vld [vmem:[%s3 + $0xb8] sm:$0xf]
    %v2650 = vld [vmem:[%s3 + $0xbc] sm:$0xf]
    %v2651 = vld [vmem:[%s3 + $0xc0] sm:$0xf]
    %v2652 = vld [vmem:[%s3 + $0xc4] sm:$0xf]
    %v2653 = vld [vmem:[%s3 + $0xc8] sm:$0xf]
    %v2654 = vld [vmem:[%s3 + $0xcc] sm:$0xf]
    %v2655 = vld [vmem:[%s3 + $0xd0] sm:$0xf]
    %v2656 = vld [vmem:[%s3 + $0xd4] sm:$0xf]
    %v2657 = vld [vmem:[%s3 + $0xd8] sm:$0xf]
    %v2658 = vld [vmem:[%s3 + $0xdc] sm:$0xf]
    %v2659 = vld [vmem:[%s3 + $0xe0] sm:$0xf]
    %v2660 = vld [vmem:[%s3 + $0xe4] sm:$0xf]
    %v2661 = vld [vmem:[%s3 + $0xe8] sm:$0xf]
    %v2662 = vld [vmem:[%s3 + $0xec] sm:$0xf]
    %v2663 = vld [vmem:[%s3 + $0xf0] sm:$0xf]
    %v2664 = vld [vmem:[%s3 + $0xf4] sm:$0xf]
    %v2665 = vld [vmem:[%s3 + $0xf8] sm:$0xf]
    %v2666 = vld [vmem:[%s3 + $0xfc] sm:$0xf]
    %v2667 = vld [vmem:[%s3 + $0x100] sm:$0xf]
    %v2668 = vld [vmem:[%s3 + $0x104] sm:$0xf]
    %v2669 = vld [vmem:[%s3 + $0x108] sm:$0xf]
    %v2670 = vld [vmem:[%s3 + $0x10c] sm:$0xf]
    %v2671 = vld [vmem:[%s3 + $0x110] sm:$0xf]
    %v2672 = vld [vmem:[%s3 + $0x114] sm:$0xf]
    %v2673 = vld [vmem:[%s3 + $0x118] sm:$0xf]
    %v2674 = vld [vmem:[%s3 + $0x11c] sm:$0xf]
    %v2675 = vld [vmem:[%s3 + $0x120] sm:$0xf]
    %v2676 = vld [vmem:[%s3 + $0x124] sm:$0xf]
    %v2677 = vld [vmem:[%s3 + $0x128] sm:$0xf]
    %v2678 = vld [vmem:[%s3 + $0x12c] sm:$0xf]
    %v2679 = vld [vmem:[%s3 + $0x130] sm:$0xf]
    %v2680 = vld [vmem:[%s3 + $0x134] sm:$0xf]
    %v2681 = vld [vmem:[%s3 + $0x138] sm:$0xf]
    %v2682 = vld [vmem:[%s3 + $0x13c] sm:$0xf]
    %v2683 = vld [vmem:[%s3 + $0x140] sm:$0xf]
    %v2684 = vld [vmem:[%s3 + $0x144] sm:$0xf]
    %v2685 = vld [vmem:[%s3 + $0x148] sm:$0xf]
    %v2686 = vld [vmem:[%s3 + $0x14c] sm:$0xf]
    %v2687 = vld [vmem:[%s3 + $0x150] sm:$0xf]
    %v2688 = vld [vmem:[%s3 + $0x154] sm:$0xf]
    %v2689 = vld [vmem:[%s3 + $0x158] sm:$0xf]
    %v2690 = vld [vmem:[%s3 + $0x15c] sm:$0xf]
    %v2691 = vld [vmem:[%s3 + $0x160] sm:$0xf]
    %v2692 = vld [vmem:[%s3 + $0x164] sm:$0xf]
    %v2693 = vld [vmem:[%s3 + $0x168] sm:$0xf]
    %v2694 = vld [vmem:[%s3 + $0x16c] sm:$0xf]
    %v2695 = vld [vmem:[%s3 + $0x170] sm:$0xf]
    %v2696 = vld [vmem:[%s3 + $0x174] sm:$0xf]
    %v2697 = vld [vmem:[%s3 + $0x178] sm:$0xf]
    %v2698 = vld [vmem:[%s3 + $0x17c] sm:$0xf]
    %v2699 = vld [vmem:[%s3 + $0x180] sm:$0xf]
    %v2700 = vld [vmem:[%s3 + $0x184] sm:$0xf]
    %v2701 = vld [vmem:[%s3 + $0x188] sm:$0xf]
    %v2702 = vld [vmem:[%s3 + $0x18c] sm:$0xf]
    %v2703 = vld [vmem:[%s3 + $0x190] sm:$0xf]
    %v2704 = vld [vmem:[%s3 + $0x194] sm:$0xf]
    %v2705 = vld [vmem:[%s3 + $0x198] sm:$0xf]
    %v2706 = vld [vmem:[%s3 + $0x19c] sm:$0xf]
    %v2707 = vld [vmem:[%s3 + $0x1a0] sm:$0xf]
    %v2708 = vld [vmem:[%s3 + $0x1a4] sm:$0xf]
    %v2709 = vld [vmem:[%s3 + $0x1a8] sm:$0xf]
    %v2710 = vld [vmem:[%s3 + $0x1ac] sm:$0xf]
    %v2711 = vld [vmem:[%s3 + $0x1b0] sm:$0xf]
    %v2712 = vld [vmem:[%s3 + $0x1b4] sm:$0xf]
    %v2713 = vld [vmem:[%s3 + $0x1b8] sm:$0xf]
    %v2714 = vld [vmem:[%s3 + $0x1bc] sm:$0xf]
    %v2715 = vld [vmem:[%s3 + $0x1c0] sm:$0xf]
    %v2716 = vld [vmem:[%s3 + $0x1c4] sm:$0xf]
    %v2717 = vld [vmem:[%s3 + $0x1c8] sm:$0xf]
    %v2718 = vld [vmem:[%s3 + $0x1cc] sm:$0xf]
    %v2719 = vld [vmem:[%s3 + $0x1d0] sm:$0xf]
    %v2720 = vld [vmem:[%s3 + $0x1d4] sm:$0xf]
    %v2721 = vld [vmem:[%s3 + $0x1d8] sm:$0xf]
    %v2722 = vld [vmem:[%s3 + $0x1dc] sm:$0xf]
    %v2723 = vld [vmem:[%s3 + $0x1e0] sm:$0xf]
    %v2724 = vld [vmem:[%s3 + $0x1e4] sm:$0xf]
    %v2725 = vld [vmem:[%s3 + $0x1e8] sm:$0xf]
    %v2726 = vld [vmem:[%s3 + $0x1ec] sm:$0xf]
    %v2727 = vld [vmem:[%s3 + $0x1f0] sm:$0xf]
    %v2728 = vld [vmem:[%s3 + $0x1f4] sm:$0xf]
    %v2729 = vld [vmem:[%s3 + $0x1f8] sm:$0xf]
    %v2730 = vld [vmem:[%s3 + $0x1fc] sm:$0xf]
    %v2731 = vld [vmem:[%s3 + $0x200] sm:$0xf]
    %v2732 = vld [vmem:[%s3 + $0x204] sm:$0xf]
    %v2733 = vld [vmem:[%s3 + $0x208] sm:$0xf]
    %v2734 = vld [vmem:[%s3 + $0x20c] sm:$0xf]
    %v2735 = vld [vmem:[%s3 + $0x210] sm:$0xf]
    %v2736 = vld [vmem:[%s3 + $0x214] sm:$0xf]
    %v2737 = vld [vmem:[%s3 + $0x218] sm:$0xf]
    %v2738 = vld [vmem:[%s3 + $0x21c] sm:$0xf]
    %v2739 = vld [vmem:[%s3 + $0x220] sm:$0xf]
    %v2740 = vld [vmem:[%s3 + $0x224] sm:$0xf]
    %v2741 = vld [vmem:[%s3 + $0x228] sm:$0xf]
    %v2742 = vld [vmem:[%s3 + $0x22c] sm:$0xf]
    %v2743 = vld [vmem:[%s3 + $0x230] sm:$0xf]
    %v2744 = vld [vmem:[%s3 + $0x234] sm:$0xf]
    %v2745 = vld [vmem:[%s3 + $0x238] sm:$0xf]
    %v2746 = vld [vmem:[%s3 + $0x23c] sm:$0xf]
    %v2747 = vld [vmem:[%s3 + $0x240] sm:$0xf]
    %v2748 = vld [vmem:[%s3 + $0x244] sm:$0xf]
    %v2749 = vld [vmem:[%s3 + $0x248] sm:$0xf]
    %v2750 = vld [vmem:[%s3 + $0x24c] sm:$0xf]
    %v2751 = vld [vmem:[%s3 + $0x250] sm:$0xf]
    %v2752 = vld [vmem:[%s3 + $0x254] sm:$0xf]
    %v2753 = vld [vmem:[%s3 + $0x258] sm:$0xf]
    %v2754 = vld [vmem:[%s3 + $0x25c] sm:$0xf]
    %v2755 = vld [vmem:[%s3 + $0x260] sm:$0xf]
    %v2756 = vld [vmem:[%s3 + $0x264] sm:$0xf]
    %v2757 = vld [vmem:[%s3 + $0x268] sm:$0xf]
    %v2758 = vld [vmem:[%s3 + $0x26c] sm:$0xf]
    %v2759 = vld [vmem:[%s3 + $0x270] sm:$0xf]
    %v2760 = vld [vmem:[%s3 + $0x274] sm:$0xf]
    %v2761 = vld [vmem:[%s3 + $0x278] sm:$0xf]
    %v2762 = vld [vmem:[%s3 + $0x27c] sm:$0xf]
    %v2763 = vld [vmem:[%s3 + $0x280] sm:$0xf]
    %v2764 = vld [vmem:[%s3 + $0x284] sm:$0xf]
    %v2765 = vld [vmem:[%s3 + $0x288] sm:$0xf]
    %v2766 = vld [vmem:[%s3 + $0x28c] sm:$0xf]
    %v2767 = vld [vmem:[%s3 + $0x290] sm:$0xf]
    %v2768 = vld [vmem:[%s3 + $0x294] sm:$0xf]
    %v2769 = vld [vmem:[%s3 + $0x298] sm:$0xf]
    %v2770 = vld [vmem:[%s3 + $0x29c] sm:$0xf]
    %v2771 = vld [vmem:[%s3 + $0x2a0] sm:$0xf]
    %v2772 = vld [vmem:[%s3 + $0x2a4] sm:$0xf]
    %v2773 = vld [vmem:[%s3 + $0x2a8] sm:$0xf]
    %v2774 = vld [vmem:[%s3 + $0x2ac] sm:$0xf]
    %v2775 = vld [vmem:[%s3 + $0x2b0] sm:$0xf]
    %v2776 = vld [vmem:[%s3 + $0x2b4] sm:$0xf]
    %v2777 = vld [vmem:[%s3 + $0x2b8] sm:$0xf]
    %v2778 = vld [vmem:[%s3 + $0x2bc] sm:$0xf]
    %v2779 = vld [vmem:[%s3 + $0x2c0] sm:$0xf]
    %v2780 = vld [vmem:[%s3 + $0x2c4] sm:$0xf]
    %v2781 = vld [vmem:[%s3 + $0x2c8] sm:$0xf]
    %v2782 = vld [vmem:[%s3 + $0x2cc] sm:$0xf]
    %v2783 = vld [vmem:[%s3 + $0x2d0] sm:$0xf]
    %v2784 = vld [vmem:[%s3 + $0x2d4] sm:$0xf]
    %v2785 = vld [vmem:[%s3 + $0x2d8] sm:$0xf]
    %v2786 = vld [vmem:[%s3 + $0x2dc] sm:$0xf]
    %v2787 = vld [vmem:[%s3 + $0x2e0] sm:$0xf]
    %v2788 = vld [vmem:[%s3 + $0x2e4] sm:$0xf]
    %v2789 = vld [vmem:[%s3 + $0x2e8] sm:$0xf]
    %v2790 = vld [vmem:[%s3 + $0x2ec] sm:$0xf]
    %v2791 = vld [vmem:[%s3 + $0x2f0] sm:$0xf]
    %v2792 = vld [vmem:[%s3 + $0x2f4] sm:$0xf]
    %v2793 = vld [vmem:[%s3 + $0x2f8] sm:$0xf]
    %v2794 = vld [vmem:[%s3 + $0x2fc] sm:$0xf]
    %v2795 = vld [vmem:[%s3 + $0x300] sm:$0xf]
    %v2796 = vld [vmem:[%s3 + $0x304] sm:$0xf]
    %v2797 = vld [vmem:[%s3 + $0x308] sm:$0xf]
    %v2798 = vld [vmem:[%s3 + $0x30c] sm:$0xf]
    %v2799 = vld [vmem:[%s3 + $0x310] sm:$0xf]
    %v2800 = vld [vmem:[%s3 + $0x314] sm:$0xf]
    %v2801 = vld [vmem:[%s3 + $0x318] sm:$0xf]
    %v2802 = vld [vmem:[%s3 + $0x31c] sm:$0xf]
    %v2803 = vld [vmem:[%s3 + $0x320] sm:$0xf]
    %v2804 = vld [vmem:[%s3 + $0x324] sm:$0xf]
    %v2805 = vld [vmem:[%s3 + $0x328] sm:$0xf]
    %v2806 = vld [vmem:[%s3 + $0x32c] sm:$0xf]
    %v2807 = vld [vmem:[%s3 + $0x330] sm:$0xf]
    %v2808 = vld [vmem:[%s3 + $0x334] sm:$0xf]
    %v2809 = vld [vmem:[%s3 + $0x338] sm:$0xf]
    %v2810 = vld [vmem:[%s3 + $0x33c] sm:$0xf]
    %v2811 = vld [vmem:[%s3 + $0x340] sm:$0xf]
    %v2812 = vld [vmem:[%s3 + $0x344] sm:$0xf]
    %v2813 = vld [vmem:[%s3 + $0x348] sm:$0xf]
    %v2814 = vld [vmem:[%s3 + $0x34c] sm:$0xf]
    %v2815 = vld [vmem:[%s3 + $0x350] sm:$0xf]
    %v2816 = vld [vmem:[%s3 + $0x354] sm:$0xf]
    %v2817 = vld [vmem:[%s3 + $0x358] sm:$0xf]
    %v2818 = vld [vmem:[%s3 + $0x35c] sm:$0xf]
    %v2819 = vld [vmem:[%s3 + $0x360] sm:$0xf]
    %v2820 = vld [vmem:[%s3 + $0x364] sm:$0xf]
    %v2821 = vld [vmem:[%s3 + $0x368] sm:$0xf]
    %v2822 = vld [vmem:[%s3 + $0x36c] sm:$0xf]
    %v2823 = vld [vmem:[%s3 + $0x370] sm:$0xf]
    %v2824 = vld [vmem:[%s3 + $0x374] sm:$0xf]
    %v2825 = vld [vmem:[%s3 + $0x378] sm:$0xf]
    %v2826 = vld [vmem:[%s3 + $0x37c] sm:$0xf]
    %v2827 = vld [vmem:[%s3 + $0x380] sm:$0xf]
    %v2828 = vld [vmem:[%s3 + $0x384] sm:$0xf]
    %v2829 = vld [vmem:[%s3 + $0x388] sm:$0xf]
    %v2830 = vld [vmem:[%s3 + $0x38c] sm:$0xf]
    %v2831 = vld [vmem:[%s3 + $0x390] sm:$0xf]
    %v2832 = vld [vmem:[%s3 + $0x394] sm:$0xf]
    %v2833 = vld [vmem:[%s3 + $0x398] sm:$0xf]
    %v2834 = vld [vmem:[%s3 + $0x39c] sm:$0xf]
    %v2835 = vld [vmem:[%s3 + $0x3a0] sm:$0xf]
    %v2836 = vld [vmem:[%s3 + $0x3a4] sm:$0xf]
    %v2837 = vld [vmem:[%s3 + $0x3a8] sm:$0xf]
    %v2838 = vld [vmem:[%s3 + $0x3ac] sm:$0xf]
    %v2839 = vld [vmem:[%s3 + $0x3b0] sm:$0xf]
    %v2840 = vld [vmem:[%s3 + $0x3b4] sm:$0xf]
    %v2841 = vld [vmem:[%s3 + $0x3b8] sm:$0xf]
    %v2842 = vld [vmem:[%s3 + $0x3bc] sm:$0xf]
    %v2843 = vld [vmem:[%s3 + $0x3c0] sm:$0xf]
    %v2844 = vld [vmem:[%s3 + $0x3c4] sm:$0xf]
    %v2845 = vld [vmem:[%s3 + $0x3c8] sm:$0xf]
    %v2846 = vld [vmem:[%s3 + $0x3cc] sm:$0xf]
    %v2847 = vld [vmem:[%s3 + $0x3d0] sm:$0xf]
    %v2848 = vld [vmem:[%s3 + $0x3d4] sm:$0xf]
    %v2849 = vld [vmem:[%s3 + $0x3d8] sm:$0xf]
    %v2850 = vld [vmem:[%s3 + $0x3dc] sm:$0xf]
    %v2851 = vld [vmem:[%s3 + $0x3e0] sm:$0xf]
    %v2852 = vld [vmem:[%s3 + $0x3e4] sm:$0xf]
    %v2853 = vld [vmem:[%s3 + $0x3e8] sm:$0xf]
    %v2854 = vld [vmem:[%s3 + $0x3ec] sm:$0xf]
    %v2855 = vld [vmem:[%s3 + $0x3f0] sm:$0xf]
    %v2856 = vld [vmem:[%s3 + $0x3f4] sm:$0xf]
    %v2857 = vld [vmem:[%s3 + $0x3f8] sm:$0xf]
    %v2858 = vld [vmem:[%s3 + $0x3fc] sm:$0xf]
    %v2859 = vld [vmem:[%s3 + $0x400] sm:$0xf]
    %v2860 = vld [vmem:[%s3 + $0x404] sm:$0xf]
    %v2861 = vld [vmem:[%s3 + $0x408] sm:$0xf]
    %v2862 = vld [vmem:[%s3 + $0x40c] sm:$0xf]
    %v2863 = vld [vmem:[%s3 + $0x410] sm:$0xf]
    %v2864 = vld [vmem:[%s3 + $0x414] sm:$0xf]
    %v2865 = vld [vmem:[%s3 + $0x418] sm:$0xf]
    %v2866 = vld [vmem:[%s3 + $0x41c] sm:$0xf]
    %v2867 = vld [vmem:[%s3 + $0x420] sm:$0xf]
    %v2868 = vld [vmem:[%s3 + $0x424] sm:$0xf]
    %v2869 = vld [vmem:[%s3 + $0x428] sm:$0xf]
    %v2870 = vld [vmem:[%s3 + $0x42c] sm:$0xf]
    %v2871 = vld [vmem:[%s3 + $0x430] sm:$0xf]
    %v2872 = vld [vmem:[%s3 + $0x434] sm:$0xf]
    %v2873 = vld [vmem:[%s3 + $0x438] sm:$0xf]
    %v2874 = vld [vmem:[%s3 + $0x43c] sm:$0xf]
    %v2875 = vld [vmem:[%s3 + $0x440] sm:$0xf]
    %v2876 = vld [vmem:[%s3 + $0x444] sm:$0xf]
    %v2877 = vld [vmem:[%s3 + $0x448] sm:$0xf]
    %v2878 = vld [vmem:[%s3 + $0x44c] sm:$0xf]
    %v2879 = vld [vmem:[%s3 + $0x450] sm:$0xf]
    %v2880 = vld [vmem:[%s3 + $0x454] sm:$0xf]
    %v2881 = vld [vmem:[%s3 + $0x458] sm:$0xf]
    %v2882 = vld [vmem:[%s3 + $0x45c] sm:$0xf]
    %v2883 = vld [vmem:[%s3 + $0x460] sm:$0xf]
    %v2884 = vld [vmem:[%s3 + $0x464] sm:$0xf]
    %v2885 = vld [vmem:[%s3 + $0x468] sm:$0xf]
    %v2886 = vld [vmem:[%s3 + $0x46c] sm:$0xf]
    %v2887 = vld [vmem:[%s3 + $0x470] sm:$0xf]
    %v2888 = vld [vmem:[%s3 + $0x474] sm:$0xf]
    %v2889 = vld [vmem:[%s3 + $0x478] sm:$0xf]
    %v2890 = vld [vmem:[%s3 + $0x47c] sm:$0xf]
    %v2891 = vld [vmem:[%s3 + $0x480] sm:$0xf]
    %v2892 = vld [vmem:[%s3 + $0x484] sm:$0xf]
    %v2893 = vld [vmem:[%s3 + $0x488] sm:$0xf]
    %v2894 = vld [vmem:[%s3 + $0x48c] sm:$0xf]
    %v2895 = vld [vmem:[%s3 + $0x490] sm:$0xf]
    %v2896 = vld [vmem:[%s3 + $0x494] sm:$0xf]
    %v2897 = vld [vmem:[%s3 + $0x498] sm:$0xf]
    %v2898 = vld [vmem:[%s3 + $0x49c] sm:$0xf]
    %v2899 = vld [vmem:[%s3 + $0x4a0] sm:$0xf]
    %v2900 = vld [vmem:[%s3 + $0x4a4] sm:$0xf]
    %v2901 = vld [vmem:[%s3 + $0x4a8] sm:$0xf]
    %v2902 = vld [vmem:[%s3 + $0x4ac] sm:$0xf]
    %v2903 = vld [vmem:[%s3 + $0x4b0] sm:$0xf]
    %v2904 = vld [vmem:[%s3 + $0x4b4] sm:$0xf]
    %v2905 = vld [vmem:[%s3 + $0x4b8] sm:$0xf]
    %v2906 = vld [vmem:[%s3 + $0x4bc] sm:$0xf]
    %v2907 = vld [vmem:[%s3 + $0x4c0] sm:$0xf]
    %v2908 = vld [vmem:[%s3 + $0x4c4] sm:$0xf]
    %v2909 = vld [vmem:[%s3 + $0x4c8] sm:$0xf]
    %v2910 = vld [vmem:[%s3 + $0x4cc] sm:$0xf]
    %v2911 = vld [vmem:[%s3 + $0x4d0] sm:$0xf]
    %v2912 = vld [vmem:[%s3 + $0x4d4] sm:$0xf]
    %v2913 = vld [vmem:[%s3 + $0x4d8] sm:$0xf]
    %v2914 = vld [vmem:[%s3 + $0x4dc] sm:$0xf]
    %v2915 = vld [vmem:[%s3 + $0x4e0] sm:$0xf]
    %v2916 = vld [vmem:[%s3 + $0x4e4] sm:$0xf]
    %v2917 = vld [vmem:[%s3 + $0x4e8] sm:$0xf]
    %v2918 = vld [vmem:[%s3 + $0x4ec] sm:$0xf]
    %v2919 = vld [vmem:[%s3 + $0x4f0] sm:$0xf]
    %v2920 = vld [vmem:[%s3 + $0x4f4] sm:$0xf]
    %v2921 = vld [vmem:[%s3 + $0x4f8] sm:$0xf]
    %v2922 = vld [vmem:[%s3 + $0x4fc] sm:$0xf]
    %v2923 = vld [vmem:[%s3 + $0x500] sm:$0xf]
    %v2924 = vld [vmem:[%s3 + $0x504] sm:$0xf]
    %v2925 = vld [vmem:[%s3 + $0x508] sm:$0xf]
    %v2926 = vld [vmem:[%s3 + $0x50c] sm:$0xf]
    %v2927 = vld [vmem:[%s3 + $0x510] sm:$0xf]
    %v2928 = vld [vmem:[%s3 + $0x514] sm:$0xf]
    %v2929 = vld [vmem:[%s3 + $0x518] sm:$0xf]
    %v2930 = vld [vmem:[%s3 + $0x51c] sm:$0xf]
    %v2931 = vld [vmem:[%s3 + $0x520] sm:$0xf]
    %v2932 = vld [vmem:[%s3 + $0x524] sm:$0xf]
    %v2933 = vld [vmem:[%s3 + $0x528] sm:$0xf]
    %v2934 = vld [vmem:[%s3 + $0x52c] sm:$0xf]
    %v2935 = vld [vmem:[%s3 + $0x530] sm:$0xf]
    %v2936 = vld [vmem:[%s3 + $0x534] sm:$0xf]
    %v2937 = vld [vmem:[%s3 + $0x538] sm:$0xf]
    %v2938 = vld [vmem:[%s3 + $0x53c] sm:$0xf]
    %v2939 = vld [vmem:[%s3 + $0x540] sm:$0xf]
    %v2940 = vld [vmem:[%s3 + $0x544] sm:$0xf]
    %v2941 = vld [vmem:[%s3 + $0x548] sm:$0xf]
    %v2942 = vld [vmem:[%s3 + $0x54c] sm:$0xf]
    %v2943 = vld [vmem:[%s3 + $0x550] sm:$0xf]
    %v2944 = vld [vmem:[%s3 + $0x554] sm:$0xf]
    %v2945 = vld [vmem:[%s3 + $0x558] sm:$0xf]
    %v2946 = vld [vmem:[%s3 + $0x55c] sm:$0xf]
    %v2947 = vld [vmem:[%s3 + $0x560] sm:$0xf]
    %v2948 = vld [vmem:[%s3 + $0x564] sm:$0xf]
    %v2949 = vld [vmem:[%s3 + $0x568] sm:$0xf]
    %v2950 = vld [vmem:[%s3 + $0x56c] sm:$0xf]
    %v2951 = vld [vmem:[%s3 + $0x570] sm:$0xf]
    %v2952 = vld [vmem:[%s3 + $0x574] sm:$0xf]
    %v2953 = vld [vmem:[%s3 + $0x578] sm:$0xf]
    %v2954 = vld [vmem:[%s3 + $0x57c] sm:$0xf]
    %v2955 = vld [vmem:[%s3 + $0x580] sm:$0xf]
    %v2956 = vld [vmem:[%s3 + $0x584] sm:$0xf]
    %v2957 = vld [vmem:[%s3 + $0x588] sm:$0xf]
    %v2958 = vld [vmem:[%s3 + $0x58c] sm:$0xf]
    %v2959 = vld [vmem:[%s3 + $0x590] sm:$0xf]
    %v2960 = vld [vmem:[%s3 + $0x594] sm:$0xf]
    %v2961 = vld [vmem:[%s3 + $0x598] sm:$0xf]
    %v2962 = vld [vmem:[%s3 + $0x59c] sm:$0xf]
    %v2963 = vld [vmem:[%s3 + $0x5a0] sm:$0xf]
    %v2964 = vld [vmem:[%s3 + $0x5a4] sm:$0xf]
    %v2965 = vld [vmem:[%s3 + $0x5a8] sm:$0xf]
    %v2966 = vld [vmem:[%s3 + $0x5ac] sm:$0xf]
    %v2967 = vld [vmem:[%s3 + $0x5b0] sm:$0xf]
    %v2968 = vld [vmem:[%s3 + $0x5b4] sm:$0xf]
    %v2969 = vld [vmem:[%s3 + $0x5b8] sm:$0xf]
    %v2970 = vld [vmem:[%s3 + $0x5bc] sm:$0xf]
    %v2971 = vld [vmem:[%s3 + $0x5c0] sm:$0xf]
    %v2972 = vld [vmem:[%s3 + $0x5c4] sm:$0xf]
    %v2973 = vld [vmem:[%s3 + $0x5c8] sm:$0xf]
    %v2974 = vld [vmem:[%s3 + $0x5cc] sm:$0xf]
    %v2975 = vld [vmem:[%s3 + $0x5d0] sm:$0xf]
    %v2976 = vld [vmem:[%s3 + $0x5d4] sm:$0xf]
    %v2977 = vld [vmem:[%s3 + $0x5d8] sm:$0xf]
    %v2978 = vld [vmem:[%s3 + $0x5dc] sm:$0xf]
    %v2979 = vld [vmem:[%s3 + $0x5e0] sm:$0xf]
    %v2980 = vld [vmem:[%s3 + $0x5e4] sm:$0xf]
    %v2981 = vld [vmem:[%s3 + $0x5e8] sm:$0xf]
    %v2982 = vld [vmem:[%s3 + $0x5ec] sm:$0xf]
    %v2983 = vld [vmem:[%s3 + $0x5f0] sm:$0xf]
    %v2984 = vld [vmem:[%s3 + $0x5f4] sm:$0xf]
    %v2985 = vld [vmem:[%s3 + $0x5f8] sm:$0xf]
    %v2986 = vld [vmem:[%s3 + $0x5fc] sm:$0xf]
    %v2987 = vld [vmem:[%s3 + $0x600] sm:$0xf]
    %v2988 = vld [vmem:[%s3 + $0x604] sm:$0xf]
    %v2989 = vld [vmem:[%s3 + $0x608] sm:$0xf]
    %v2990 = vld [vmem:[%s3 + $0x60c] sm:$0xf]
    %v2991 = vld [vmem:[%s3 + $0x610] sm:$0xf]
    %v2992 = vld [vmem:[%s3 + $0x614] sm:$0xf]
    %v2993 = vld [vmem:[%s3 + $0x618] sm:$0xf]
    %v2994 = vld [vmem:[%s3 + $0x61c] sm:$0xf]
    %v2995 = vld [vmem:[%s3 + $0x620] sm:$0xf]
    %v2996 = vld [vmem:[%s3 + $0x624] sm:$0xf]
    %v2997 = vld [vmem:[%s3 + $0x628] sm:$0xf]
    %v2998 = vld [vmem:[%s3 + $0x62c] sm:$0xf]
    %v2999 = vld [vmem:[%s3 + $0x630] sm:$0xf]
    %v3000 = vld [vmem:[%s3 + $0x634] sm:$0xf]
    %v3001 = vld [vmem:[%s3 + $0x638] sm:$0xf]
    %v3002 = vld [vmem:[%s3 + $0x63c] sm:$0xf]
    %v3403 = vunpack.c.l.b16 %v2603
    %v3404 = vunpack.c.l.b16 %v2604
    %v3405 = vunpack.c.l.b16 %v2605
    %v3406 = vunpack.c.l.b16 %v2606
    %v3407 = vunpack.c.l.b16 %v2607
    %v3408 = vunpack.c.l.b16 %v2608
    %v3409 = vunpack.c.l.b16 %v2609
    %v3410 = vunpack.c.l.b16 %v2610
    %v3411 = vunpack.c.l.b16 %v2611
    %v3412 = vunpack.c.l.b16 %v2612
    %v3413 = vunpack.c.l.b16 %v2613
    %v3414 = vunpack.c.l.b16 %v2614
    %v3415 = vunpack.c.l.b16 %v2615
    %v3416 = vunpack.c.l.b16 %v2616
    %v3417 = vunpack.c.l.b16 %v2617
    %v3418 = vunpack.c.l.b16 %v2618
    %v3419 = vunpack.c.l.b16 %v2619
    %v3420 = vunpack.c.l.b16 %v2620
    %v3421 = vunpack.c.l.b16 %v2621
    %v3422 = vunpack.c.l.b16 %v2622
    %v3423 = vunpack.c.l.b16 %v2623
    %v3424 = vunpack.c.l.b16 %v2624
    %v3425 = vunpack.c.l.b16 %v2625
    %v3426 = vunpack.c.l.b16 %v2626
    %v3427 = vunpack.c.l.b16 %v2627
    %v3428 = vunpack.c.l.b16 %v2628
    %v3429 = vunpack.c.l.b16 %v2629
    %v3430 = vunpack.c.l.b16 %v2630
    %v3431 = vunpack.c.l.b16 %v2631
    %v3432 = vunpack.c.l.b16 %v2632
    %v3433 = vunpack.c.l.b16 %v2633
    %v3434 = vunpack.c.l.b16 %v2634
    %v3435 = vunpack.c.l.b16 %v2635
    %v3436 = vunpack.c.l.b16 %v2636
    %v3437 = vunpack.c.l.b16 %v2637
    %v3438 = vunpack.c.l.b16 %v2638
    %v3439 = vunpack.c.l.b16 %v2639
    %v3440 = vunpack.c.l.b16 %v2640
    %v3441 = vunpack.c.l.b16 %v2641
    %v3442 = vunpack.c.l.b16 %v2642
    %v3443 = vunpack.c.l.b16 %v2643
    %v3444 = vunpack.c.l.b16 %v2644
    %v3445 = vunpack.c.l.b16 %v2645
    %v3446 = vunpack.c.l.b16 %v2646
    %v3447 = vunpack.c.l.b16 %v2647
    %v3448 = vunpack.c.l.b16 %v2648
    %v3449 = vunpack.c.l.b16 %v2649
    %v3450 = vunpack.c.l.b16 %v2650
    %v3451 = vunpack.c.l.b16 %v2651
    %v3452 = vunpack.c.l.b16 %v2652
    %v3453 = vunpack.c.l.b16 %v2653
    %v3454 = vunpack.c.l.b16 %v2654
    %v3455 = vunpack.c.l.b16 %v2655
    %v3456 = vunpack.c.l.b16 %v2656
    %v3457 = vunpack.c.l.b16 %v2657
    %v3458 = vunpack.c.l.b16 %v2658
    %v3459 = vunpack.c.l.b16 %v2659
    %v3460 = vunpack.c.l.b16 %v2660
    %v3461 = vunpack.c.l.b16 %v2661
    %v3462 = vunpack.c.l.b16 %v2662
    %v3463 = vunpack.c.l.b16 %v2663
    %v3464 = vunpack.c.l.b16 %v2664
    %v3465 = vunpack.c.l.b16 %v2665
    %v3466 = vunpack.c.l.b16 %v2666
    %v3467 = vunpack.c.l.b16 %v2667
    %v3468 = vunpack.c.l.b16 %v2668
    %v3469 = vunpack.c.l.b16 %v2669
    %v3470 = vunpack.c.l.b16 %v2670
    %v3471 = vunpack.c.l.b16 %v2671
    %v3472 = vunpack.c.l.b16 %v2672
    %v3473 = vunpack.c.l.b16 %v2673
    %v3474 = vunpack.c.l.b16 %v2674
    %v3475 = vunpack.c.l.b16 %v2675
    %v3476 = vunpack.c.l.b16 %v2676
    %v3477 = vunpack.c.l.b16 %v2677
    %v3478 = vunpack.c.l.b16 %v2678
    %v3479 = vunpack.c.l.b16 %v2679
    %v3480 = vunpack.c.l.b16 %v2680
    %v3481 = vunpack.c.l.b16 %v2681
    %v3482 = vunpack.c.l.b16 %v2682
    %v3483 = vunpack.c.l.b16 %v2683
    %v3484 = vunpack.c.l.b16 %v2684
    %v3485 = vunpack.c.l.b16 %v2685
    %v3486 = vunpack.c.l.b16 %v2686
    %v3487 = vunpack.c.l.b16 %v2687
    %v3488 = vunpack.c.l.b16 %v2688
    %v3489 = vunpack.c.l.b16 %v2689
    %v3490 = vunpack.c.l.b16 %v2690
    %v3491 = vunpack.c.l.b16 %v2691
    %v3492 = vunpack.c.l.b16 %v2692
    %v3493 = vunpack.c.l.b16 %v2693
    %v3494 = vunpack.c.l.b16 %v2694
    %v3495 = vunpack.c.l.b16 %v2695
    %v3496 = vunpack.c.l.b16 %v2696
    %v3497 = vunpack.c.l.b16 %v2697
    %v3498 = vunpack.c.l.b16 %v2698
    %v3499 = vunpack.c.l.b16 %v2699
    %v3500 = vunpack.c.l.b16 %v2700
    %v3501 = vunpack.c.l.b16 %v2701
    %v3502 = vunpack.c.l.b16 %v2702
    %v3503 = vunpack.c.l.b16 %v2703
    %v3504 = vunpack.c.l.b16 %v2704
    %v3505 = vunpack.c.l.b16 %v2705
    %v3506 = vunpack.c.l.b16 %v2706
    %v3507 = vunpack.c.l.b16 %v2707
    %v3508 = vunpack.c.l.b16 %v2708
    %v3509 = vunpack.c.l.b16 %v2709
    %v3510 = vunpack.c.l.b16 %v2710
    %v3511 = vunpack.c.l.b16 %v2711
    %v3512 = vunpack.c.l.b16 %v2712
    %v3513 = vunpack.c.l.b16 %v2713
    %v3514 = vunpack.c.l.b16 %v2714
    %v3515 = vunpack.c.l.b16 %v2715
    %v3516 = vunpack.c.l.b16 %v2716
    %v3517 = vunpack.c.l.b16 %v2717
    %v3518 = vunpack.c.l.b16 %v2718
    %v3519 = vunpack.c.l.b16 %v2719
    %v3520 = vunpack.c.l.b16 %v2720
    %v3521 = vunpack.c.l.b16 %v2721
    %v3522 = vunpack.c.l.b16 %v2722
    %v3523 = vunpack.c.l.b16 %v2723
    %v3524 = vunpack.c.l.b16 %v2724
    %v3525 = vunpack.c.l.b16 %v2725
    %v3526 = vunpack.c.l.b16 %v2726
    %v3527 = vunpack.c.l.b16 %v2727
    %v3528 = vunpack.c.l.b16 %v2728
    %v3529 = vunpack.c.l.b16 %v2729
    %v3530 = vunpack.c.l.b16 %v2730
    %v3531 = vunpack.c.l.b16 %v2731
    %v3532 = vunpack.c.l.b16 %v2732
    %v3533 = vunpack.c.l.b16 %v2733
    %v3534 = vunpack.c.l.b16 %v2734
    %v3535 = vunpack.c.l.b16 %v2735
    %v3536 = vunpack.c.l.b16 %v2736
    %v3537 = vunpack.c.l.b16 %v2737
    %v3538 = vunpack.c.l.b16 %v2738
    %v3539 = vunpack.c.l.b16 %v2739
    %v3540 = vunpack.c.l.b16 %v2740
    %v3541 = vunpack.c.l.b16 %v2741
    %v3542 = vunpack.c.l.b16 %v2742
    %v3543 = vunpack.c.l.b16 %v2743
    %v3544 = vunpack.c.l.b16 %v2744
    %v3545 = vunpack.c.l.b16 %v2745
    %v3546 = vunpack.c.l.b16 %v2746
    %v3547 = vunpack.c.l.b16 %v2747
    %v3548 = vunpack.c.l.b16 %v2748
    %v3549 = vunpack.c.l.b16 %v2749
    %v3550 = vunpack.c.l.b16 %v2750
    %v3551 = vunpack.c.l.b16 %v2751
    %v3552 = vunpack.c.l.b16 %v2752
    %v3553 = vunpack.c.l.b16 %v2753
    %v3554 = vunpack.c.l.b16 %v2754
    %v3555 = vunpack.c.l.b16 %v2755
    %v3556 = vunpack.c.l.b16 %v2756
    %v3557 = vunpack.c.l.b16 %v2757
    %v3558 = vunpack.c.l.b16 %v2758
    %v3559 = vunpack.c.l.b16 %v2759
    %v3560 = vunpack.c.l.b16 %v2760
    %v3561 = vunpack.c.l.b16 %v2761
    %v3562 = vunpack.c.l.b16 %v2762
    %v3563 = vunpack.c.l.b16 %v2763
    %v3564 = vunpack.c.l.b16 %v2764
    %v3565 = vunpack.c.l.b16 %v2765
    %v3566 = vunpack.c.l.b16 %v2766
    %v3567 = vunpack.c.l.b16 %v2767
    %v3568 = vunpack.c.l.b16 %v2768
    %v3569 = vunpack.c.l.b16 %v2769
    %v3570 = vunpack.c.l.b16 %v2770
    %v3571 = vunpack.c.l.b16 %v2771
    %v3572 = vunpack.c.l.b16 %v2772
    %v3573 = vunpack.c.l.b16 %v2773
    %v3574 = vunpack.c.l.b16 %v2774
    %v3575 = vunpack.c.l.b16 %v2775
    %v3576 = vunpack.c.l.b16 %v2776
    %v3577 = vunpack.c.l.b16 %v2777
    %v3578 = vunpack.c.l.b16 %v2778
    %v3579 = vunpack.c.l.b16 %v2779
    %v3580 = vunpack.c.l.b16 %v2780
    %v3581 = vunpack.c.l.b16 %v2781
    %v3582 = vunpack.c.l.b16 %v2782
    %v3583 = vunpack.c.l.b16 %v2783
    %v3584 = vunpack.c.l.b16 %v2784
    %v3585 = vunpack.c.l.b16 %v2785
    %v3586 = vunpack.c.l.b16 %v2786
    %v3587 = vunpack.c.l.b16 %v2787
    %v3588 = vunpack.c.l.b16 %v2788
    %v3589 = vunpack.c.l.b16 %v2789
    %v3590 = vunpack.c.l.b16 %v2790
    %v3591 = vunpack.c.l.b16 %v2791
    %v3592 = vunpack.c.l.b16 %v2792
    %v3593 = vunpack.c.l.b16 %v2793
    %v3594 = vunpack.c.l.b16 %v2794
    %v3595 = vunpack.c.l.b16 %v2795
    %v3596 = vunpack.c.l.b16 %v2796
    %v3597 = vunpack.c.l.b16 %v2797
    %v3598 = vunpack.c.l.b16 %v2798
    %v3599 = vunpack.c.l.b16 %v2799
    %v3600 = vunpack.c.l.b16 %v2800
    %v3601 = vunpack.c.l.b16 %v2801
    %v3602 = vunpack.c.l.b16 %v2802
    %v3603 = vunpack.c.l.b16 %v2803
    %v3604 = vunpack.c.l.b16 %v2804
    %v3605 = vunpack.c.l.b16 %v2805
    %v3606 = vunpack.c.l.b16 %v2806
    %v3607 = vunpack.c.l.b16 %v2807
    %v3608 = vunpack.c.l.b16 %v2808
    %v3609 = vunpack.c.l.b16 %v2809
    %v3610 = vunpack.c.l.b16 %v2810
    %v3611 = vunpack.c.l.b16 %v2811
    %v3612 = vunpack.c.l.b16 %v2812
    %v3613 = vunpack.c.l.b16 %v2813
    %v3614 = vunpack.c.l.b16 %v2814
    %v3615 = vunpack.c.l.b16 %v2815
    %v3616 = vunpack.c.l.b16 %v2816
    %v3617 = vunpack.c.l.b16 %v2817
    %v3618 = vunpack.c.l.b16 %v2818
    %v3619 = vunpack.c.l.b16 %v2819
    %v3620 = vunpack.c.l.b16 %v2820
    %v3621 = vunpack.c.l.b16 %v2821
    %v3622 = vunpack.c.l.b16 %v2822
    %v3623 = vunpack.c.l.b16 %v2823
    %v3624 = vunpack.c.l.b16 %v2824
    %v3625 = vunpack.c.l.b16 %v2825
    %v3626 = vunpack.c.l.b16 %v2826
    %v3627 = vunpack.c.l.b16 %v2827
    %v3628 = vunpack.c.l.b16 %v2828
    %v3629 = vunpack.c.l.b16 %v2829
    %v3630 = vunpack.c.l.b16 %v2830
    %v3631 = vunpack.c.l.b16 %v2831
    %v3632 = vunpack.c.l.b16 %v2832
    %v3633 = vunpack.c.l.b16 %v2833
    %v3634 = vunpack.c.l.b16 %v2834
    %v3635 = vunpack.c.l.b16 %v2835
    %v3636 = vunpack.c.l.b16 %v2836
    %v3637 = vunpack.c.l.b16 %v2837
    %v3638 = vunpack.c.l.b16 %v2838
    %v3639 = vunpack.c.l.b16 %v2839
    %v3640 = vunpack.c.l.b16 %v2840
    %v3641 = vunpack.c.l.b16 %v2841
    %v3642 = vunpack.c.l.b16 %v2842
    %v3643 = vunpack.c.l.b16 %v2843
    %v3644 = vunpack.c.l.b16 %v2844
    %v3645 = vunpack.c.l.b16 %v2845
    %v3646 = vunpack.c.l.b16 %v2846
    %v3647 = vunpack.c.l.b16 %v2847
    %v3648 = vunpack.c.l.b16 %v2848
    %v3649 = vunpack.c.l.b16 %v2849
    %v3650 = vunpack.c.l.b16 %v2850
    %v3651 = vunpack.c.l.b16 %v2851
    %v3652 = vunpack.c.l.b16 %v2852
    %v3653 = vunpack.c.l.b16 %v2853
    %v3654 = vunpack.c.l.b16 %v2854
    %v3655 = vunpack.c.l.b16 %v2855
    %v3656 = vunpack.c.l.b16 %v2856
    %v3657 = vunpack.c.l.b16 %v2857
    %v3658 = vunpack.c.l.b16 %v2858
    %v3659 = vunpack.c.l.b16 %v2859
    %v3660 = vunpack.c.l.b16 %v2860
    %v3661 = vunpack.c.l.b16 %v2861
    %v3662 = vunpack.c.l.b16 %v2862
    %v3663 = vunpack.c.l.b16 %v2863
    %v3664 = vunpack.c.l.b16 %v2864
    %v3665 = vunpack.c.l.b16 %v2865
    %v3666 = vunpack.c.l.b16 %v2866
    %v3667 = vunpack.c.l.b16 %v2867
    %v3668 = vunpack.c.l.b16 %v2868
    %v3669 = vunpack.c.l.b16 %v2869
    %v3670 = vunpack.c.l.b16 %v2870
    %v3671 = vunpack.c.l.b16 %v2871
    %v3672 = vunpack.c.l.b16 %v2872
    %v3673 = vunpack.c.l.b16 %v2873
    %v3674 = vunpack.c.l.b16 %v2874
    %v3675 = vunpack.c.l.b16 %v2875
    %v3676 = vunpack.c.l.b16 %v2876
    %v3677 = vunpack.c.l.b16 %v2877
    %v3678 = vunpack.c.l.b16 %v2878
    %v3679 = vunpack.c.l.b16 %v2879
    %v3680 = vunpack.c.l.b16 %v2880
    %v3681 = vunpack.c.l.b16 %v2881
    %v3682 = vunpack.c.l.b16 %v2882
    %v3683 = vunpack.c.l.b16 %v2883
    %v3684 = vunpack.c.l.b16 %v2884
    %v3685 = vunpack.c.l.b16 %v2885
    %v3686 = vunpack.c.l.b16 %v2886
    %v3687 = vunpack.c.l.b16 %v2887
    %v3688 = vunpack.c.l.b16 %v2888
    %v3689 = vunpack.c.l.b16 %v2889
    %v3690 = vunpack.c.l.b16 %v2890
    %v3691 = vunpack.c.l.b16 %v2891
    %v3692 = vunpack.c.l.b16 %v2892
    %v3693 = vunpack.c.l.b16 %v2893
    %v3694 = vunpack.c.l.b16 %v2894
    %v3695 = vunpack.c.l.b16 %v2895
    %v3696 = vunpack.c.l.b16 %v2896
    %v3697 = vunpack.c.l.b16 %v2897
    %v3698 = vunpack.c.l.b16 %v2898
    %v3699 = vunpack.c.l.b16 %v2899
    %v3700 = vunpack.c.l.b16 %v2900
    %v3701 = vunpack.c.l.b16 %v2901
    %v3702 = vunpack.c.l.b16 %v2902
    %v3703 = vunpack.c.l.b16 %v2903
    %v3704 = vunpack.c.l.b16 %v2904
    %v3705 = vunpack.c.l.b16 %v2905
    %v3706 = vunpack.c.l.b16 %v2906
    %v3707 = vunpack.c.l.b16 %v2907
    %v3708 = vunpack.c.l.b16 %v2908
    %v3709 = vunpack.c.l.b16 %v2909
    %v3710 = vunpack.c.l.b16 %v2910
    %v3711 = vunpack.c.l.b16 %v2911
    %v3712 = vunpack.c.l.b16 %v2912
    %v3713 = vunpack.c.l.b16 %v2913
    %v3714 = vunpack.c.l.b16 %v2914
    %v3715 = vunpack.c.l.b16 %v2915
    %v3716 = vunpack.c.l.b16 %v2916
    %v3717 = vunpack.c.l.b16 %v2917
    %v3718 = vunpack.c.l.b16 %v2918
    %v3719 = vunpack.c.l.b16 %v2919
    %v3720 = vunpack.c.l.b16 %v2920
    %v3721 = vunpack.c.l.b16 %v2921
    %v3722 = vunpack.c.l.b16 %v2922
    %v3723 = vunpack.c.l.b16 %v2923
    %v3724 = vunpack.c.l.b16 %v2924
    %v3725 = vunpack.c.l.b16 %v2925
    %v3726 = vunpack.c.l.b16 %v2926
    %v3727 = vunpack.c.l.b16 %v2927
    %v3728 = vunpack.c.l.b16 %v2928
    %v3729 = vunpack.c.l.b16 %v2929
    %v3730 = vunpack.c.l.b16 %v2930
    %v3731 = vunpack.c.l.b16 %v2931
    %v3732 = vunpack.c.l.b16 %v2932
    %v3733 = vunpack.c.l.b16 %v2933
    %v3734 = vunpack.c.l.b16 %v2934
    %v3735 = vunpack.c.l.b16 %v2935
    %v3736 = vunpack.c.l.b16 %v2936
    %v3737 = vunpack.c.l.b16 %v2937
    %v3738 = vunpack.c.l.b16 %v2938
    %v3739 = vunpack.c.l.b16 %v2939
    %v3740 = vunpack.c.l.b16 %v2940
    %v3741 = vunpack.c.l.b16 %v2941
    %v3742 = vunpack.c.l.b16 %v2942
    %v3743 = vunpack.c.l.b16 %v2943
    %v3744 = vunpack.c.l.b16 %v2944
    %v3745 = vunpack.c.l.b16 %v2945
    %v3746 = vunpack.c.l.b16 %v2946
    %v3747 = vunpack.c.l.b16 %v2947
    %v3748 = vunpack.c.l.b16 %v2948
    %v3749 = vunpack.c.l.b16 %v2949
    %v3750 = vunpack.c.l.b16 %v2950
    %v3751 = vunpack.c.l.b16 %v2951
    %v3752 = vunpack.c.l.b16 %v2952
    %v3753 = vunpack.c.l.b16 %v2953
    %v3754 = vunpack.c.l.b16 %v2954
    %v3755 = vunpack.c.l.b16 %v2955
    %v3756 = vunpack.c.l.b16 %v2956
    %v3757 = vunpack.c.l.b16 %v2957
    %v3758 = vunpack.c.l.b16 %v2958
    %v3759 = vunpack.c.l.b16 %v2959
    %v3760 = vunpack.c.l.b16 %v2960
    %v3761 = vunpack.c.l.b16 %v2961
    %v3762 = vunpack.c.l.b16 %v2962
    %v3763 = vunpack.c.l.b16 %v2963
    %v3764 = vunpack.c.l.b16 %v2964
    %v3765 = vunpack.c.l.b16 %v2965
    %v3766 = vunpack.c.l.b16 %v2966
    %v3767 = vunpack.c.l.b16 %v2967
    %v3768 = vunpack.c.l.b16 %v2968
    %v3769 = vunpack.c.l.b16 %v2969
    %v3770 = vunpack.c.l.b16 %v2970
    %v3771 = vunpack.c.l.b16 %v2971
    %v3772 = vunpack.c.l.b16 %v2972
    %v3773 = vunpack.c.l.b16 %v2973
    %v3774 = vunpack.c.l.b16 %v2974
    %v3775 = vunpack.c.l.b16 %v2975
    %v3776 = vunpack.c.l.b16 %v2976
    %v3777 = vunpack.c.l.b16 %v2977
    %v3778 = vunpack.c.l.b16 %v2978
    %v3779 = vunpack.c.l.b16 %v2979
    %v3780 = vunpack.c.l.b16 %v2980
    %v3781 = vunpack.c.l.b16 %v2981
    %v3782 = vunpack.c.l.b16 %v2982
    %v3783 = vunpack.c.l.b16 %v2983
    %v3784 = vunpack.c.l.b16 %v2984
    %v3785 = vunpack.c.l.b16 %v2985
    %v3786 = vunpack.c.l.b16 %v2986
    %v3787 = vunpack.c.l.b16 %v2987
    %v3788 = vunpack.c.l.b16 %v2988
    %v3789 = vunpack.c.l.b16 %v2989
    %v3790 = vunpack.c.l.b16 %v2990
    %v3791 = vunpack.c.l.b16 %v2991
    %v3792 = vunpack.c.l.b16 %v2992
    %v3793 = vunpack.c.l.b16 %v2993
    %v3794 = vunpack.c.l.b16 %v2994
    %v3795 = vunpack.c.l.b16 %v2995
    %v3796 = vunpack.c.l.b16 %v2996
    %v3797 = vunpack.c.l.b16 %v2997
    %v3798 = vunpack.c.l.b16 %v2998
    %v3799 = vunpack.c.l.b16 %v2999
    %v3800 = vunpack.c.l.b16 %v3000
    %v3801 = vunpack.c.l.b16 %v3001
    %v3802 = vunpack.c.l.b16 %v3002
    %v3803 = vpack.c.b16 %v3404, %v3403
    %v3804 = vpack.c.b16 %v3406, %v3405
    %v3805 = vpack.c.b16 %v3408, %v3407
    %v3806 = vpack.c.b16 %v3410, %v3409
    %v3807 = vpack.c.b16 %v3412, %v3411
    %v3808 = vpack.c.b16 %v3414, %v3413
    %v3809 = vpack.c.b16 %v3416, %v3415
    %v3810 = vpack.c.b16 %v3418, %v3417
    %v3811 = vpack.c.b16 %v3420, %v3419
    %v3812 = vpack.c.b16 %v3422, %v3421
    %v3813 = vpack.c.b16 %v3424, %v3423
    %v3814 = vpack.c.b16 %v3426, %v3425
    %v3815 = vpack.c.b16 %v3428, %v3427
    %v3816 = vpack.c.b16 %v3430, %v3429
    %v3817 = vpack.c.b16 %v3432, %v3431
    %v3818 = vpack.c.b16 %v3434, %v3433
    %v3819 = vpack.c.b16 %v3436, %v3435
    %v3820 = vpack.c.b16 %v3438, %v3437
    %v3821 = vpack.c.b16 %v3440, %v3439
    %v3822 = vpack.c.b16 %v3442, %v3441
    %v3823 = vpack.c.b16 %v3444, %v3443
    %v3824 = vpack.c.b16 %v3446, %v3445
    %v3825 = vpack.c.b16 %v3448, %v3447
    %v3826 = vpack.c.b16 %v3450, %v3449
    %v3827 = vpack.c.b16 %v3452, %v3451
    %v3828 = vpack.c.b16 %v3454, %v3453
    %v3829 = vpack.c.b16 %v3456, %v3455
    %v3830 = vpack.c.b16 %v3458, %v3457
    %v3831 = vpack.c.b16 %v3460, %v3459
    %v3832 = vpack.c.b16 %v3462, %v3461
    %v3833 = vpack.c.b16 %v3464, %v3463
    %v3834 = vpack.c.b16 %v3466, %v3465
    %v3835 = vpack.c.b16 %v3468, %v3467
    %v3836 = vpack.c.b16 %v3470, %v3469
    %v3837 = vpack.c.b16 %v3472, %v3471
    %v3838 = vpack.c.b16 %v3474, %v3473
    %v3839 = vpack.c.b16 %v3476, %v3475
    %v3840 = vpack.c.b16 %v3478, %v3477
    %v3841 = vpack.c.b16 %v3480, %v3479
    %v3842 = vpack.c.b16 %v3482, %v3481
    %v3843 = vpack.c.b16 %v3484, %v3483
    %v3844 = vpack.c.b16 %v3486, %v3485
    %v3845 = vpack.c.b16 %v3488, %v3487
    %v3846 = vpack.c.b16 %v3490, %v3489
    %v3847 = vpack.c.b16 %v3492, %v3491
    %v3848 = vpack.c.b16 %v3494, %v3493
    %v3849 = vpack.c.b16 %v3496, %v3495
    %v3850 = vpack.c.b16 %v3498, %v3497
    %v3851 = vpack.c.b16 %v3500, %v3499
    %v3852 = vpack.c.b16 %v3502, %v3501
    %v3853 = vpack.c.b16 %v3504, %v3503
    %v3854 = vpack.c.b16 %v3506, %v3505
    %v3855 = vpack.c.b16 %v3508, %v3507
    %v3856 = vpack.c.b16 %v3510, %v3509
    %v3857 = vpack.c.b16 %v3512, %v3511
    %v3858 = vpack.c.b16 %v3514, %v3513
    %v3859 = vpack.c.b16 %v3516, %v3515
    %v3860 = vpack.c.b16 %v3518, %v3517
    %v3861 = vpack.c.b16 %v3520, %v3519
    %v3862 = vpack.c.b16 %v3522, %v3521
    %v3863 = vpack.c.b16 %v3524, %v3523
    %v3864 = vpack.c.b16 %v3526, %v3525
    %v3865 = vpack.c.b16 %v3528, %v3527
    %v3866 = vpack.c.b16 %v3530, %v3529
    %v3867 = vpack.c.b16 %v3532, %v3531
    %v3868 = vpack.c.b16 %v3534, %v3533
    %v3869 = vpack.c.b16 %v3536, %v3535
    %v3870 = vpack.c.b16 %v3538, %v3537
    %v3871 = vpack.c.b16 %v3540, %v3539
    %v3872 = vpack.c.b16 %v3542, %v3541
    %v3873 = vpack.c.b16 %v3544, %v3543
    %v3874 = vpack.c.b16 %v3546, %v3545
    %v3875 = vpack.c.b16 %v3548, %v3547
    %v3876 = vpack.c.b16 %v3550, %v3549
    %v3877 = vpack.c.b16 %v3552, %v3551
    %v3878 = vpack.c.b16 %v3554, %v3553
    %v3879 = vpack.c.b16 %v3556, %v3555
    %v3880 = vpack.c.b16 %v3558, %v3557
    %v3881 = vpack.c.b16 %v3560, %v3559
    %v3882 = vpack.c.b16 %v3562, %v3561
    %v3883 = vpack.c.b16 %v3564, %v3563
    %v3884 = vpack.c.b16 %v3566, %v3565
    %v3885 = vpack.c.b16 %v3568, %v3567
    %v3886 = vpack.c.b16 %v3570, %v3569
    %v3887 = vpack.c.b16 %v3572, %v3571
    %v3888 = vpack.c.b16 %v3574, %v3573
    %v3889 = vpack.c.b16 %v3576, %v3575
    %v3890 = vpack.c.b16 %v3578, %v3577
    %v3891 = vpack.c.b16 %v3580, %v3579
    %v3892 = vpack.c.b16 %v3582, %v3581
    %v3893 = vpack.c.b16 %v3584, %v3583
    %v3894 = vpack.c.b16 %v3586, %v3585
    %v3895 = vpack.c.b16 %v3588, %v3587
    %v3896 = vpack.c.b16 %v3590, %v3589
    %v3897 = vpack.c.b16 %v3592, %v3591
    %v3898 = vpack.c.b16 %v3594, %v3593
    %v3899 = vpack.c.b16 %v3596, %v3595
    %v3900 = vpack.c.b16 %v3598, %v3597
    %v3901 = vpack.c.b16 %v3600, %v3599
    %v3902 = vpack.c.b16 %v3602, %v3601
    %v3903 = vpack.c.b16 %v3604, %v3603
    %v3904 = vpack.c.b16 %v3606, %v3605
    %v3905 = vpack.c.b16 %v3608, %v3607
    %v3906 = vpack.c.b16 %v3610, %v3609
    %v3907 = vpack.c.b16 %v3612, %v3611
    %v3908 = vpack.c.b16 %v3614, %v3613
    %v3909 = vpack.c.b16 %v3616, %v3615
    %v3910 = vpack.c.b16 %v3618, %v3617
    %v3911 = vpack.c.b16 %v3620, %v3619
    %v3912 = vpack.c.b16 %v3622, %v3621
    %v3913 = vpack.c.b16 %v3624, %v3623
    %v3914 = vpack.c.b16 %v3626, %v3625
    %v3915 = vpack.c.b16 %v3628, %v3627
    %v3916 = vpack.c.b16 %v3630, %v3629
    %v3917 = vpack.c.b16 %v3632, %v3631
    %v3918 = vpack.c.b16 %v3634, %v3633
    %v3919 = vpack.c.b16 %v3636, %v3635
    %v3920 = vpack.c.b16 %v3638, %v3637
    %v3921 = vpack.c.b16 %v3640, %v3639
    %v3922 = vpack.c.b16 %v3642, %v3641
    %v3923 = vpack.c.b16 %v3644, %v3643
    %v3924 = vpack.c.b16 %v3646, %v3645
    %v3925 = vpack.c.b16 %v3648, %v3647
    %v3926 = vpack.c.b16 %v3650, %v3649
    %v3927 = vpack.c.b16 %v3652, %v3651
    %v3928 = vpack.c.b16 %v3654, %v3653
    %v3929 = vpack.c.b16 %v3656, %v3655
    %v3930 = vpack.c.b16 %v3658, %v3657
    %v3931 = vpack.c.b16 %v3660, %v3659
    %v3932 = vpack.c.b16 %v3662, %v3661
    %v3933 = vpack.c.b16 %v3664, %v3663
    %v3934 = vpack.c.b16 %v3666, %v3665
    %v3935 = vpack.c.b16 %v3668, %v3667
    %v3936 = vpack.c.b16 %v3670, %v3669
    %v3937 = vpack.c.b16 %v3672, %v3671
    %v3938 = vpack.c.b16 %v3674, %v3673
    %v3939 = vpack.c.b16 %v3676, %v3675
    %v3940 = vpack.c.b16 %v3678, %v3677
    %v3941 = vpack.c.b16 %v3680, %v3679
    %v3942 = vpack.c.b16 %v3682, %v3681
    %v3943 = vpack.c.b16 %v3684, %v3683
    %v3944 = vpack.c.b16 %v3686, %v3685
    %v3945 = vpack.c.b16 %v3688, %v3687
    %v3946 = vpack.c.b16 %v3690, %v3689
    %v3947 = vpack.c.b16 %v3692, %v3691
    %v3948 = vpack.c.b16 %v3694, %v3693
    %v3949 = vpack.c.b16 %v3696, %v3695
    %v3950 = vpack.c.b16 %v3698, %v3697
    %v3951 = vpack.c.b16 %v3700, %v3699
    %v3952 = vpack.c.b16 %v3702, %v3701
    %v3953 = vpack.c.b16 %v3704, %v3703
    %v3954 = vpack.c.b16 %v3706, %v3705
    %v3955 = vpack.c.b16 %v3708, %v3707
    %v3956 = vpack.c.b16 %v3710, %v3709
    %v3957 = vpack.c.b16 %v3712, %v3711
    %v3958 = vpack.c.b16 %v3714, %v3713
    %v3959 = vpack.c.b16 %v3716, %v3715
    %v3960 = vpack.c.b16 %v3718, %v3717
    %v3961 = vpack.c.b16 %v3720, %v3719
    %v3962 = vpack.c.b16 %v3722, %v3721
    %v3963 = vpack.c.b16 %v3724, %v3723
    %v3964 = vpack.c.b16 %v3726, %v3725
    %v3965 = vpack.c.b16 %v3728, %v3727
    %v3966 = vpack.c.b16 %v3730, %v3729
    %v3967 = vpack.c.b16 %v3732, %v3731
    %v3968 = vpack.c.b16 %v3734, %v3733
    %v3969 = vpack.c.b16 %v3736, %v3735
    %v3970 = vpack.c.b16 %v3738, %v3737
    %v3971 = vpack.c.b16 %v3740, %v3739
    %v3972 = vpack.c.b16 %v3742, %v3741
    %v3973 = vpack.c.b16 %v3744, %v3743
    %v3974 = vpack.c.b16 %v3746, %v3745
    %v3975 = vpack.c.b16 %v3748, %v3747
    %v3976 = vpack.c.b16 %v3750, %v3749
    %v3977 = vpack.c.b16 %v3752, %v3751
    %v3978 = vpack.c.b16 %v3754, %v3753
    %v3979 = vpack.c.b16 %v3756, %v3755
    %v3980 = vpack.c.b16 %v3758, %v3757
    %v3981 = vpack.c.b16 %v3760, %v3759
    %v3982 = vpack.c.b16 %v3762, %v3761
    %v3983 = vpack.c.b16 %v3764, %v3763
    %v3984 = vpack.c.b16 %v3766, %v3765
    %v3985 = vpack.c.b16 %v3768, %v3767
    %v3986 = vpack.c.b16 %v3770, %v3769
    %v3987 = vpack.c.b16 %v3772, %v3771
    %v3988 = vpack.c.b16 %v3774, %v3773
    %v3989 = vpack.c.b16 %v3776, %v3775
    %v3990 = vpack.c.b16 %v3778, %v3777
    %v3991 = vpack.c.b16 %v3780, %v3779
    %v3992 = vpack.c.b16 %v3782, %v3781
    %v3993 = vpack.c.b16 %v3784, %v3783
    %v3994 = vpack.c.b16 %v3786, %v3785
    %v3995 = vpack.c.b16 %v3788, %v3787
    %v3996 = vpack.c.b16 %v3790, %v3789
    %v3997 = vpack.c.b16 %v3792, %v3791
    %v3998 = vpack.c.b16 %v3794, %v3793
    %v3999 = vpack.c.b16 %v3796, %v3795
    %v4000 = vpack.c.b16 %v3798, %v3797
    %v4001 = vpack.c.b16 %v3800, %v3799
    %v4002 = vpack.c.b16 %v3802, %v3801
    %4203 = vmatprep.subr.bf16.mxu0 0
    %4204 = vmatpush1.bf16.msra.mxu0 %v3803
    %4205 = vmatprep.subr.bf16.mxu0 0
    %4206 = vmatpush1.bf16.msra.mxu0 %v3804
    %4207 = vmatprep.subr.bf16.mxu0 0
    %4208 = vmatpush1.bf16.msra.mxu0 %v3805
    %4209 = vmatprep.subr.bf16.mxu0 0
    %4210 = vmatpush1.bf16.msra.mxu0 %v3806
    %4211 = vmatprep.subr.bf16.mxu0 0
    %4212 = vmatpush1.bf16.msra.mxu0 %v3807
    %4213 = vmatprep.subr.bf16.mxu0 0
    %4214 = vmatpush1.bf16.msra.mxu0 %v3808
    %4215 = vmatprep.subr.bf16.mxu0 0
    %4216 = vmatpush1.bf16.msra.mxu0 %v3809
    %4217 = vmatprep.subr.bf16.mxu0 0
    %4218 = vmatpush1.bf16.msra.mxu0 %v3810
    %4219 = vmatprep.subr.bf16.mxu0 0
    %4220 = vmatpush1.bf16.msra.mxu0 %v3811
    %4221 = vmatprep.subr.bf16.mxu0 0
    %4222 = vmatpush1.bf16.msra.mxu0 %v3812
    %4223 = vmatprep.subr.bf16.mxu0 0
    %4224 = vmatpush1.bf16.msra.mxu0 %v3813
    %4225 = vmatprep.subr.bf16.mxu0 0
    %4226 = vmatpush1.bf16.msra.mxu0 %v3814
    %4227 = vmatprep.subr.bf16.mxu0 0
    %4228 = vmatpush1.bf16.msra.mxu0 %v3815
    %4229 = vmatprep.subr.bf16.mxu0 0
    %4230 = vmatpush1.bf16.msra.mxu0 %v3816
    %4231 = vmatprep.subr.bf16.mxu0 0
    %4232 = vmatpush1.bf16.msra.mxu0 %v3817
    %4233 = vmatprep.subr.bf16.mxu0 0
    %4234 = vmatpush1.bf16.msra.mxu0 %v3818
    %4235 = vmatprep.mubr.bf16.mxu0 %v2164
    %4236 = vmatmul.mubr.bf16.gmra.mrb[0].mxu0 %v2059
    %v4237 = vpop.f32.mrb[0].mxu0
    %v4238 = vadd.f32 0.0, %v4237
    %v4239 = vpop.f32.mrb[0].mxu0
    %v4240 = vpop.f32.mrb[0].mxu0
    %v4241 = vadd.f32 0.0, %v4240
    %v4242 = vpop.f32.mrb[0].mxu0
    %4243 = vmatprep.mubr.bf16.mxu0 %v2165
    %4244 = vmatmul.mubr.bf16.gmra.mrb[0].mxu0 %v2060
    %v4245 = vpop.f32.mrb[0].mxu0
    %v4246 = vadd.f32 0.0, %v4245
    %v4247 = vpop.f32.mrb[0].mxu0
    %v4248 = vpop.f32.mrb[0].mxu0
    %v4249 = vadd.f32 0.0, %v4248
    %v4250 = vpop.f32.mrb[0].mxu0
    %4251 = vmatprep.mubr.bf16.mxu0 %v2166
    %4252 = vmatmul.mubr.bf16.gmra.mrb[0].mxu0 %v2061
    %v4253 = vpop.f32.mrb[0].mxu0
    %v4254 = vadd.f32 0.0, %v4253
    %v4255 = vpop.f32.mrb[0].mxu0
    %v4256 = vpop.f32.mrb[0].mxu0
    %v4257 = vadd.f32 0.0, %v4256
    %v4258 = vpop.f32.mrb[0].mxu0
    %4259 = vmatprep.mubr.bf16.mxu0 %v2167
    %4260 = vmatmul.mubr.bf16.gmra.mrb[0].mxu0 %v2062
    %v4261 = vpop.f32.mrb[0].mxu0
    %v4262 = vadd.f32 0.0, %v4261
    %v4263 = vpop.f32.mrb[0].mxu0
    %v4264 = vpop.f32.mrb[0].mxu0
    %v4265 = vadd.f32 0.0, %v4264
    %v4266 = vpop.f32.mrb[0].mxu0
    %4267 = vmatprep.mubr.bf16.mxu0 %v2168
    %4268 = vmatmul.mubr.bf16.gmra.mrb[0].mxu0 %v2063
    %v4269 = vpop.f32.mrb[0].mxu0
    %v4270 = vadd.f32 0.0, %v4269
    %v4271 = vpop.f32.mrb[0].mxu0
    %v4272 = vpop.f32.mrb[0].mxu0
    %v4273 = vadd.f32 0.0, %v4272
    %v4274 = vpop.f32.mrb[0].mxu0
    %4275 = vmatprep.mubr.bf16.mxu0 %v2169
    %4276 = vmatmul.mubr.bf16.gmra.mrb[0].mxu0 %v2064
    %v4277 = vpop.f32.mrb[0].mxu0
    %v4278 = vadd.f32 0.0, %v4277
    %v4279 = vpop.f32.mrb[0].mxu0
    %v4280 = vpop.f32.mrb[0].mxu0
    %v4281 = vadd.f32 0.0, %v4280
    %v4282 = vpop.f32.mrb[0].mxu0
    %4283 = vmatprep.mubr.bf16.mxu0 %v2170
    %4284 = vmatmul.mubr.bf16.gmra.mrb[0].mxu0 %v2065
    %v4285 = vpop.f32.mrb[0].mxu0
    %v4286 = vadd.f32 0.0, %v4285
    %v4287 = vpop.f32.mrb[0].mxu0
    %v4288 = vpop.f32.mrb[0].mxu0
    %v4289 = vadd.f32 0.0, %v4288
    %v4290 = vpop.f32.mrb[0].mxu0
    %4291 = vmatprep.mubr.bf16.mxu0 %v2171
    %4292 = vmatmul.mubr.bf16.gmra.mrb[0].mxu0 %v2066
    %v4293 = vpop.f32.mrb[0].mxu0
    %v4294 = vadd.f32 0.0, %v4293
    %v4295 = vpop.f32.mrb[0].mxu0
    %v4296 = vpop.f32.mrb[0].mxu0
    %v4297 = vadd.f32 0.0, %v4296
    %v4298 = vpop.f32.mrb[0].mxu0
    %4299 = vdwg.mxu0
    %4300 = vmatprep.subr.bf16.mxu0 0
    %4301 = vmatpush1.bf16.msra.mxu0 %v3819
    %4302 = vmatprep.subr.bf16.mxu0 0
    %4303 = vmatpush1.bf16.msra.mxu0 %v3820
    %4304 = vmatprep.subr.bf16.mxu0 0
    %4305 = vmatpush1.bf16.msra.mxu0 %v3821
    %4306 = vmatprep.subr.bf16.mxu0 0
    %4307 = vmatpush1.bf16.msra.mxu0 %v3822
    %4308 = vmatprep.subr.bf16.mxu0 0
    %4309 = vmatpush1.bf16.msra.mxu0 %v3823
    %4310 = vmatprep.subr.bf16.mxu0 0
    %4311 = vmatpush1.bf16.msra.mxu0 %v3824
    %4312 = vmatprep.subr.bf16.mxu0 0
    %4313 = vmatpush1.bf16.msra.mxu0 %v3825
    %4314 = vmatprep.subr.bf16.mxu0 0
    %4315 = vmatpush1.bf16.msra.mxu0 %v3826
    %4316 = vmatprep.subr.bf16.mxu0 0
    %4317 = vmatpush1.bf16.msra.mxu0 %v3827
    %4318 = vmatprep.subr.bf16.mxu0 0
    %4319 = vmatpush1.bf16.msra.mxu0 %v3828
    %4320 = vmatprep.subr.bf16.mxu0 0
    %4321 = vmatpush1.bf16.msra.mxu0 %v3829
    %4322 = vmatprep.subr.bf16.mxu0 0
    %4323 = vmatpush1.bf16.msra.mxu0 %v3830
    %4324 = vmatprep.subr.bf16.mxu0 0
    %4325 = vmatpush1.bf16.msra.mxu0 %v3831
    %4326 = vmatprep.subr.bf16.mxu0 0
    %4327 = vmatpush1.bf16.msra.mxu0 %v3832
    %4328 = vmatprep.subr.bf16.mxu0 0
    %4329 = vmatpush1.bf16.msra.mxu0 %v3833
    %4330 = vmatprep.subr.bf16.mxu0 0
    %4331 = vmatpush1.bf16.msra.mxu0 %v3834
    %4332 = vmatprep.mubr.bf16.mxu0 %v2309
    %4333 = vmatmul.mubr.bf16.gmra.mrb[0].mxu0 %v2237
    %v4334 = vpop.f32.mrb[0].mxu0
    %v4335 = vadd.f32 %v4238, %v4334
    %v4336 = vpop.f32.mrb[0].mxu0
    %v4337 = vpop.f32.mrb[0].mxu0
    %v4338 = vadd.f32 %v4241, %v4337
    %v4339 = vpop.f32.mrb[0].mxu0
    %4340 = vmatprep.mubr.bf16.mxu0 %v2310
    %4341 = vmatmul.mubr.bf16.gmra.mrb[0].mxu0 %v2238
    %v4342 = vpop.f32.mrb[0].mxu0
    %v4343 = vadd.f32 %v4246, %v4342
    %v4344 = vpop.f32.mrb[0].mxu0
    %v4345 = vpop.f32.mrb[0].mxu0
    %v4346 = vadd.f32 %v4249, %v4345
    %v4347 = vpop.f32.mrb[0].mxu0
    %4348 = vmatprep.mubr.bf16.mxu0 %v2311
    %4349 = vmatmul.mubr.bf16.gmra.mrb[0].mxu0 %v2239
    %v4350 = vpop.f32.mrb[0].mxu0
    %v4351 = vadd.f32 %v4254, %v4350
    %v4352 = vpop.f32.mrb[0].mxu0
    %v4353 = vpop.f32.mrb[0].mxu0
    %v4354 = vadd.f32 %v4257, %v4353
    %v4355 = vpop.f32.mrb[0].mxu0
    %4356 = vmatprep.mubr.bf16.mxu0 %v2312
    %4357 = vmatmul.mubr.bf16.gmra.mrb[0].mxu0 %v2240
    %v4358 = vpop.f32.mrb[0].mxu0
    %v4359 = vadd.f32 %v4262, %v4358
    %v4360 = vpop.f32.mrb[0].mxu0
    %v4361 = vpop.f32.mrb[0].mxu0
    %v4362 = vadd.f32 %v4265, %v4361
    %v4363 = vpop.f32.mrb[0].mxu0
    %4364 = vmatprep.mubr.bf16.mxu0 %v2313
    %4365 = vmatmul.mubr.bf16.gmra.mrb[0].mxu0 %v2241
    %v4366 = vpop.f32.mrb[0].mxu0
    %v4367 = vadd.f32 %v4270, %v4366
    %v4368 = vpop.f32.mrb[0].mxu0
    %v4369 = vpop.f32.mrb[0].mxu0
    %v4370 = vadd.f32 %v4273, %v4369
    %v4371 = vpop.f32.mrb[0].mxu0
    %4372 = vmatprep.mubr.bf16.mxu0 %v2314
    %4373 = vmatmul.mubr.bf16.gmra.mrb[0].mxu0 %v2242
    %v4374 = vpop.f32.mrb[0].mxu0
    %v4375 = vadd.f32 %v4278, %v4374
    %v4376 = vpop.f32.mrb[0].mxu0
    %v4377 = vpop.f32.mrb[0].mxu0
    %v4378 = vadd.f32 %v4281, %v4377
    %v4379 = vpop.f32.mrb[0].mxu0
    %4380 = vmatprep.mubr.bf16.mxu0 %v2315
    %4381 = vmatmul.mubr.bf16.gmra.mrb[0].mxu0 %v2243
    %v4382 = vpop.f32.mrb[0].mxu0
    %v4383 = vadd.f32 %v4286, %v4382
    %v4384 = vpop.f32.mrb[0].mxu0
    %v4385 = vpop.f32.mrb[0].mxu0
    %v4386 = vadd.f32 %v4289, %v4385
    %v4387 = vpop.f32.mrb[0].mxu0
    %4388 = vmatprep.mubr.bf16.mxu0 %v2316
    %4389 = vmatmul.mubr.bf16.gmra.mrb[0].mxu0 %v2244
    %v4390 = vpop.f32.mrb[0].mxu0
    %v4391 = vadd.f32 %v4294, %v4390
    %v4392 = vpop.f32.mrb[0].mxu0
    %v4393 = vpop.f32.mrb[0].mxu0
    %v4394 = vadd.f32 %v4297, %v4393
    %v4395 = vpop.f32.mrb[0].mxu0
    %4396 = vdwg.mxu0
    %4397 = vmatprep.subr.bf16.mxu0 0
    %4398 = vmatpush1.bf16.msra.mxu0 %v3835
    %4399 = vmatprep.subr.bf16.mxu0 0
    %4400 = vmatpush1.bf16.msra.mxu0 %v3836
    %4401 = vmatprep.subr.bf16.mxu0 0
    %4402 = vmatpush1.bf16.msra.mxu0 %v3837
    %4403 = vmatprep.subr.bf16.mxu0 0
    %4404 = vmatpush1.bf16.msra.mxu0 %v3838
    %4405 = vmatprep.subr.bf16.mxu0 0
    %4406 = vmatpush1.bf16.msra.mxu0 %v3839
    %4407 = vmatprep.subr.bf16.mxu0 0
    %4408 = vmatpush1.bf16.msra.mxu0 %v3840
    %4409 = vmatprep.subr.bf16.mxu0 0
    %4410 = vmatpush1.bf16.msra.mxu0 %v3841
    %4411 = vmatprep.subr.bf16.mxu0 0
    %4412 = vmatpush1.bf16.msra.mxu0 %v3842
    %4413 = vmatprep.subr.bf16.mxu0 0
    %4414 = vmatpush1.bf16.msra.mxu0 %v3843
    %4415 = vmatprep.subr.bf16.mxu0 0
    %4416 = vmatpush1.bf16.msra.mxu0 %v3844
    %4417 = vmatprep.subr.bf16.mxu0 0
    %4418 = vmatpush1.bf16.msra.mxu0 %v3845
    %4419 = vmatprep.subr.bf16.mxu0 0
    %4420 = vmatpush1.bf16.msra.mxu0 %v3846
    %4421 = vmatprep.subr.bf16.mxu0 0
    %4422 = vmatpush1.bf16.msra.mxu0 %v3847
    %4423 = vmatprep.subr.bf16.mxu0 0
    %4424 = vmatpush1.bf16.msra.mxu0 %v3848
    %4425 = vmatprep.subr.bf16.mxu0 0
    %4426 = vmatpush1.bf16.msra.mxu0 %v3849
    %4427 = vmatprep.subr.bf16.mxu0 0
    %4428 = vmatpush1.bf16.msra.mxu0 %v3850
    %4429 = vmatprep.mubr.bf16.mxu0 %v2389
    %4430 = vmatmul.mubr.bf16.gmra.mrb[0].mxu0 %v2381
    %v4431 = vpop.f32.mrb[0].mxu0
    %v4432 = vadd.f32 %v4335, %v4431
    %v4433 = vpop.f32.mrb[0].mxu0
    %v4434 = vpop.f32.mrb[0].mxu0
    %v4435 = vadd.f32 %v4338, %v4434
    %v4436 = vpop.f32.mrb[0].mxu0
    %4437 = vmatprep.mubr.bf16.mxu0 %v2390
    %4438 = vmatmul.mubr.bf16.gmra.mrb[0].mxu0 %v2382
    %v4439 = vpop.f32.mrb[0].mxu0
    %v4440 = vadd.f32 %v4343, %v4439
    %v4441 = vpop.f32.mrb[0].mxu0
    %v4442 = vpop.f32.mrb[0].mxu0
    %v4443 = vadd.f32 %v4346, %v4442
    %v4444 = vpop.f32.mrb[0].mxu0
    %4445 = vmatprep.mubr.bf16.mxu0 %v2391
    %4446 = vmatmul.mubr.bf16.gmra.mrb[0].mxu0 %v2383
    %v4447 = vpop.f32.mrb[0].mxu0
    %v4448 = vadd.f32 %v4351, %v4447
    %v4449 = vpop.f32.mrb[0].mxu0
    %v4450 = vpop.f32.mrb[0].mxu0
    %v4451 = vadd.f32 %v4354, %v4450
    %v4452 = vpop.f32.mrb[0].mxu0
    %4453 = vmatprep.mubr.bf16.mxu0 %v2392
    %4454 = vmatmul.mubr.bf16.gmra.mrb[0].mxu0 %v2384
    %v4455 = vpop.f32.mrb[0].mxu0
    %v4456 = vadd.f32 %v4359, %v4455
    %v4457 = vpop.f32.mrb[0].mxu0
    %v4458 = vpop.f32.mrb[0].mxu0
    %v4459 = vadd.f32 %v4362, %v4458
    %v4460 = vpop.f32.mrb[0].mxu0
    %4461 = vmatprep.mubr.bf16.mxu0 %v2393
    %4462 = vmatmul.mubr.bf16.gmra.mrb[0].mxu0 %v2385
    %v4463 = vpop.f32.mrb[0].mxu0
    %v4464 = vadd.f32 %v4367, %v4463
    %v4465 = vpop.f32.mrb[0].mxu0
    %v4466 = vpop.f32.mrb[0].mxu0
    %v4467 = vadd.f32 %v4370, %v4466
    %v4468 = vpop.f32.mrb[0].mxu0
    %4469 = vmatprep.mubr.bf16.mxu0 %v2394
    %4470 = vmatmul.mubr.bf16.gmra.mrb[0].mxu0 %v2386
    %v4471 = vpop.f32.mrb[0].mxu0
    %v4472 = vadd.f32 %v4375, %v4471
    %v4473 = vpop.f32.mrb[0].mxu0
    %v4474 = vpop.f32.mrb[0].mxu0
    %v4475 = vadd.f32 %v4378, %v4474
    %v4476 = vpop.f32.mrb[0].mxu0
    %4477 = vmatprep.mubr.bf16.mxu0 %v2395
    %4478 = vmatmul.mubr.bf16.gmra.mrb[0].mxu0 %v2387
    %v4479 = vpop.f32.mrb[0].mxu0
    %v4480 = vadd.f32 %v4383, %v4479
    %v4481 = vpop.f32.mrb[0].mxu0
    %v4482 = vpop.f32.mrb[0].mxu0
    %v4483 = vadd.f32 %v4386, %v4482
    %v4484 = vpop.f32.mrb[0].mxu0
    %4485 = vmatprep.mubr.bf16.mxu0 %v2396
    %4486 = vmatmul.mubr.bf16.gmra.mrb[0].mxu0 %v2388
    %v4487 = vpop.f32.mrb[0].mxu0
    %v4488 = vadd.f32 %v4391, %v4487
    %v4489 = vpop.f32.mrb[0].mxu0
    %v4490 = vpop.f32.mrb[0].mxu0
    %v4491 = vadd.f32 %v4394, %v4490
    %v4492 = vpop.f32.mrb[0].mxu0
    %4493 = vdwg.mxu0
    %4494 = vmatprep.subr.bf16.mxu0 0
    %4495 = vmatpush1.bf16.msra.mxu0 %v3851
    %4496 = vmatprep.subr.bf16.mxu0 0
    %4497 = vmatpush1.bf16.msra.mxu0 %v3852
    %4498 = vmatprep.subr.bf16.mxu0 0
    %4499 = vmatpush1.bf16.msra.mxu0 %v3853
    %4500 = vmatprep.subr.bf16.mxu0 0
    %4501 = vmatpush1.bf16.msra.mxu0 %v3854
    %4502 = vmatprep.subr.bf16.mxu0 0
    %4503 = vmatpush1.bf16.msra.mxu0 %v3855
    %4504 = vmatprep.subr.bf16.mxu0 0
    %4505 = vmatpush1.bf16.msra.mxu0 %v3856
    %4506 = vmatprep.subr.bf16.mxu0 0
    %4507 = vmatpush1.bf16.msra.mxu0 %v3857
    %4508 = vmatprep.subr.bf16.mxu0 0
    %4509 = vmatpush1.bf16.msra.mxu0 %v3858
    %4510 = vmatprep.subr.bf16.mxu0 0
    %4511 = vmatpush1.bf16.msra.mxu0 %v3859
    %4512 = vmatprep.subr.bf16.mxu0 0
    %4513 = vmatpush1.bf16.msra.mxu0 %v3860
    %4514 = vmatprep.subr.bf16.mxu0 0
    %4515 = vmatpush1.bf16.msra.mxu0 %v3861
    %4516 = vmatprep.subr.bf16.mxu0 0
    %4517 = vmatpush1.bf16.msra.mxu0 %v3862
    %4518 = vmatprep.subr.bf16.mxu0 0
    %4519 = vmatpush1.bf16.msra.mxu0 %v3863
    %4520 = vmatprep.subr.bf16.mxu0 0
    %4521 = vmatpush1.bf16.msra.mxu0 %v3864
    %4522 = vmatprep.subr.bf16.mxu0 0
    %4523 = vmatpush1.bf16.msra.mxu0 %v3865
    %4524 = vmatprep.subr.bf16.mxu0 0
    %4525 = vmatpush1.bf16.msra.mxu0 %v3866
    %4526 = vmatprep.mubr.bf16.mxu0 %v2425
    %4527 = vmatmul.mubr.bf16.gmra.mrb[0].mxu0 %v2409
    %v4528 = vpop.f32.mrb[0].mxu0
    %v4529 = vadd.f32 %v4432, %v4528
    %v4530 = vpop.f32.mrb[0].mxu0
    %v4531 = vpop.f32.mrb[0].mxu0
    %v4532 = vadd.f32 %v4435, %v4531
    %v4533 = vpop.f32.mrb[0].mxu0
    %4534 = vmatprep.mubr.bf16.mxu0 %v2426
    %4535 = vmatmul.mubr.bf16.gmra.mrb[0].mxu0 %v2410
    %v4536 = vpop.f32.mrb[0].mxu0
    %v4537 = vadd.f32 %v4440, %v4536
    %v4538 = vpop.f32.mrb[0].mxu0
    %v4539 = vpop.f32.mrb[0].mxu0
    %v4540 = vadd.f32 %v4443, %v4539
    %v4541 = vpop.f32.mrb[0].mxu0
    %4542 = vmatprep.mubr.bf16.mxu0 %v2427
    %4543 = vmatmul.mubr.bf16.gmra.mrb[0].mxu0 %v2411
    %v4544 = vpop.f32.mrb[0].mxu0
    %v4545 = vadd.f32 %v4448, %v4544
    %v4546 = vpop.f32.mrb[0].mxu0
    %v4547 = vpop.f32.mrb[0].mxu0
    %v4548 = vadd.f32 %v4451, %v4547
    %v4549 = vpop.f32.mrb[0].mxu0
    %4550 = vmatprep.mubr.bf16.mxu0 %v2428
    %4551 = vmatmul.mubr.bf16.gmra.mrb[0].mxu0 %v2412
    %v4552 = vpop.f32.mrb[0].mxu0
    %v4553 = vadd.f32 %v4456, %v4552
    %v4554 = vpop.f32.mrb[0].mxu0
    %v4555 = vpop.f32.mrb[0].mxu0
    %v4556 = vadd.f32 %v4459, %v4555
    %v4557 = vpop.f32.mrb[0].mxu0
    %4558 = vmatprep.mubr.bf16.mxu0 %v2429
    %4559 = vmatmul.mubr.bf16.gmra.mrb[0].mxu0 %v2413
    %v4560 = vpop.f32.mrb[0].mxu0
    %v4561 = vadd.f32 %v4464, %v4560
    %v4562 = vpop.f32.mrb[0].mxu0
    %v4563 = vpop.f32.mrb[0].mxu0
    %v4564 = vadd.f32 %v4467, %v4563
    %v4565 = vpop.f32.mrb[0].mxu0
    %4566 = vmatprep.mubr.bf16.mxu0 %v2430
    %4567 = vmatmul.mubr.bf16.gmra.mrb[0].mxu0 %v2414
    %v4568 = vpop.f32.mrb[0].mxu0
    %v4569 = vadd.f32 %v4472, %v4568
    %v4570 = vpop.f32.mrb[0].mxu0
    %v4571 = vpop.f32.mrb[0].mxu0
    %v4572 = vadd.f32 %v4475, %v4571
    %v4573 = vpop.f32.mrb[0].mxu0
    %4574 = vmatprep.mubr.bf16.mxu0 %v2431
    %4575 = vmatmul.mubr.bf16.gmra.mrb[0].mxu0 %v2415
    %v4576 = vpop.f32.mrb[0].mxu0
    %v4577 = vadd.f32 %v4480, %v4576
    %v4578 = vpop.f32.mrb[0].mxu0
    %v4579 = vpop.f32.mrb[0].mxu0
    %v4580 = vadd.f32 %v4483, %v4579
    %v4581 = vpop.f32.mrb[0].mxu0
    %4582 = vmatprep.mubr.bf16.mxu0 %v2432
    %4583 = vmatmul.mubr.bf16.gmra.mrb[0].mxu0 %v2416
    %v4584 = vpop.f32.mrb[0].mxu0
    %v4585 = vadd.f32 %v4488, %v4584
    %v4586 = vpop.f32.mrb[0].mxu0
    %v4587 = vpop.f32.mrb[0].mxu0
    %v4588 = vadd.f32 %v4491, %v4587
    %v4589 = vpop.f32.mrb[0].mxu0
    %4590 = vdwg.mxu0
    %4591 = vmatprep.subr.bf16.mxu0 0
    %4592 = vmatpush1.bf16.msra.mxu0 %v3867
    %4593 = vmatprep.subr.bf16.mxu0 0
    %4594 = vmatpush1.bf16.msra.mxu0 %v3868
    %4595 = vmatprep.subr.bf16.mxu0 0
    %4596 = vmatpush1.bf16.msra.mxu0 %v3869
    %4597 = vmatprep.subr.bf16.mxu0 0
    %4598 = vmatpush1.bf16.msra.mxu0 %v3870
    %4599 = vmatprep.subr.bf16.mxu0 0
    %4600 = vmatpush1.bf16.msra.mxu0 %v3871
    %4601 = vmatprep.subr.bf16.mxu0 0
    %4602 = vmatpush1.bf16.msra.mxu0 %v3872
    %4603 = vmatprep.subr.bf16.mxu0 0
    %4604 = vmatpush1.bf16.msra.mxu0 %v3873
    %4605 = vmatprep.subr.bf16.mxu0 0
    %4606 = vmatpush1.bf16.msra.mxu0 %v3874
    %4607 = vmatprep.subr.bf16.mxu0 0
    %4608 = vmatpush1.bf16.msra.mxu0 %v3875
    %4609 = vmatprep.subr.bf16.mxu0 0
    %4610 = vmatpush1.bf16.msra.mxu0 %v3876
    %4611 = vmatprep.subr.bf16.mxu0 0
    %4612 = vmatpush1.bf16.msra.mxu0 %v3877
    %4613 = vmatprep.subr.bf16.mxu0 0
    %4614 = vmatpush1.bf16.msra.mxu0 %v3878
    %4615 = vmatprep.subr.bf16.mxu0 0
    %4616 = vmatpush1.bf16.msra.mxu0 %v3879
    %4617 = vmatprep.subr.bf16.mxu0 0
    %4618 = vmatpush1.bf16.msra.mxu0 %v3880
    %4619 = vmatprep.subr.bf16.mxu0 0
    %4620 = vmatpush1.bf16.msra.mxu0 %v3881
    %4621 = vmatprep.subr.bf16.mxu0 0
    %4622 = vmatpush1.bf16.msra.mxu0 %v3882
    %4623 = vmatprep.mubr.bf16.mxu0 %v2457
    %4624 = vmatmul.mubr.bf16.gmra.mrb[0].mxu0 %v2441
    %v4625 = vpop.f32.mrb[0].mxu0
    %v4626 = vadd.f32 %v4529, %v4625
    %v4627 = vpop.f32.mrb[0].mxu0
    %v4628 = vpop.f32.mrb[0].mxu0
    %v4629 = vadd.f32 %v4532, %v4628
    %v4630 = vpop.f32.mrb[0].mxu0
    %4631 = vmatprep.mubr.bf16.mxu0 %v2458
    %4632 = vmatmul.mubr.bf16.gmra.mrb[0].mxu0 %v2442
    %v4633 = vpop.f32.mrb[0].mxu0
    %v4634 = vadd.f32 %v4537, %v4633
    %v4635 = vpop.f32.mrb[0].mxu0
    %v4636 = vpop.f32.mrb[0].mxu0
    %v4637 = vadd.f32 %v4540, %v4636
    %v4638 = vpop.f32.mrb[0].mxu0
    %4639 = vmatprep.mubr.bf16.mxu0 %v2459
    %4640 = vmatmul.mubr.bf16.gmra.mrb[0].mxu0 %v2443
    %v4641 = vpop.f32.mrb[0].mxu0
    %v4642 = vadd.f32 %v4545, %v4641
    %v4643 = vpop.f32.mrb[0].mxu0
    %v4644 = vpop.f32.mrb[0].mxu0
    %v4645 = vadd.f32 %v4548, %v4644
    %v4646 = vpop.f32.mrb[0].mxu0
    %4647 = vmatprep.mubr.bf16.mxu0 %v2460
    %4648 = vmatmul.mubr.bf16.gmra.mrb[0].mxu0 %v2444
    %v4649 = vpop.f32.mrb[0].mxu0
    %v4650 = vadd.f32 %v4553, %v4649
    %v4651 = vpop.f32.mrb[0].mxu0
    %v4652 = vpop.f32.mrb[0].mxu0
    %v4653 = vadd.f32 %v4556, %v4652
    %v4654 = vpop.f32.mrb[0].mxu0
    %4655 = vmatprep.mubr.bf16.mxu0 %v2461
    %4656 = vmatmul.mubr.bf16.gmra.mrb[0].mxu0 %v2445
    %v4657 = vpop.f32.mrb[0].mxu0
    %v4658 = vadd.f32 %v4561, %v4657
    %v4659 = vpop.f32.mrb[0].mxu0
    %v4660 = vpop.f32.mrb[0].mxu0
    %v4661 = vadd.f32 %v4564, %v4660
    %v4662 = vpop.f32.mrb[0].mxu0
    %4663 = vmatprep.mubr.bf16.mxu0 %v2462
    %4664 = vmatmul.mubr.bf16.gmra.mrb[0].mxu0 %v2446
    %v4665 = vpop.f32.mrb[0].mxu0
    %v4666 = vadd.f32 %v4569, %v4665
    %v4667 = vpop.f32.mrb[0].mxu0
    %v4668 = vpop.f32.mrb[0].mxu0
    %v4669 = vadd.f32 %v4572, %v4668
    %v4670 = vpop.f32.mrb[0].mxu0
    %4671 = vmatprep.mubr.bf16.mxu0 %v2463
    %4672 = vmatmul.mubr.bf16.gmra.mrb[0].mxu0 %v2447
    %v4673 = vpop.f32.mrb[0].mxu0
    %v4674 = vadd.f32 %v4577, %v4673
    %v4675 = vpop.f32.mrb[0].mxu0
    %v4676 = vpop.f32.mrb[0].mxu0
    %v4677 = vadd.f32 %v4580, %v4676
    %v4678 = vpop.f32.mrb[0].mxu0
    %4679 = vmatprep.mubr.bf16.mxu0 %v2464
    %4680 = vmatmul.mubr.bf16.gmra.mrb[0].mxu0 %v2448
    %v4681 = vpop.f32.mrb[0].mxu0
    %v4682 = vadd.f32 %v4585, %v4681
    %v4683 = vpop.f32.mrb[0].mxu0
    %v4684 = vpop.f32.mrb[0].mxu0
    %v4685 = vadd.f32 %v4588, %v4684
    %v4686 = vpop.f32.mrb[0].mxu0
    %4687 = vdwg.mxu0
    %4688 = vmatprep.subr.bf16.mxu0 0
    %4689 = vmatpush1.bf16.msra.mxu0 %v3883
    %4690 = vmatprep.subr.bf16.mxu0 0
    %4691 = vmatpush1.bf16.msra.mxu0 %v3884
    %4692 = vmatprep.subr.bf16.mxu0 0
    %4693 = vmatpush1.bf16.msra.mxu0 %v3885
    %4694 = vmatprep.subr.bf16.mxu0 0
    %4695 = vmatpush1.bf16.msra.mxu0 %v3886
    %4696 = vmatprep.subr.bf16.mxu0 0
    %4697 = vmatpush1.bf16.msra.mxu0 %v3887
    %4698 = vmatprep.subr.bf16.mxu0 0
    %4699 = vmatpush1.bf16.msra.mxu0 %v3888
    %4700 = vmatprep.subr.bf16.mxu0 0
    %4701 = vmatpush1.bf16.msra.mxu0 %v3889
    %4702 = vmatprep.subr.bf16.mxu0 0
    %4703 = vmatpush1.bf16.msra.mxu0 %v3890
    %4704 = vmatprep.subr.bf16.mxu0 0
    %4705 = vmatpush1.bf16.msra.mxu0 %v3891
    %4706 = vmatprep.subr.bf16.mxu0 0
    %4707 = vmatpush1.bf16.msra.mxu0 %v3892
    %4708 = vmatprep.subr.bf16.mxu0 0
    %4709 = vmatpush1.bf16.msra.mxu0 %v3893
    %4710 = vmatprep.subr.bf16.mxu0 0
    %4711 = vmatpush1.bf16.msra.mxu0 %v3894
    %4712 = vmatprep.subr.bf16.mxu0 0
    %4713 = vmatpush1.bf16.msra.mxu0 %v3895
    %4714 = vmatprep.subr.bf16.mxu0 0
    %4715 = vmatpush1.bf16.msra.mxu0 %v3896
    %4716 = vmatprep.subr.bf16.mxu0 0
    %4717 = vmatpush1.bf16.msra.mxu0 %v3897
    %4718 = vmatprep.subr.bf16.mxu0 0
    %4719 = vmatpush1.bf16.msra.mxu0 %v3898
    %4720 = vmatprep.mubr.bf16.mxu0 %v2165
    %4721 = vmatmul.mubr.bf16.gmra.mrb[0].mxu0 %v2060
    %v4722 = vpop.f32.mrb[0].mxu0
    %v4723 = vadd.f32 %v4626, %v4722
    %v4724 = vpop.f32.mrb[0].mxu0
    %v4725 = vpop.f32.mrb[0].mxu0
    %v4726 = vadd.f32 %v4629, %v4725
    %v4727 = vpop.f32.mrb[0].mxu0
    %4728 = vmatprep.mubr.bf16.mxu0 %v2166
    %4729 = vmatmul.mubr.bf16.gmra.mrb[0].mxu0 %v2061
    %v4730 = vpop.f32.mrb[0].mxu0
    %v4731 = vadd.f32 %v4634, %v4730
    %v4732 = vpop.f32.mrb[0].mxu0
    %v4733 = vpop.f32.mrb[0].mxu0
    %v4734 = vadd.f32 %v4637, %v4733
    %v4735 = vpop.f32.mrb[0].mxu0
    %4736 = vmatprep.mubr.bf16.mxu0 %v2167
    %4737 = vmatmul.mubr.bf16.gmra.mrb[0].mxu0 %v2062
    %v4738 = vpop.f32.mrb[0].mxu0
    %v4739 = vadd.f32 %v4642, %v4738
    %v4740 = vpop.f32.mrb[0].mxu0
    %v4741 = vpop.f32.mrb[0].mxu0
    %v4742 = vadd.f32 %v4645, %v4741
    %v4743 = vpop.f32.mrb[0].mxu0
    %4744 = vmatprep.mubr.bf16.mxu0 %v2479
    %4745 = vmatmul.mubr.bf16.gmra.mrb[0].mxu0 %v2465
    %v4746 = vpop.f32.mrb[0].mxu0
    %v4747 = vadd.f32 %v4650, %v4746
    %v4748 = vpop.f32.mrb[0].mxu0
    %v4749 = vpop.f32.mrb[0].mxu0
    %v4750 = vadd.f32 %v4653, %v4749
    %v4751 = vpop.f32.mrb[0].mxu0
    %4752 = vmatprep.mubr.bf16.mxu0 %v2169
    %4753 = vmatmul.mubr.bf16.gmra.mrb[0].mxu0 %v2064
    %v4754 = vpop.f32.mrb[0].mxu0
    %v4755 = vadd.f32 %v4658, %v4754
    %v4756 = vpop.f32.mrb[0].mxu0
    %v4757 = vpop.f32.mrb[0].mxu0
    %v4758 = vadd.f32 %v4661, %v4757
    %v4759 = vpop.f32.mrb[0].mxu0
    %4760 = vmatprep.mubr.bf16.mxu0 %v2170
    %4761 = vmatmul.mubr.bf16.gmra.mrb[0].mxu0 %v2065
    %v4762 = vpop.f32.mrb[0].mxu0
    %v4763 = vadd.f32 %v4666, %v4762
    %v4764 = vpop.f32.mrb[0].mxu0
    %v4765 = vpop.f32.mrb[0].mxu0
    %v4766 = vadd.f32 %v4669, %v4765
    %v4767 = vpop.f32.mrb[0].mxu0
    %4768 = vmatprep.mubr.bf16.mxu0 %v2171
    %4769 = vmatmul.mubr.bf16.gmra.mrb[0].mxu0 %v2066
    %v4770 = vpop.f32.mrb[0].mxu0
    %v4771 = vadd.f32 %v4674, %v4770
    %v4772 = vpop.f32.mrb[0].mxu0
    %v4773 = vpop.f32.mrb[0].mxu0
    %v4774 = vadd.f32 %v4677, %v4773
    %v4775 = vpop.f32.mrb[0].mxu0
    %4776 = vmatprep.mubr.bf16.mxu0 %v2480
    %4777 = vmatmul.mubr.bf16.gmra.mrb[0].mxu0 %v2466
    %v4778 = vpop.f32.mrb[0].mxu0
    %v4779 = vadd.f32 %v4682, %v4778
    %v4780 = vpop.f32.mrb[0].mxu0
    %v4781 = vpop.f32.mrb[0].mxu0
    %v4782 = vadd.f32 %v4685, %v4781
    %v4783 = vpop.f32.mrb[0].mxu0
    %4784 = vdwg.mxu0
    %4785 = vmatprep.subr.bf16.mxu0 0
    %4786 = vmatpush1.bf16.msra.mxu0 %v3899
    %4787 = vmatprep.subr.bf16.mxu0 0
    %4788 = vmatpush1.bf16.msra.mxu0 %v3900
    %4789 = vmatprep.subr.bf16.mxu0 0
    %4790 = vmatpush1.bf16.msra.mxu0 %v3901
    %4791 = vmatprep.subr.bf16.mxu0 0
    %4792 = vmatpush1.bf16.msra.mxu0 %v3902
    %4793 = vmatprep.subr.bf16.mxu0 0
    %4794 = vmatpush1.bf16.msra.mxu0 %v3903
    %4795 = vmatprep.subr.bf16.mxu0 0
    %4796 = vmatpush1.bf16.msra.mxu0 %v3904
    %4797 = vmatprep.subr.bf16.mxu0 0
    %4798 = vmatpush1.bf16.msra.mxu0 %v3905
    %4799 = vmatprep.subr.bf16.mxu0 0
    %4800 = vmatpush1.bf16.msra.mxu0 %v3906
    %4801 = vmatprep.subr.bf16.mxu0 0
    %4802 = vmatpush1.bf16.msra.mxu0 %v3907
    %4803 = vmatprep.subr.bf16.mxu0 0
    %4804 = vmatpush1.bf16.msra.mxu0 %v3908
    %4805 = vmatprep.subr.bf16.mxu0 0
    %4806 = vmatpush1.bf16.msra.mxu0 %v3909
    %4807 = vmatprep.subr.bf16.mxu0 0
    %4808 = vmatpush1.bf16.msra.mxu0 %v3910
    %4809 = vmatprep.subr.bf16.mxu0 0
    %4810 = vmatpush1.bf16.msra.mxu0 %v3911
    %4811 = vmatprep.subr.bf16.mxu0 0
    %4812 = vmatpush1.bf16.msra.mxu0 %v3912
    %4813 = vmatprep.subr.bf16.mxu0 0
    %4814 = vmatpush1.bf16.msra.mxu0 %v3913
    %4815 = vmatprep.subr.bf16.mxu0 0
    %4816 = vmatpush1.bf16.msra.mxu0 %v3914
    %4817 = vmatprep.mubr.bf16.mxu0 %v2310
    %4818 = vmatmul.mubr.bf16.gmra.mrb[0].mxu0 %v2238
    %v4819 = vpop.f32.mrb[0].mxu0
    %v4820 = vadd.f32 %v4723, %v4819
    %v4821 = vpop.f32.mrb[0].mxu0
    %v4822 = vpop.f32.mrb[0].mxu0
    %v4823 = vadd.f32 %v4726, %v4822
    %v4824 = vpop.f32.mrb[0].mxu0
    %4825 = vmatprep.mubr.bf16.mxu0 %v2311
    %4826 = vmatmul.mubr.bf16.gmra.mrb[0].mxu0 %v2239
    %v4827 = vpop.f32.mrb[0].mxu0
    %v4828 = vadd.f32 %v4731, %v4827
    %v4829 = vpop.f32.mrb[0].mxu0
    %v4830 = vpop.f32.mrb[0].mxu0
    %v4831 = vadd.f32 %v4734, %v4830
    %v4832 = vpop.f32.mrb[0].mxu0
    %4833 = vmatprep.mubr.bf16.mxu0 %v2312
    %4834 = vmatmul.mubr.bf16.gmra.mrb[0].mxu0 %v2240
    %v4835 = vpop.f32.mrb[0].mxu0
    %v4836 = vadd.f32 %v4739, %v4835
    %v4837 = vpop.f32.mrb[0].mxu0
    %v4838 = vpop.f32.mrb[0].mxu0
    %v4839 = vadd.f32 %v4742, %v4838
    %v4840 = vpop.f32.mrb[0].mxu0
    %4841 = vmatprep.mubr.bf16.mxu0 %v2499
    %4842 = vmatmul.mubr.bf16.gmra.mrb[0].mxu0 %v2489
    %v4843 = vpop.f32.mrb[0].mxu0
    %v4844 = vadd.f32 %v4747, %v4843
    %v4845 = vpop.f32.mrb[0].mxu0
    %v4846 = vpop.f32.mrb[0].mxu0
    %v4847 = vadd.f32 %v4750, %v4846
    %v4848 = vpop.f32.mrb[0].mxu0
    %4849 = vmatprep.mubr.bf16.mxu0 %v2314
    %4850 = vmatmul.mubr.bf16.gmra.mrb[0].mxu0 %v2242
    %v4851 = vpop.f32.mrb[0].mxu0
    %v4852 = vadd.f32 %v4755, %v4851
    %v4853 = vpop.f32.mrb[0].mxu0
    %v4854 = vpop.f32.mrb[0].mxu0
    %v4855 = vadd.f32 %v4758, %v4854
    %v4856 = vpop.f32.mrb[0].mxu0
    %4857 = vmatprep.mubr.bf16.mxu0 %v2315
    %4858 = vmatmul.mubr.bf16.gmra.mrb[0].mxu0 %v2243
    %v4859 = vpop.f32.mrb[0].mxu0
    %v4860 = vadd.f32 %v4763, %v4859
    %v4861 = vpop.f32.mrb[0].mxu0
    %v4862 = vpop.f32.mrb[0].mxu0
    %v4863 = vadd.f32 %v4766, %v4862
    %v4864 = vpop.f32.mrb[0].mxu0
    %4865 = vmatprep.mubr.bf16.mxu0 %v2316
    %4866 = vmatmul.mubr.bf16.gmra.mrb[0].mxu0 %v2244
    %v4867 = vpop.f32.mrb[0].mxu0
    %v4868 = vadd.f32 %v4771, %v4867
    %v4869 = vpop.f32.mrb[0].mxu0
    %v4870 = vpop.f32.mrb[0].mxu0
    %v4871 = vadd.f32 %v4774, %v4870
    %v4872 = vpop.f32.mrb[0].mxu0
    %4873 = vmatprep.mubr.bf16.mxu0 %v2500
    %4874 = vmatmul.mubr.bf16.gmra.mrb[0].mxu0 %v2490
    %v4875 = vpop.f32.mrb[0].mxu0
    %v4876 = vadd.f32 %v4779, %v4875
    %v4877 = vpop.f32.mrb[0].mxu0
    %v4878 = vpop.f32.mrb[0].mxu0
    %v4879 = vadd.f32 %v4782, %v4878
    %v4880 = vpop.f32.mrb[0].mxu0
    %4881 = vdwg.mxu0
    %4882 = vmatprep.subr.bf16.mxu0 0
    %4883 = vmatpush1.bf16.msra.mxu0 %v3915
    %4884 = vmatprep.subr.bf16.mxu0 0
    %4885 = vmatpush1.bf16.msra.mxu0 %v3916
    %4886 = vmatprep.subr.bf16.mxu0 0
    %4887 = vmatpush1.bf16.msra.mxu0 %v3917
    %4888 = vmatprep.subr.bf16.mxu0 0
    %4889 = vmatpush1.bf16.msra.mxu0 %v3918
    %4890 = vmatprep.subr.bf16.mxu0 0
    %4891 = vmatpush1.bf16.msra.mxu0 %v3919
    %4892 = vmatprep.subr.bf16.mxu0 0
    %4893 = vmatpush1.bf16.msra.mxu0 %v3920
    %4894 = vmatprep.subr.bf16.mxu0 0
    %4895 = vmatpush1.bf16.msra.mxu0 %v3921
    %4896 = vmatprep.subr.bf16.mxu0 0
    %4897 = vmatpush1.bf16.msra.mxu0 %v3922
    %4898 = vmatprep.subr.bf16.mxu0 0
    %4899 = vmatpush1.bf16.msra.mxu0 %v3923
    %4900 = vmatprep.subr.bf16.mxu0 0
    %4901 = vmatpush1.bf16.msra.mxu0 %v3924
    %4902 = vmatprep.subr.bf16.mxu0 0
    %4903 = vmatpush1.bf16.msra.mxu0 %v3925
    %4904 = vmatprep.subr.bf16.mxu0 0
    %4905 = vmatpush1.bf16.msra.mxu0 %v3926
    %4906 = vmatprep.subr.bf16.mxu0 0
    %4907 = vmatpush1.bf16.msra.mxu0 %v3927
    %4908 = vmatprep.subr.bf16.mxu0 0
    %4909 = vmatpush1.bf16.msra.mxu0 %v3928
    %4910 = vmatprep.subr.bf16.mxu0 0
    %4911 = vmatpush1.bf16.msra.mxu0 %v3929
    %4912 = vmatprep.subr.bf16.mxu0 0
    %4913 = vmatpush1.bf16.msra.mxu0 %v3930
    %4914 = vmatprep.mubr.bf16.mxu0 %v2390
    %4915 = vmatmul.mubr.bf16.gmra.mrb[0].mxu0 %v2382
    %v4916 = vpop.f32.mrb[0].mxu0
    %v4917 = vadd.f32 %v4820, %v4916
    %v4918 = vpop.f32.mrb[0].mxu0
    %v4919 = vpop.f32.mrb[0].mxu0
    %v4920 = vadd.f32 %v4823, %v4919
    %v4921 = vpop.f32.mrb[0].mxu0
    %4922 = vmatprep.mubr.bf16.mxu0 %v2391
    %4923 = vmatmul.mubr.bf16.gmra.mrb[0].mxu0 %v2383
    %v4924 = vpop.f32.mrb[0].mxu0
    %v4925 = vadd.f32 %v4828, %v4924
    %v4926 = vpop.f32.mrb[0].mxu0
    %v4927 = vpop.f32.mrb[0].mxu0
    %v4928 = vadd.f32 %v4831, %v4927
    %v4929 = vpop.f32.mrb[0].mxu0
    %4930 = vmatprep.mubr.bf16.mxu0 %v2392
    %4931 = vmatmul.mubr.bf16.gmra.mrb[0].mxu0 %v2384
    %v4932 = vpop.f32.mrb[0].mxu0
    %v4933 = vadd.f32 %v4836, %v4932
    %v4934 = vpop.f32.mrb[0].mxu0
    %v4935 = vpop.f32.mrb[0].mxu0
    %v4936 = vadd.f32 %v4839, %v4935
    %v4937 = vpop.f32.mrb[0].mxu0
    %4938 = vmatprep.mubr.bf16.mxu0 %v2511
    %4939 = vmatmul.mubr.bf16.gmra.mrb[0].mxu0 %v2509
    %v4940 = vpop.f32.mrb[0].mxu0
    %v4941 = vadd.f32 %v4844, %v4940
    %v4942 = vpop.f32.mrb[0].mxu0
    %v4943 = vpop.f32.mrb[0].mxu0
    %v4944 = vadd.f32 %v4847, %v4943
    %v4945 = vpop.f32.mrb[0].mxu0
    %4946 = vmatprep.mubr.bf16.mxu0 %v2394
    %4947 = vmatmul.mubr.bf16.gmra.mrb[0].mxu0 %v2386
    %v4948 = vpop.f32.mrb[0].mxu0
    %v4949 = vadd.f32 %v4852, %v4948
    %v4950 = vpop.f32.mrb[0].mxu0
    %v4951 = vpop.f32.mrb[0].mxu0
    %v4952 = vadd.f32 %v4855, %v4951
    %v4953 = vpop.f32.mrb[0].mxu0
    %4954 = vmatprep.mubr.bf16.mxu0 %v2395
    %4955 = vmatmul.mubr.bf16.gmra.mrb[0].mxu0 %v2387
    %v4956 = vpop.f32.mrb[0].mxu0
    %v4957 = vadd.f32 %v4860, %v4956
    %v4958 = vpop.f32.mrb[0].mxu0
    %v4959 = vpop.f32.mrb[0].mxu0
    %v4960 = vadd.f32 %v4863, %v4959
    %v4961 = vpop.f32.mrb[0].mxu0
    %4962 = vmatprep.mubr.bf16.mxu0 %v2396
    %4963 = vmatmul.mubr.bf16.gmra.mrb[0].mxu0 %v2388
    %v4964 = vpop.f32.mrb[0].mxu0
    %v4965 = vadd.f32 %v4868, %v4964
    %v4966 = vpop.f32.mrb[0].mxu0
    %v4967 = vpop.f32.mrb[0].mxu0
    %v4968 = vadd.f32 %v4871, %v4967
    %v4969 = vpop.f32.mrb[0].mxu0
    %4970 = vmatprep.mubr.bf16.mxu0 %v2512
    %4971 = vmatmul.mubr.bf16.gmra.mrb[0].mxu0 %v2510
    %v4972 = vpop.f32.mrb[0].mxu0
    %v4973 = vadd.f32 %v4876, %v4972
    %v4974 = vpop.f32.mrb[0].mxu0
    %v4975 = vpop.f32.mrb[0].mxu0
    %v4976 = vadd.f32 %v4879, %v4975
    %v4977 = vpop.f32.mrb[0].mxu0
    %4978 = vdwg.mxu0
    %4979 = vmatprep.subr.bf16.mxu0 0
    %4980 = vmatpush1.bf16.msra.mxu0 %v3931
    %4981 = vmatprep.subr.bf16.mxu0 0
    %4982 = vmatpush1.bf16.msra.mxu0 %v3932
    %4983 = vmatprep.subr.bf16.mxu0 0
    %4984 = vmatpush1.bf16.msra.mxu0 %v3933
    %4985 = vmatprep.subr.bf16.mxu0 0
    %4986 = vmatpush1.bf16.msra.mxu0 %v3934
    %4987 = vmatprep.subr.bf16.mxu0 0
    %4988 = vmatpush1.bf16.msra.mxu0 %v3935
    %4989 = vmatprep.subr.bf16.mxu0 0
    %4990 = vmatpush1.bf16.msra.mxu0 %v3936
    %4991 = vmatprep.subr.bf16.mxu0 0
    %4992 = vmatpush1.bf16.msra.mxu0 %v3937
    %4993 = vmatprep.subr.bf16.mxu0 0
    %4994 = vmatpush1.bf16.msra.mxu0 %v3938
    %4995 = vmatprep.subr.bf16.mxu0 0
    %4996 = vmatpush1.bf16.msra.mxu0 %v3939
    %4997 = vmatprep.subr.bf16.mxu0 0
    %4998 = vmatpush1.bf16.msra.mxu0 %v3940
    %4999 = vmatprep.subr.bf16.mxu0 0
    %5000 = vmatpush1.bf16.msra.mxu0 %v3941
    %5001 = vmatprep.subr.bf16.mxu0 0
    %5002 = vmatpush1.bf16.msra.mxu0 %v3942
    %5003 = vmatprep.subr.bf16.mxu0 0
    %5004 = vmatpush1.bf16.msra.mxu0 %v3943
    %5005 = vmatprep.subr.bf16.mxu0 0
    %5006 = vmatpush1.bf16.msra.mxu0 %v3944
    %5007 = vmatprep.subr.bf16.mxu0 0
    %5008 = vmatpush1.bf16.msra.mxu0 %v3945
    %5009 = vmatprep.subr.bf16.mxu0 0
    %5010 = vmatpush1.bf16.msra.mxu0 %v3946
    %5011 = vmatprep.mubr.bf16.mxu0 %v2426
    %5012 = vmatmul.mubr.bf16.gmra.mrb[0].mxu0 %v2410
    %v5013 = vpop.f32.mrb[0].mxu0
    %v5014 = vadd.f32 %v4917, %v5013
    %v5015 = vpop.f32.mrb[0].mxu0
    %v5016 = vpop.f32.mrb[0].mxu0
    %v5017 = vadd.f32 %v4920, %v5016
    %v5018 = vpop.f32.mrb[0].mxu0
    %5019 = vmatprep.mubr.bf16.mxu0 %v2427
    %5020 = vmatmul.mubr.bf16.gmra.mrb[0].mxu0 %v2411
    %v5021 = vpop.f32.mrb[0].mxu0
    %v5022 = vadd.f32 %v4925, %v5021
    %v5023 = vpop.f32.mrb[0].mxu0
    %v5024 = vpop.f32.mrb[0].mxu0
    %v5025 = vadd.f32 %v4928, %v5024
    %v5026 = vpop.f32.mrb[0].mxu0
    %5027 = vmatprep.mubr.bf16.mxu0 %v2428
    %5028 = vmatmul.mubr.bf16.gmra.mrb[0].mxu0 %v2412
    %v5029 = vpop.f32.mrb[0].mxu0
    %v5030 = vadd.f32 %v4933, %v5029
    %v5031 = vpop.f32.mrb[0].mxu0
    %v5032 = vpop.f32.mrb[0].mxu0
    %v5033 = vadd.f32 %v4936, %v5032
    %v5034 = vpop.f32.mrb[0].mxu0
    %5035 = vmatprep.mubr.bf16.mxu0 %v2535
    %5036 = vmatmul.mubr.bf16.gmra.mrb[0].mxu0 %v2525
    %v5037 = vpop.f32.mrb[0].mxu0
    %v5038 = vadd.f32 %v4941, %v5037
    %v5039 = vpop.f32.mrb[0].mxu0
    %v5040 = vpop.f32.mrb[0].mxu0
    %v5041 = vadd.f32 %v4944, %v5040
    %v5042 = vpop.f32.mrb[0].mxu0
    %5043 = vmatprep.mubr.bf16.mxu0 %v2430
    %5044 = vmatmul.mubr.bf16.gmra.mrb[0].mxu0 %v2414
    %v5045 = vpop.f32.mrb[0].mxu0
    %v5046 = vadd.f32 %v4949, %v5045
    %v5047 = vpop.f32.mrb[0].mxu0
    %v5048 = vpop.f32.mrb[0].mxu0
    %v5049 = vadd.f32 %v4952, %v5048
    %v5050 = vpop.f32.mrb[0].mxu0
    %5051 = vmatprep.mubr.bf16.mxu0 %v2431
    %5052 = vmatmul.mubr.bf16.gmra.mrb[0].mxu0 %v2415
    %v5053 = vpop.f32.mrb[0].mxu0
    %v5054 = vadd.f32 %v4957, %v5053
    %v5055 = vpop.f32.mrb[0].mxu0
    %v5056 = vpop.f32.mrb[0].mxu0
    %v5057 = vadd.f32 %v4960, %v5056
    %v5058 = vpop.f32.mrb[0].mxu0
    %5059 = vmatprep.mubr.bf16.mxu0 %v2432
    %5060 = vmatmul.mubr.bf16.gmra.mrb[0].mxu0 %v2416
    %v5061 = vpop.f32.mrb[0].mxu0
    %v5062 = vadd.f32 %v4965, %v5061
    %v5063 = vpop.f32.mrb[0].mxu0
    %v5064 = vpop.f32.mrb[0].mxu0
    %v5065 = vadd.f32 %v4968, %v5064
    %v5066 = vpop.f32.mrb[0].mxu0
    %5067 = vmatprep.mubr.bf16.mxu0 %v2536
    %5068 = vmatmul.mubr.bf16.gmra.mrb[0].mxu0 %v2526
    %v5069 = vpop.f32.mrb[0].mxu0
    %v5070 = vadd.f32 %v4973, %v5069
    %v5071 = vpop.f32.mrb[0].mxu0
    %v5072 = vpop.f32.mrb[0].mxu0
    %v5073 = vadd.f32 %v4976, %v5072
    %v5074 = vpop.f32.mrb[0].mxu0
    %5075 = vdwg.mxu0
    %5076 = vmatprep.subr.bf16.mxu0 0
    %5077 = vmatpush1.bf16.msra.mxu0 %v3947
    %5078 = vmatprep.subr.bf16.mxu0 0
    %5079 = vmatpush1.bf16.msra.mxu0 %v3948
    %5080 = vmatprep.subr.bf16.mxu0 0
    %5081 = vmatpush1.bf16.msra.mxu0 %v3949
    %5082 = vmatprep.subr.bf16.mxu0 0
    %5083 = vmatpush1.bf16.msra.mxu0 %v3950
    %5084 = vmatprep.subr.bf16.mxu0 0
    %5085 = vmatpush1.bf16.msra.mxu0 %v3951
    %5086 = vmatprep.subr.bf16.mxu0 0
    %5087 = vmatpush1.bf16.msra.mxu0 %v3952
    %5088 = vmatprep.subr.bf16.mxu0 0
    %5089 = vmatpush1.bf16.msra.mxu0 %v3953
    %5090 = vmatprep.subr.bf16.mxu0 0
    %5091 = vmatpush1.bf16.msra.mxu0 %v3954
    %5092 = vmatprep.subr.bf16.mxu0 0
    %5093 = vmatpush1.bf16.msra.mxu0 %v3955
    %5094 = vmatprep.subr.bf16.mxu0 0
    %5095 = vmatpush1.bf16.msra.mxu0 %v3956
    %5096 = vmatprep.subr.bf16.mxu0 0
    %5097 = vmatpush1.bf16.msra.mxu0 %v3957
    %5098 = vmatprep.subr.bf16.mxu0 0
    %5099 = vmatpush1.bf16.msra.mxu0 %v3958
    %5100 = vmatprep.subr.bf16.mxu0 0
    %5101 = vmatpush1.bf16.msra.mxu0 %v3959
    %5102 = vmatprep.subr.bf16.mxu0 0
    %5103 = vmatpush1.bf16.msra.mxu0 %v3960
    %5104 = vmatprep.subr.bf16.mxu0 0
    %5105 = vmatpush1.bf16.msra.mxu0 %v3961
    %5106 = vmatprep.subr.bf16.mxu0 0
    %5107 = vmatpush1.bf16.msra.mxu0 %v3962
    %5108 = vmatprep.mubr.bf16.mxu0 %v2458
    %5109 = vmatmul.mubr.bf16.gmra.mrb[0].mxu0 %v2442
    %v5110 = vpop.f32.mrb[0].mxu0
    %v5111 = vadd.f32 %v5014, %v5110
    %v5112 = vpop.f32.mrb[0].mxu0
    %v5113 = vpop.f32.mrb[0].mxu0
    %v5114 = vadd.f32 %v5017, %v5113
    %v5115 = vpop.f32.mrb[0].mxu0
    %5116 = vmatprep.mubr.bf16.mxu0 %v2459
    %5117 = vmatmul.mubr.bf16.gmra.mrb[0].mxu0 %v2443
    %v5118 = vpop.f32.mrb[0].mxu0
    %v5119 = vadd.f32 %v5022, %v5118
    %v5120 = vpop.f32.mrb[0].mxu0
    %v5121 = vpop.f32.mrb[0].mxu0
    %v5122 = vadd.f32 %v5025, %v5121
    %v5123 = vpop.f32.mrb[0].mxu0
    %5124 = vmatprep.mubr.bf16.mxu0 %v2460
    %5125 = vmatmul.mubr.bf16.gmra.mrb[0].mxu0 %v2444
    %v5126 = vpop.f32.mrb[0].mxu0
    %v5127 = vadd.f32 %v5030, %v5126
    %v5128 = vpop.f32.mrb[0].mxu0
    %v5129 = vpop.f32.mrb[0].mxu0
    %v5130 = vadd.f32 %v5033, %v5129
    %v5131 = vpop.f32.mrb[0].mxu0
    %5132 = vmatprep.mubr.bf16.mxu0 %v2555
    %5133 = vmatmul.mubr.bf16.gmra.mrb[0].mxu0 %v2545
    %v5134 = vpop.f32.mrb[0].mxu0
    %v5135 = vadd.f32 %v5038, %v5134
    %v5136 = vpop.f32.mrb[0].mxu0
    %v5137 = vpop.f32.mrb[0].mxu0
    %v5138 = vadd.f32 %v5041, %v5137
    %v5139 = vpop.f32.mrb[0].mxu0
    %5140 = vmatprep.mubr.bf16.mxu0 %v2462
    %5141 = vmatmul.mubr.bf16.gmra.mrb[0].mxu0 %v2446
    %v5142 = vpop.f32.mrb[0].mxu0
    %v5143 = vadd.f32 %v5046, %v5142
    %v5144 = vpop.f32.mrb[0].mxu0
    %v5145 = vpop.f32.mrb[0].mxu0
    %v5146 = vadd.f32 %v5049, %v5145
    %v5147 = vpop.f32.mrb[0].mxu0
    %5148 = vmatprep.mubr.bf16.mxu0 %v2463
    %5149 = vmatmul.mubr.bf16.gmra.mrb[0].mxu0 %v2447
    %v5150 = vpop.f32.mrb[0].mxu0
    %v5151 = vadd.f32 %v5054, %v5150
    %v5152 = vpop.f32.mrb[0].mxu0
    %v5153 = vpop.f32.mrb[0].mxu0
    %v5154 = vadd.f32 %v5057, %v5153
    %v5155 = vpop.f32.mrb[0].mxu0
    %5156 = vmatprep.mubr.bf16.mxu0 %v2464
    %5157 = vmatmul.mubr.bf16.gmra.mrb[0].mxu0 %v2448
    %v5158 = vpop.f32.mrb[0].mxu0
    %v5159 = vadd.f32 %v5062, %v5158
    %v5160 = vpop.f32.mrb[0].mxu0
    %v5161 = vpop.f32.mrb[0].mxu0
    %v5162 = vadd.f32 %v5065, %v5161
    %v5163 = vpop.f32.mrb[0].mxu0
    %5164 = vmatprep.mubr.bf16.mxu0 %v2556
    %5165 = vmatmul.mubr.bf16.gmra.mrb[0].mxu0 %v2546
    %v5166 = vpop.f32.mrb[0].mxu0
    %v5167 = vadd.f32 %v5070, %v5166
    %v5168 = vpop.f32.mrb[0].mxu0
    %v5169 = vpop.f32.mrb[0].mxu0
    %v5170 = vadd.f32 %v5073, %v5169
    %v5171 = vpop.f32.mrb[0].mxu0
    %5172 = vdwg.mxu0
    %5173 = vmatprep.subr.bf16.mxu0 0
    %5174 = vmatpush1.bf16.msra.mxu0 %v3963
    %5175 = vmatprep.subr.bf16.mxu0 0
    %5176 = vmatpush1.bf16.msra.mxu0 %v3964
    %5177 = vmatprep.subr.bf16.mxu0 0
    %5178 = vmatpush1.bf16.msra.mxu0 %v3965
    %5179 = vmatprep.subr.bf16.mxu0 0
    %5180 = vmatpush1.bf16.msra.mxu0 %v3966
    %5181 = vmatprep.subr.bf16.mxu0 0
    %5182 = vmatpush1.bf16.msra.mxu0 %v3967
    %5183 = vmatprep.subr.bf16.mxu0 0
    %5184 = vmatpush1.bf16.msra.mxu0 %v3968
    %5185 = vmatprep.subr.bf16.mxu0 0
    %5186 = vmatpush1.bf16.msra.mxu0 %v3969
    %5187 = vmatprep.subr.bf16.mxu0 0
    %5188 = vmatpush1.bf16.msra.mxu0 %v3970
    %5189 = vmatprep.subr.bf16.mxu0 0
    %5190 = vmatpush1.bf16.msra.mxu0 %v3971
    %5191 = vmatprep.subr.bf16.mxu0 0
    %5192 = vmatpush1.bf16.msra.mxu0 %v3972
    %5193 = vmatprep.subr.bf16.mxu0 0
    %5194 = vmatpush1.bf16.msra.mxu0 %v3973
    %5195 = vmatprep.subr.bf16.mxu0 0
    %5196 = vmatpush1.bf16.msra.mxu0 %v3974
    %5197 = vmatprep.subr.bf16.mxu0 0
    %5198 = vmatpush1.bf16.msra.mxu0 %v3975
    %5199 = vmatprep.subr.bf16.mxu0 0
    %5200 = vmatpush1.bf16.msra.mxu0 %v3976
    %5201 = vmatprep.subr.bf16.mxu0 0
    %5202 = vmatpush1.bf16.msra.mxu0 %v3977
    %5203 = vmatprep.subr.bf16.mxu0 0
    %5204 = vmatpush1.bf16.msra.mxu0 %v3978
    %5205 = vmatprep.mubr.bf16.mxu0 %v2166
    %5206 = vmatmul.mubr.bf16.gmra.mrb[0].mxu0 %v2061
    %v5207 = vpop.f32.mrb[0].mxu0
    %v5208 = vadd.f32 %v5111, %v5207
    %v5209 = vpop.f32.mrb[0].mxu0
    %v5210 = vpop.f32.mrb[0].mxu0
    %v5211 = vadd.f32 %v5114, %v5210
    %v5212 = vpop.f32.mrb[0].mxu0
    %5213 = vmatprep.mubr.bf16.mxu0 %v2167
    %5214 = vmatmul.mubr.bf16.gmra.mrb[0].mxu0 %v2062
    %v5215 = vpop.f32.mrb[0].mxu0
    %v5216 = vadd.f32 %v5119, %v5215
    %v5217 = vpop.f32.mrb[0].mxu0
    %v5218 = vpop.f32.mrb[0].mxu0
    %v5219 = vadd.f32 %v5122, %v5218
    %v5220 = vpop.f32.mrb[0].mxu0
    %5221 = vmatprep.mubr.bf16.mxu0 %v2479
    %5222 = vmatmul.mubr.bf16.gmra.mrb[0].mxu0 %v2465
    %v5223 = vpop.f32.mrb[0].mxu0
    %v5224 = vadd.f32 %v5127, %v5223
    %v5225 = vpop.f32.mrb[0].mxu0
    %v5226 = vpop.f32.mrb[0].mxu0
    %v5227 = vadd.f32 %v5130, %v5226
    %v5228 = vpop.f32.mrb[0].mxu0
    %5229 = vmatprep.mubr.bf16.mxu0 %v2571
    %5230 = vmatmul.mubr.bf16.gmra.mrb[0].mxu0 %v2557
    %v5231 = vpop.f32.mrb[0].mxu0
    %v5232 = vadd.f32 %v5135, %v5231
    %v5233 = vpop.f32.mrb[0].mxu0
    %v5234 = vpop.f32.mrb[0].mxu0
    %v5235 = vadd.f32 %v5138, %v5234
    %v5236 = vpop.f32.mrb[0].mxu0
    %5237 = vmatprep.mubr.bf16.mxu0 %v2170
    %5238 = vmatmul.mubr.bf16.gmra.mrb[0].mxu0 %v2065
    %v5239 = vpop.f32.mrb[0].mxu0
    %v5240 = vadd.f32 %v5143, %v5239
    %v5241 = vpop.f32.mrb[0].mxu0
    %v5242 = vpop.f32.mrb[0].mxu0
    %v5243 = vadd.f32 %v5146, %v5242
    %v5244 = vpop.f32.mrb[0].mxu0
    %5245 = vmatprep.mubr.bf16.mxu0 %v2171
    %5246 = vmatmul.mubr.bf16.gmra.mrb[0].mxu0 %v2066
    %v5247 = vpop.f32.mrb[0].mxu0
    %v5248 = vadd.f32 %v5151, %v5247
    %v5249 = vpop.f32.mrb[0].mxu0
    %v5250 = vpop.f32.mrb[0].mxu0
    %v5251 = vadd.f32 %v5154, %v5250
    %v5252 = vpop.f32.mrb[0].mxu0
    %5253 = vmatprep.mubr.bf16.mxu0 %v2480
    %5254 = vmatmul.mubr.bf16.gmra.mrb[0].mxu0 %v2466
    %v5255 = vpop.f32.mrb[0].mxu0
    %v5256 = vadd.f32 %v5159, %v5255
    %v5257 = vpop.f32.mrb[0].mxu0
    %v5258 = vpop.f32.mrb[0].mxu0
    %v5259 = vadd.f32 %v5162, %v5258
    %v5260 = vpop.f32.mrb[0].mxu0
    %5261 = vmatprep.mubr.bf16.mxu0 %v2572
    %5262 = vmatmul.mubr.bf16.gmra.mrb[0].mxu0 %v2558
    %v5263 = vpop.f32.mrb[0].mxu0
    %v5264 = vadd.f32 %v5167, %v5263
    %v5265 = vpop.f32.mrb[0].mxu0
    %v5266 = vpop.f32.mrb[0].mxu0
    %v5267 = vadd.f32 %v5170, %v5266
    %v5268 = vpop.f32.mrb[0].mxu0
    %5269 = vdwg.mxu0
    %5270 = vmatprep.subr.bf16.mxu0 0
    %5271 = vmatpush1.bf16.msra.mxu0 %v3979
    %5272 = vmatprep.subr.bf16.mxu0 0
    %5273 = vmatpush1.bf16.msra.mxu0 %v3980
    %5274 = vmatprep.subr.bf16.mxu0 0
    %5275 = vmatpush1.bf16.msra.mxu0 %v3981
    %5276 = vmatprep.subr.bf16.mxu0 0
    %5277 = vmatpush1.bf16.msra.mxu0 %v3982
    %5278 = vmatprep.subr.bf16.mxu0 0
    %5279 = vmatpush1.bf16.msra.mxu0 %v3983
    %5280 = vmatprep.subr.bf16.mxu0 0
    %5281 = vmatpush1.bf16.msra.mxu0 %v3984
    %5282 = vmatprep.subr.bf16.mxu0 0
    %5283 = vmatpush1.bf16.msra.mxu0 %v3985
    %5284 = vmatprep.subr.bf16.mxu0 0
    %5285 = vmatpush1.bf16.msra.mxu0 %v3986
    %5286 = vmatprep.subr.bf16.mxu0 0
    %5287 = vmatpush1.bf16.msra.mxu0 %v3987
    %5288 = vmatprep.subr.bf16.mxu0 0
    %5289 = vmatpush1.bf16.msra.mxu0 %v3988
    %5290 = vmatprep.subr.bf16.mxu0 0
    %5291 = vmatpush1.bf16.msra.mxu0 %v3989
    %5292 = vmatprep.subr.bf16.mxu0 0
    %5293 = vmatpush1.bf16.msra.mxu0 %v3990
    %5294 = vmatprep.subr.bf16.mxu0 0
    %5295 = vmatpush1.bf16.msra.mxu0 %v3991
    %5296 = vmatprep.subr.bf16.mxu0 0
    %5297 = vmatpush1.bf16.msra.mxu0 %v3992
    %5298 = vmatprep.subr.bf16.mxu0 0
    %5299 = vmatpush1.bf16.msra.mxu0 %v3993
    %5300 = vmatprep.subr.bf16.mxu0 0
    %5301 = vmatpush1.bf16.msra.mxu0 %v3994
    %5302 = vmatprep.mubr.bf16.mxu0 %v2311
    %5303 = vmatmul.mubr.bf16.gmra.mrb[0].mxu0 %v2239
    %v5304 = vpop.f32.mrb[0].mxu0
    %v5305 = vadd.f32 %v5208, %v5304
    %v5306 = vpop.f32.mrb[0].mxu0
    %v5307 = vpop.f32.mrb[0].mxu0
    %v5308 = vadd.f32 %v5211, %v5307
    %v5309 = vpop.f32.mrb[0].mxu0
    %5310 = vmatprep.mubr.bf16.mxu0 %v2312
    %5311 = vmatmul.mubr.bf16.gmra.mrb[0].mxu0 %v2240
    %v5312 = vpop.f32.mrb[0].mxu0
    %v5313 = vadd.f32 %v5216, %v5312
    %v5314 = vpop.f32.mrb[0].mxu0
    %v5315 = vpop.f32.mrb[0].mxu0
    %v5316 = vadd.f32 %v5219, %v5315
    %v5317 = vpop.f32.mrb[0].mxu0
    %5318 = vmatprep.mubr.bf16.mxu0 %v2499
    %5319 = vmatmul.mubr.bf16.gmra.mrb[0].mxu0 %v2489
    %v5320 = vpop.f32.mrb[0].mxu0
    %v5321 = vadd.f32 %v5224, %v5320
    %v5322 = vpop.f32.mrb[0].mxu0
    %v5323 = vpop.f32.mrb[0].mxu0
    %v5324 = vadd.f32 %v5227, %v5323
    %v5325 = vpop.f32.mrb[0].mxu0
    %5326 = vmatprep.mubr.bf16.mxu0 %v2591
    %5327 = vmatmul.mubr.bf16.gmra.mrb[0].mxu0 %v2581
    %v5328 = vpop.f32.mrb[0].mxu0
    %v5329 = vadd.f32 %v5232, %v5328
    %v5330 = vpop.f32.mrb[0].mxu0
    %v5331 = vpop.f32.mrb[0].mxu0
    %v5332 = vadd.f32 %v5235, %v5331
    %v5333 = vpop.f32.mrb[0].mxu0
    %5334 = vmatprep.mubr.bf16.mxu0 %v2315
    %5335 = vmatmul.mubr.bf16.gmra.mrb[0].mxu0 %v2243
    %v5336 = vpop.f32.mrb[0].mxu0
    %v5337 = vadd.f32 %v5240, %v5336
    %v5338 = vpop.f32.mrb[0].mxu0
    %v5339 = vpop.f32.mrb[0].mxu0
    %v5340 = vadd.f32 %v5243, %v5339
    %v5341 = vpop.f32.mrb[0].mxu0
    %5342 = vmatprep.mubr.bf16.mxu0 %v2316
    %5343 = vmatmul.mubr.bf16.gmra.mrb[0].mxu0 %v2244
    %v5344 = vpop.f32.mrb[0].mxu0
    %v5345 = vadd.f32 %v5248, %v5344
    %v5346 = vpop.f32.mrb[0].mxu0
    %v5347 = vpop.f32.mrb[0].mxu0
    %v5348 = vadd.f32 %v5251, %v5347
    %v5349 = vpop.f32.mrb[0].mxu0
    %5350 = vmatprep.mubr.bf16.mxu0 %v2500
    %5351 = vmatmul.mubr.bf16.gmra.mrb[0].mxu0 %v2490
    %v5352 = vpop.f32.mrb[0].mxu0
    %v5353 = vadd.f32 %v5256, %v5352
    %v5354 = vpop.f32.mrb[0].mxu0
    %v5355 = vpop.f32.mrb[0].mxu0
    %v5356 = vadd.f32 %v5259, %v5355
    %v5357 = vpop.f32.mrb[0].mxu0
    %5358 = vmatprep.mubr.bf16.mxu0 %v2592
    %5359 = vmatmul.mubr.bf16.gmra.mrb[0].mxu0 %v2582
    %v5360 = vpop.f32.mrb[0].mxu0
    %v5361 = vadd.f32 %v5264, %v5360
    %v5362 = vpop.f32.mrb[0].mxu0
    %v5363 = vpop.f32.mrb[0].mxu0
    %v5364 = vadd.f32 %v5267, %v5363
    %v5365 = vpop.f32.mrb[0].mxu0
    %5366 = vdwg.mxu0
    %5367 = vmatprep.subr.bf16.mxu0 0
    %5368 = vmatpush1.bf16.msra.mxu0 %v3995
    %5369 = vmatprep.subr.bf16.mxu0 0
    %5370 = vmatpush1.bf16.msra.mxu0 %v3996
    %5371 = vmatprep.subr.bf16.mxu0 0
    %5372 = vmatpush1.bf16.msra.mxu0 %v3997
    %5373 = vmatprep.subr.bf16.mxu0 0
    %5374 = vmatpush1.bf16.msra.mxu0 %v3998
    %5375 = vmatprep.subr.bf16.mxu0 0
    %5376 = vmatpush1.bf16.msra.mxu0 %v3999
    %5377 = vmatprep.subr.bf16.mxu0 0
    %5378 = vmatpush1.bf16.msra.mxu0 %v4000
    %5379 = vmatprep.subr.bf16.mxu0 0
    %5380 = vmatpush1.bf16.msra.mxu0 %v4001
    %5381 = vmatprep.subr.bf16.mxu0 0
    %5382 = vmatpush1.bf16.msra.mxu0 %v4002
    %5383 = vmatprep.subr.bf16.mxu0 0
    %5384 = vmatpush1.bf16.msra.mxu0 0
    %5385 = vmatprep.subr.bf16.mxu0 0
    %5386 = vmatpush1.bf16.msra.mxu0 0
    %5387 = vmatprep.subr.bf16.mxu0 0
    %5388 = vmatpush1.bf16.msra.mxu0 0
    %5389 = vmatprep.subr.bf16.mxu0 0
    %5390 = vmatpush1.bf16.msra.mxu0 0
    %5391 = vmatprep.subr.bf16.mxu0 0
    %5392 = vmatpush1.bf16.msra.mxu0 0
    %5393 = vmatprep.subr.bf16.mxu0 0
    %5394 = vmatpush1.bf16.msra.mxu0 0
    %5395 = vmatprep.subr.bf16.mxu0 0
    %5396 = vmatpush1.bf16.msra.mxu0 0
    %5397 = vmatprep.subr.bf16.mxu0 0
    %5398 = vmatpush1.bf16.msra.mxu0 0
    %5399 = vmatprep.mubr.bf16.mxu0 0
    %5400 = vmatmul.mubr.bf16.gmra.mrb[0].mxu0 %v2383
    %v5401 = vpop.f32.mrb[0].mxu0
    %v5402 = vadd.f32 %v5305, %v5401
    %v5403 = vpop.f32.mrb[0].mxu0
    %v5404 = vpop.f32.mrb[0].mxu0
    %v5405 = vadd.f32 %v5308, %v5404
    %v5406 = vpop.f32.mrb[0].mxu0
    %5407 = vmatprep.mubr.bf16.mxu0 0
    %5408 = vmatmul.mubr.bf16.gmra.mrb[0].mxu0 %v2384
    %v5409 = vpop.f32.mrb[0].mxu0
    %v5410 = vadd.f32 %v5313, %v5409
    %v5411 = vpop.f32.mrb[0].mxu0
    %v5412 = vpop.f32.mrb[0].mxu0
    %v5413 = vadd.f32 %v5316, %v5412
    %v5414 = vpop.f32.mrb[0].mxu0
    %5415 = vmatprep.mubr.bf16.mxu0 0
    %5416 = vmatmul.mubr.bf16.gmra.mrb[0].mxu0 %v2509
    %v5417 = vpop.f32.mrb[0].mxu0
    %v5418 = vadd.f32 %v5321, %v5417
    %v5419 = vpop.f32.mrb[0].mxu0
    %v5420 = vpop.f32.mrb[0].mxu0
    %v5421 = vadd.f32 %v5324, %v5420
    %v5422 = vpop.f32.mrb[0].mxu0
    %5423 = vmatprep.mubr.bf16.mxu0 0
    %5424 = vmatmul.mubr.bf16.gmra.mrb[0].mxu0 %v2601
    %v5425 = vpop.f32.mrb[0].mxu0
    %v5426 = vadd.f32 %v5329, %v5425
    %v5427 = vpop.f32.mrb[0].mxu0
    %v5428 = vpop.f32.mrb[0].mxu0
    %v5429 = vadd.f32 %v5332, %v5428
    %v5430 = vpop.f32.mrb[0].mxu0
    %5431 = vmatprep.mubr.bf16.mxu0 0
    %5432 = vmatmul.mubr.bf16.gmra.mrb[0].mxu0 %v2387
    %v5433 = vpop.f32.mrb[0].mxu0
    %v5434 = vadd.f32 %v5337, %v5433
    %v5435 = vpop.f32.mrb[0].mxu0
    %v5436 = vpop.f32.mrb[0].mxu0
    %v5437 = vadd.f32 %v5340, %v5436
    %v5438 = vpop.f32.mrb[0].mxu0
    %5439 = vmatprep.mubr.bf16.mxu0 0
    %5440 = vmatmul.mubr.bf16.gmra.mrb[0].mxu0 %v2388
    %v5441 = vpop.f32.mrb[0].mxu0
    %v5442 = vadd.f32 %v5345, %v5441
    %v5443 = vpop.f32.mrb[0].mxu0
    %v5444 = vpop.f32.mrb[0].mxu0
    %v5445 = vadd.f32 %v5348, %v5444
    %v5446 = vpop.f32.mrb[0].mxu0
    %5447 = vmatprep.mubr.bf16.mxu0 0
    %5448 = vmatmul.mubr.bf16.gmra.mrb[0].mxu0 %v2510
    %v5449 = vpop.f32.mrb[0].mxu0
    %v5450 = vadd.f32 %v5353, %v5449
    %v5451 = vpop.f32.mrb[0].mxu0
    %v5452 = vpop.f32.mrb[0].mxu0
    %v5453 = vadd.f32 %v5356, %v5452
    %v5454 = vpop.f32.mrb[0].mxu0
    %5455 = vmatprep.mubr.bf16.mxu0 0
    %5456 = vmatmul.mubr.bf16.gmra.mrb[0].mxu0 %v2602
    %v5457 = vpop.f32.mrb[0].mxu0
    %v5458 = vadd.f32 %v5361, %v5457
    %v5459 = vpop.f32.mrb[0].mxu0
    %v5460 = vpop.f32.mrb[0].mxu0
    %v5461 = vadd.f32 %v5364, %v5460
    %v5462 = vpop.f32.mrb[0].mxu0
    %5463 = vdwg.mxu0
    %v5480 = vrot.slane %v5402, 1
    %v5481 = vrot.slane %v5405, 1
    %v5482 = vsel %vm2099, %v5480, %v5481
    %v5483 = vrot.slane %v5410, 1
    %v5484 = vsel %vm2099, %v5481, %v5483
    %v5485 = vrot.slane %v5413, 1
    %v5486 = vsel %vm2099, %v5483, %v5485
    %v5487 = vrot.slane %v5418, 1
    %v5488 = vsel %vm2099, %v5485, %v5487
    %v5489 = vrot.slane %v5421, 1
    %v5490 = vsel %vm2099, %v5487, %v5489
    %v5491 = vrot.slane %v5426, 1
    %v5492 = vsel %vm2099, %v5489, %v5491
    %v5493 = vrot.slane %v5429, 1
    %v5494 = vsel %vm2099, %v5491, %v5493
    %v5495 = vrot.slane %v5434, 1
    %v5496 = vsel %vm2099, %v5493, %v5495
    %v5497 = vrot.slane %v5437, 1
    %v5498 = vsel %vm2099, %v5495, %v5497
    %v5499 = vrot.slane %v5442, 1
    %v5500 = vsel %vm2099, %v5497, %v5499
    %v5501 = vrot.slane %v5445, 1
    %v5502 = vsel %vm2099, %v5499, %v5501
    %v5503 = vrot.slane %v5450, 1
    %v5504 = vsel %vm2099, %v5501, %v5503
    %v5505 = vrot.slane %v5453, 1
    %v5506 = vsel %vm2099, %v5503, %v5505
    %v5507 = vrot.slane %v5458, 1
    %v5508 = vsel %vm2099, %v5505, %v5507
    %v5509 = vrot.slane %v5461, 1
    %v5510 = vsel %vm2099, %v5507, %v5509
    %v5528 = vsel %vm2099, %v5509, %v5480
    %v5529 = vmax.f32 %v5402, %v5482
    %v5530 = vmax.f32 %v5405, %v5484
    %v5531 = vmax.f32 %v5410, %v5486
    %v5532 = vmax.f32 %v5413, %v5488
    %v5533 = vmax.f32 %v5418, %v5490
    %v5534 = vmax.f32 %v5421, %v5492
    %v5535 = vmax.f32 %v5426, %v5494
    %v5536 = vmax.f32 %v5429, %v5496
    %v5537 = vmax.f32 %v5434, %v5498
    %v5538 = vmax.f32 %v5437, %v5500
    %v5539 = vmax.f32 %v5442, %v5502
    %v5540 = vmax.f32 %v5445, %v5504
    %v5541 = vmax.f32 %v5450, %v5506
    %v5542 = vmax.f32 %v5453, %v5508
    %v5543 = vmax.f32 %v5458, %v5510
    %v5544 = vmax.f32 %v5461, %v5528
    %v5545 = vmax.f32 %v5529, %v5530
    %v5546 = vmax.f32 %v5531, %v5532
    %v5547 = vmax.f32 %v5533, %v5534
    %v5548 = vmax.f32 %v5535, %v5536
    %v5549 = vmax.f32 %v5537, %v5538
    %v5550 = vmax.f32 %v5539, %v5540
    %v5551 = vmax.f32 %v5541, %v5542
    %v5552 = vmax.f32 %v5543, %v5544
    %v5553 = vld [vmem:[%s4] sm:$0x1]
    %v5555 = vlaneseq
    %v5556 = vshrl.u32 %v5555, 7
    %v5557 = vsub.s32 0, %v5556
    %v5558 = vrot.slane %v5553, %v5557
    %v5560 = vadd.f32 %v5545, %v5558
    %v5561 = vadd.f32 %v5546, %v5558
    %v5562 = vadd.f32 %v5547, %v5558
    %v5563 = vadd.f32 %v5548, %v5558
    %v5564 = vadd.f32 %v5549, %v5558
    %v5565 = vadd.f32 %v5550, %v5558
    %v5566 = vadd.f32 %v5551, %v5558
    %v5567 = vadd.f32 %v5552, %v5558
    %v5568 = vmax.f32 %v5560, 0.0
    %v5569 = vmax.f32 %v5561, 0.0
    %v5570 = vmax.f32 %v5562, 0.0
    %v5571 = vmax.f32 %v5563, 0.0
    %v5572 = vmax.f32 %v5564, 0.0
    %v5573 = vmax.f32 %v5565, 0.0
    %v5574 = vmax.f32 %v5566, 0.0
    %v5575 = vmax.f32 %v5567, 0.0
    %v5578 = vrot.slane %v5572, 7
    %vm5579 = vcmask 1041409
    %v5580 = vsel %vm5579, %v5578, %v5568
    %v5582 = vrot.slane %v5568, 2
    %v5583 = vrot.slane %v5572, 1
    %v5584 = vsel %vm5579, %v5583, %v5582
    %v5586 = vrot.slane %v5568, 4
    %v5587 = vrot.slane %v5572, 3
    %v5588 = vsel %vm5579, %v5587, %v5586
    %v5590 = vrot.slane %v5568, 6
    %v5591 = vrot.slane %v5572, 5
    %v5592 = vsel %vm5579, %v5591, %v5590
    %v5596 = vrot.slane %v5573, 7
    %v5597 = vsel %vm5579, %v5596, %v5569
    %v5599 = vrot.slane %v5569, 2
    %v5600 = vrot.slane %v5573, 1
    %v5601 = vsel %vm5579, %v5600, %v5599
    %v5603 = vrot.slane %v5569, 4
    %v5604 = vrot.slane %v5573, 3
    %v5605 = vsel %vm5579, %v5604, %v5603
    %v5607 = vrot.slane %v5569, 6
    %v5608 = vrot.slane %v5573, 5
    %v5609 = vsel %vm5579, %v5608, %v5607
    %v5613 = vrot.slane %v5574, 7
    %v5614 = vsel %vm5579, %v5613, %v5570
    %v5616 = vrot.slane %v5570, 2
    %v5617 = vrot.slane %v5574, 1
    %v5618 = vsel %vm5579, %v5617, %v5616
    %v5620 = vrot.slane %v5570, 4
    %v5621 = vrot.slane %v5574, 3
    %v5622 = vsel %vm5579, %v5621, %v5620
    %v5624 = vrot.slane %v5570, 6
    %v5625 = vrot.slane %v5574, 5
    %v5626 = vsel %vm5579, %v5625, %v5624
    %v5630 = vrot.slane %v5575, 7
    %v5631 = vsel %vm5579, %v5630, %v5571
    %v5633 = vrot.slane %v5571, 2
    %v5634 = vrot.slane %v5575, 1
    %v5635 = vsel %vm5579, %v5634, %v5633
    %v5637 = vrot.slane %v5571, 4
    %v5638 = vrot.slane %v5575, 3
    %v5639 = vsel %vm5579, %v5638, %v5637
    %v5641 = vrot.slane %v5571, 6
    %v5642 = vrot.slane %v5575, 5
    %v5643 = vsel %vm5579, %v5642, %v5641
    %v5645 = vpack.c.bf16 %v5580, %v5580
    %v5646 = vpack.c.bf16 %v5584, %v5584
    %v5647 = vpack.c.bf16 %v5588, %v5588
    %v5648 = vpack.c.bf16 %v5592, %v5592
    %v5649 = vpack.c.bf16 %v5597, %v5597
    %v5650 = vpack.c.bf16 %v5601, %v5601
    %v5651 = vpack.c.bf16 %v5605, %v5605
    %v5652 = vpack.c.bf16 %v5609, %v5609
    %v5653 = vpack.c.bf16 %v5614, %v5614
    %v5654 = vpack.c.bf16 %v5618, %v5618
    %v5655 = vpack.c.bf16 %v5622, %v5622
    %v5656 = vpack.c.bf16 %v5626, %v5626
    %v5657 = vpack.c.bf16 %v5631, %v5631
    %v5658 = vpack.c.bf16 %v5635, %v5635
    %v5659 = vpack.c.bf16 %v5639, %v5639
    %v5660 = vpack.c.bf16 %v5643, %v5643
    %v5661 = vld [vmem:[%s5] sm:$0xf]
    %v5662 = vld [vmem:[%s5 + $0x4] sm:$0xf]
    %v5663 = vld [vmem:[%s5 + $0x8] sm:$0xf]
    %v5664 = vld [vmem:[%s5 + $0xc] sm:$0xf]
    %v5665 = vld [vmem:[%s5 + $0x10] sm:$0xf]
    %v5666 = vld [vmem:[%s5 + $0x14] sm:$0xf]
    %v5667 = vld [vmem:[%s5 + $0x18] sm:$0xf]
    %v5668 = vld [vmem:[%s5 + $0x1c] sm:$0xf]
    %v5669 = vld [vmem:[%s5 + $0x20] sm:$0xf]
    %v5670 = vld [vmem:[%s5 + $0x24] sm:$0xf]
    %v5671 = vld [vmem:[%s5 + $0x28] sm:$0xf]
    %v5672 = vld [vmem:[%s5 + $0x2c] sm:$0xf]
    %v5673 = vld [vmem:[%s5 + $0x30] sm:$0xf]
    %v5674 = vld [vmem:[%s5 + $0x34] sm:$0xf]
    %v5675 = vld [vmem:[%s5 + $0x38] sm:$0xf]
    %v5676 = vld [vmem:[%s5 + $0x3c] sm:$0xf]
    %v5677 = vld [vmem:[%s5 + $0x40] sm:$0xf]
    %v5678 = vld [vmem:[%s5 + $0x44] sm:$0xf]
    %v5679 = vld [vmem:[%s5 + $0x48] sm:$0xf]
    %v5680 = vld [vmem:[%s5 + $0x4c] sm:$0xf]
    %v5681 = vld [vmem:[%s5 + $0x50] sm:$0xf]
    %v5682 = vld [vmem:[%s5 + $0x54] sm:$0xf]
    %v5683 = vld [vmem:[%s5 + $0x58] sm:$0xf]
    %v5684 = vld [vmem:[%s5 + $0x5c] sm:$0xf]
    %v5685 = vld [vmem:[%s5 + $0x60] sm:$0xf]
    %v5686 = vld [vmem:[%s5 + $0x64] sm:$0xf]
    %v5687 = vld [vmem:[%s5 + $0x68] sm:$0xf]
    %v5688 = vld [vmem:[%s5 + $0x6c] sm:$0xf]
    %v5689 = vld [vmem:[%s5 + $0x70] sm:$0xf]
    %v5690 = vld [vmem:[%s5 + $0x74] sm:$0xf]
    %v5691 = vld [vmem:[%s5 + $0x78] sm:$0xf]
    %v5692 = vld [vmem:[%s5 + $0x7c] sm:$0xf]
    %v5693 = vld [vmem:[%s5 + $0x80] sm:$0xf]
    %v5694 = vld [vmem:[%s5 + $0x84] sm:$0xf]
    %v5695 = vld [vmem:[%s5 + $0x88] sm:$0xf]
    %v5696 = vld [vmem:[%s5 + $0x8c] sm:$0xf]
    %v5697 = vld [vmem:[%s5 + $0x90] sm:$0xf]
    %v5698 = vld [vmem:[%s5 + $0x94] sm:$0xf]
    %v5699 = vld [vmem:[%s5 + $0x98] sm:$0xf]
    %v5700 = vld [vmem:[%s5 + $0x9c] sm:$0xf]
    %v5701 = vld [vmem:[%s5 + $0xa0] sm:$0xf]
    %v5702 = vld [vmem:[%s5 + $0xa4] sm:$0xf]
    %v5703 = vld [vmem:[%s5 + $0xa8] sm:$0xf]
    %v5704 = vld [vmem:[%s5 + $0xac] sm:$0xf]
    %v5705 = vld [vmem:[%s5 + $0xb0] sm:$0xf]
    %v5706 = vld [vmem:[%s5 + $0xb4] sm:$0xf]
    %v5707 = vld [vmem:[%s5 + $0xb8] sm:$0xf]
    %v5708 = vld [vmem:[%s5 + $0xbc] sm:$0xf]
    %v5709 = vld [vmem:[%s5 + $0xc0] sm:$0xf]
    %v5710 = vld [vmem:[%s5 + $0xc4] sm:$0xf]
    %v5711 = vld [vmem:[%s5 + $0xc8] sm:$0xf]
    %v5712 = vld [vmem:[%s5 + $0xcc] sm:$0xf]
    %v5713 = vld [vmem:[%s5 + $0xd0] sm:$0xf]
    %v5714 = vld [vmem:[%s5 + $0xd4] sm:$0xf]
    %v5715 = vld [vmem:[%s5 + $0xd8] sm:$0xf]
    %v5716 = vld [vmem:[%s5 + $0xdc] sm:$0xf]
    %v5717 = vld [vmem:[%s5 + $0xe0] sm:$0xf]
    %v5718 = vld [vmem:[%s5 + $0xe4] sm:$0xf]
    %v5719 = vld [vmem:[%s5 + $0xe8] sm:$0xf]
    %v5720 = vld [vmem:[%s5 + $0xec] sm:$0xf]
    %v5721 = vld [vmem:[%s5 + $0xf0] sm:$0xf]
    %v5722 = vld [vmem:[%s5 + $0xf4] sm:$0xf]
    %v5723 = vld [vmem:[%s5 + $0xf8] sm:$0xf]
    %v5724 = vld [vmem:[%s5 + $0xfc] sm:$0xf]
    %v5725 = vld [vmem:[%s5 + $0x100] sm:$0xf]
    %v5726 = vld [vmem:[%s5 + $0x104] sm:$0xf]
    %v5727 = vld [vmem:[%s5 + $0x108] sm:$0xf]
    %v5728 = vld [vmem:[%s5 + $0x10c] sm:$0xf]
    %v5729 = vld [vmem:[%s5 + $0x110] sm:$0xf]
    %v5730 = vld [vmem:[%s5 + $0x114] sm:$0xf]
    %v5731 = vld [vmem:[%s5 + $0x118] sm:$0xf]
    %v5732 = vld [vmem:[%s5 + $0x11c] sm:$0xf]
    %v5733 = vld [vmem:[%s5 + $0x120] sm:$0xf]
    %v5734 = vld [vmem:[%s5 + $0x124] sm:$0xf]
    %v5735 = vld [vmem:[%s5 + $0x128] sm:$0xf]
    %v5736 = vld [vmem:[%s5 + $0x12c] sm:$0xf]
    %v5737 = vld [vmem:[%s5 + $0x130] sm:$0xf]
    %v5738 = vld [vmem:[%s5 + $0x134] sm:$0xf]
    %v5739 = vld [vmem:[%s5 + $0x138] sm:$0xf]
    %v5740 = vld [vmem:[%s5 + $0x13c] sm:$0xf]
    %v5741 = vld [vmem:[%s5 + $0x140] sm:$0xf]
    %v5742 = vld [vmem:[%s5 + $0x144] sm:$0xf]
    %v5743 = vld [vmem:[%s5 + $0x148] sm:$0xf]
    %v5744 = vld [vmem:[%s5 + $0x14c] sm:$0xf]
    %v5745 = vld [vmem:[%s5 + $0x150] sm:$0xf]
    %v5746 = vld [vmem:[%s5 + $0x154] sm:$0xf]
    %v5747 = vld [vmem:[%s5 + $0x158] sm:$0xf]
    %v5748 = vld [vmem:[%s5 + $0x15c] sm:$0xf]
    %v5749 = vld [vmem:[%s5 + $0x160] sm:$0xf]
    %v5750 = vld [vmem:[%s5 + $0x164] sm:$0xf]
    %v5751 = vld [vmem:[%s5 + $0x168] sm:$0xf]
    %v5752 = vld [vmem:[%s5 + $0x16c] sm:$0xf]
    %v5753 = vld [vmem:[%s5 + $0x170] sm:$0xf]
    %v5754 = vld [vmem:[%s5 + $0x174] sm:$0xf]
    %v5755 = vld [vmem:[%s5 + $0x178] sm:$0xf]
    %v5756 = vld [vmem:[%s5 + $0x17c] sm:$0xf]
    %v5757 = vld [vmem:[%s5 + $0x180] sm:$0xf]
    %v5758 = vld [vmem:[%s5 + $0x184] sm:$0xf]
    %v5759 = vld [vmem:[%s5 + $0x188] sm:$0xf]
    %v5760 = vld [vmem:[%s5 + $0x18c] sm:$0xf]
    %v5761 = vld [vmem:[%s5 + $0x190] sm:$0xf]
    %v5762 = vld [vmem:[%s5 + $0x194] sm:$0xf]
    %v5763 = vld [vmem:[%s5 + $0x198] sm:$0xf]
    %v5764 = vld [vmem:[%s5 + $0x19c] sm:$0xf]
    %v5765 = vld [vmem:[%s5 + $0x1a0] sm:$0xf]
    %v5766 = vld [vmem:[%s5 + $0x1a4] sm:$0xf]
    %v5767 = vld [vmem:[%s5 + $0x1a8] sm:$0xf]
    %v5768 = vld [vmem:[%s5 + $0x1ac] sm:$0xf]
    %v5769 = vld [vmem:[%s5 + $0x1b0] sm:$0xf]
    %v5770 = vld [vmem:[%s5 + $0x1b4] sm:$0xf]
    %v5771 = vld [vmem:[%s5 + $0x1b8] sm:$0xf]
    %v5772 = vld [vmem:[%s5 + $0x1bc] sm:$0xf]
    %v5773 = vld [vmem:[%s5 + $0x1c0] sm:$0xf]
    %v5774 = vld [vmem:[%s5 + $0x1c4] sm:$0xf]
    %v5775 = vld [vmem:[%s5 + $0x1c8] sm:$0xf]
    %v5776 = vld [vmem:[%s5 + $0x1cc] sm:$0xf]
    %v5777 = vld [vmem:[%s5 + $0x1d0] sm:$0xf]
    %v5778 = vld [vmem:[%s5 + $0x1d4] sm:$0xf]
    %v5779 = vld [vmem:[%s5 + $0x1d8] sm:$0xf]
    %v5780 = vld [vmem:[%s5 + $0x1dc] sm:$0xf]
    %v5781 = vld [vmem:[%s5 + $0x1e0] sm:$0xf]
    %v5782 = vld [vmem:[%s5 + $0x1e4] sm:$0xf]
    %v5783 = vld [vmem:[%s5 + $0x1e8] sm:$0xf]
    %v5784 = vld [vmem:[%s5 + $0x1ec] sm:$0xf]
    %v5785 = vld [vmem:[%s5 + $0x1f0] sm:$0xf]
    %v5786 = vld [vmem:[%s5 + $0x1f4] sm:$0xf]
    %v5787 = vld [vmem:[%s5 + $0x1f8] sm:$0xf]
    %v5788 = vld [vmem:[%s5 + $0x1fc] sm:$0xf]
    %v5789 = vld [vmem:[%s5 + $0x200] sm:$0xf]
    %v5790 = vld [vmem:[%s5 + $0x204] sm:$0xf]
    %v5791 = vld [vmem:[%s5 + $0x208] sm:$0xf]
    %v5792 = vld [vmem:[%s5 + $0x20c] sm:$0xf]
    %v5793 = vld [vmem:[%s5 + $0x210] sm:$0xf]
    %v5794 = vld [vmem:[%s5 + $0x214] sm:$0xf]
    %v5795 = vld [vmem:[%s5 + $0x218] sm:$0xf]
    %v5796 = vld [vmem:[%s5 + $0x21c] sm:$0xf]
    %v5797 = vld [vmem:[%s5 + $0x220] sm:$0xf]
    %v5798 = vld [vmem:[%s5 + $0x224] sm:$0xf]
    %v5799 = vld [vmem:[%s5 + $0x228] sm:$0xf]
    %v5800 = vld [vmem:[%s5 + $0x22c] sm:$0xf]
    %v5801 = vld [vmem:[%s5 + $0x230] sm:$0xf]
    %v5802 = vld [vmem:[%s5 + $0x234] sm:$0xf]
    %v5803 = vld [vmem:[%s5 + $0x238] sm:$0xf]
    %v5804 = vld [vmem:[%s5 + $0x23c] sm:$0xf]
    %v5805 = vld [vmem:[%s5 + $0x240] sm:$0xf]
    %v5806 = vld [vmem:[%s5 + $0x244] sm:$0xf]
    %v5807 = vld [vmem:[%s5 + $0x248] sm:$0xf]
    %v5808 = vld [vmem:[%s5 + $0x24c] sm:$0xf]
    %v5809 = vld [vmem:[%s5 + $0x250] sm:$0xf]
    %v5810 = vld [vmem:[%s5 + $0x254] sm:$0xf]
    %v5811 = vld [vmem:[%s5 + $0x258] sm:$0xf]
    %v5812 = vld [vmem:[%s5 + $0x25c] sm:$0xf]
    %v5813 = vld [vmem:[%s5 + $0x260] sm:$0xf]
    %v5814 = vld [vmem:[%s5 + $0x264] sm:$0xf]
    %v5815 = vld [vmem:[%s5 + $0x268] sm:$0xf]
    %v5816 = vld [vmem:[%s5 + $0x26c] sm:$0xf]
    %v5817 = vld [vmem:[%s5 + $0x270] sm:$0xf]
    %v5818 = vld [vmem:[%s5 + $0x274] sm:$0xf]
    %v5819 = vld [vmem:[%s5 + $0x278] sm:$0xf]
    %v5820 = vld [vmem:[%s5 + $0x27c] sm:$0xf]
    %v5821 = vld [vmem:[%s5 + $0x280] sm:$0xf]
    %v5822 = vld [vmem:[%s5 + $0x284] sm:$0xf]
    %v5823 = vld [vmem:[%s5 + $0x288] sm:$0xf]
    %v5824 = vld [vmem:[%s5 + $0x28c] sm:$0xf]
    %v5825 = vld [vmem:[%s5 + $0x290] sm:$0xf]
    %v5826 = vld [vmem:[%s5 + $0x294] sm:$0xf]
    %v5827 = vld [vmem:[%s5 + $0x298] sm:$0xf]
    %v5828 = vld [vmem:[%s5 + $0x29c] sm:$0xf]
    %v5829 = vld [vmem:[%s5 + $0x2a0] sm:$0xf]
    %v5830 = vld [vmem:[%s5 + $0x2a4] sm:$0xf]
    %v5831 = vld [vmem:[%s5 + $0x2a8] sm:$0xf]
    %v5832 = vld [vmem:[%s5 + $0x2ac] sm:$0xf]
    %v5833 = vld [vmem:[%s5 + $0x2b0] sm:$0xf]
    %v5834 = vld [vmem:[%s5 + $0x2b4] sm:$0xf]
    %v5835 = vld [vmem:[%s5 + $0x2b8] sm:$0xf]
    %v5836 = vld [vmem:[%s5 + $0x2bc] sm:$0xf]
    %v5837 = vld [vmem:[%s5 + $0x2c0] sm:$0xf]
    %v5838 = vld [vmem:[%s5 + $0x2c4] sm:$0xf]
    %v5839 = vld [vmem:[%s5 + $0x2c8] sm:$0xf]
    %v5840 = vld [vmem:[%s5 + $0x2cc] sm:$0xf]
    %v5841 = vld [vmem:[%s5 + $0x2d0] sm:$0xf]
    %v5842 = vld [vmem:[%s5 + $0x2d4] sm:$0xf]
    %v5843 = vld [vmem:[%s5 + $0x2d8] sm:$0xf]
    %v5844 = vld [vmem:[%s5 + $0x2dc] sm:$0xf]
    %v5845 = vld [vmem:[%s5 + $0x2e0] sm:$0xf]
    %v5846 = vld [vmem:[%s5 + $0x2e4] sm:$0xf]
    %v5847 = vld [vmem:[%s5 + $0x2e8] sm:$0xf]
    %v5848 = vld [vmem:[%s5 + $0x2ec] sm:$0xf]
    %v5849 = vld [vmem:[%s5 + $0x2f0] sm:$0xf]
    %v5850 = vld [vmem:[%s5 + $0x2f4] sm:$0xf]
    %v5851 = vld [vmem:[%s5 + $0x2f8] sm:$0xf]
    %v5852 = vld [vmem:[%s5 + $0x2fc] sm:$0xf]
    %v5853 = vld [vmem:[%s5 + $0x300] sm:$0xf]
    %v5854 = vld [vmem:[%s5 + $0x304] sm:$0xf]
    %v5855 = vld [vmem:[%s5 + $0x308] sm:$0xf]
    %v5856 = vld [vmem:[%s5 + $0x30c] sm:$0xf]
    %v5857 = vld [vmem:[%s5 + $0x310] sm:$0xf]
    %v5858 = vld [vmem:[%s5 + $0x314] sm:$0xf]
    %v5859 = vld [vmem:[%s5 + $0x318] sm:$0xf]
    %v5860 = vld [vmem:[%s5 + $0x31c] sm:$0xf]
    %v5861 = vld [vmem:[%s5 + $0x320] sm:$0xf]
    %v5862 = vld [vmem:[%s5 + $0x324] sm:$0xf]
    %v5863 = vld [vmem:[%s5 + $0x328] sm:$0xf]
    %v5864 = vld [vmem:[%s5 + $0x32c] sm:$0xf]
    %v5865 = vld [vmem:[%s5 + $0x330] sm:$0xf]
    %v5866 = vld [vmem:[%s5 + $0x334] sm:$0xf]
    %v5867 = vld [vmem:[%s5 + $0x338] sm:$0xf]
    %v5868 = vld [vmem:[%s5 + $0x33c] sm:$0xf]
    %v5869 = vld [vmem:[%s5 + $0x340] sm:$0xf]
    %v5870 = vld [vmem:[%s5 + $0x344] sm:$0xf]
    %v5871 = vld [vmem:[%s5 + $0x348] sm:$0xf]
    %v5872 = vld [vmem:[%s5 + $0x34c] sm:$0xf]
    %v5873 = vld [vmem:[%s5 + $0x350] sm:$0xf]
    %v5874 = vld [vmem:[%s5 + $0x354] sm:$0xf]
    %v5875 = vld [vmem:[%s5 + $0x358] sm:$0xf]
    %v5876 = vld [vmem:[%s5 + $0x35c] sm:$0xf]
    %v5877 = vld [vmem:[%s5 + $0x360] sm:$0xf]
    %v5878 = vld [vmem:[%s5 + $0x364] sm:$0xf]
    %v5879 = vld [vmem:[%s5 + $0x368] sm:$0xf]
    %v5880 = vld [vmem:[%s5 + $0x36c] sm:$0xf]
    %v5881 = vld [vmem:[%s5 + $0x370] sm:$0xf]
    %v5882 = vld [vmem:[%s5 + $0x374] sm:$0xf]
    %v5883 = vld [vmem:[%s5 + $0x378] sm:$0xf]
    %v5884 = vld [vmem:[%s5 + $0x37c] sm:$0xf]
    %v5885 = vld [vmem:[%s5 + $0x380] sm:$0xf]
    %v5886 = vld [vmem:[%s5 + $0x384] sm:$0xf]
    %v5887 = vld [vmem:[%s5 + $0x388] sm:$0xf]
    %v5888 = vld [vmem:[%s5 + $0x38c] sm:$0xf]
    %v5889 = vld [vmem:[%s5 + $0x390] sm:$0xf]
    %v5890 = vld [vmem:[%s5 + $0x394] sm:$0xf]
    %v5891 = vld [vmem:[%s5 + $0x398] sm:$0xf]
    %v5892 = vld [vmem:[%s5 + $0x39c] sm:$0xf]
    %v5893 = vld [vmem:[%s5 + $0x3a0] sm:$0xf]
    %v5894 = vld [vmem:[%s5 + $0x3a4] sm:$0xf]
    %v5895 = vld [vmem:[%s5 + $0x3a8] sm:$0xf]
    %v5896 = vld [vmem:[%s5 + $0x3ac] sm:$0xf]
    %v5897 = vld [vmem:[%s5 + $0x3b0] sm:$0xf]
    %v5898 = vld [vmem:[%s5 + $0x3b4] sm:$0xf]
    %v5899 = vld [vmem:[%s5 + $0x3b8] sm:$0xf]
    %v5900 = vld [vmem:[%s5 + $0x3bc] sm:$0xf]
    %v5901 = vld [vmem:[%s5 + $0x3c0] sm:$0xf]
    %v5902 = vld [vmem:[%s5 + $0x3c4] sm:$0xf]
    %v5903 = vld [vmem:[%s5 + $0x3c8] sm:$0xf]
    %v5904 = vld [vmem:[%s5 + $0x3cc] sm:$0xf]
    %v5905 = vld [vmem:[%s5 + $0x3d0] sm:$0xf]
    %v5906 = vld [vmem:[%s5 + $0x3d4] sm:$0xf]
    %v5907 = vld [vmem:[%s5 + $0x3d8] sm:$0xf]
    %v5908 = vld [vmem:[%s5 + $0x3dc] sm:$0xf]
    %v5909 = vld [vmem:[%s5 + $0x3e0] sm:$0xf]
    %v5910 = vld [vmem:[%s5 + $0x3e4] sm:$0xf]
    %v5911 = vld [vmem:[%s5 + $0x3e8] sm:$0xf]
    %v5912 = vld [vmem:[%s5 + $0x3ec] sm:$0xf]
    %v5913 = vld [vmem:[%s5 + $0x3f0] sm:$0xf]
    %v5914 = vld [vmem:[%s5 + $0x3f4] sm:$0xf]
    %v5915 = vld [vmem:[%s5 + $0x3f8] sm:$0xf]
    %v5916 = vld [vmem:[%s5 + $0x3fc] sm:$0xf]
    %v5917 = vld [vmem:[%s6] sm:$0x1]
    %v5919 = vlaneseq
    %v5920 = vshrl.u32 %v5919, 7
    %v5921 = vsub.s32 0, %v5920
    %v5922 = vrot.slane %v5917, %v5921
    %v6180 = vunpack.c.l.b16 %v5661
    %v6181 = vunpack.c.l.b16 %v5662
    %v6182 = vunpack.c.l.b16 %v5663
    %v6183 = vunpack.c.l.b16 %v5664
    %v6184 = vunpack.c.l.b16 %v5665
    %v6185 = vunpack.c.l.b16 %v5666
    %v6186 = vunpack.c.l.b16 %v5667
    %v6187 = vunpack.c.l.b16 %v5668
    %v6188 = vunpack.c.l.b16 %v5669
    %v6189 = vunpack.c.l.b16 %v5670
    %v6190 = vunpack.c.l.b16 %v5671
    %v6191 = vunpack.c.l.b16 %v5672
    %v6192 = vunpack.c.l.b16 %v5673
    %v6193 = vunpack.c.l.b16 %v5674
    %v6194 = vunpack.c.l.b16 %v5675
    %v6195 = vunpack.c.l.b16 %v5676
    %v6196 = vunpack.c.l.b16 %v5677
    %v6197 = vunpack.c.l.b16 %v5678
    %v6198 = vunpack.c.l.b16 %v5679
    %v6199 = vunpack.c.l.b16 %v5680
    %v6200 = vunpack.c.l.b16 %v5681
    %v6201 = vunpack.c.l.b16 %v5682
    %v6202 = vunpack.c.l.b16 %v5683
    %v6203 = vunpack.c.l.b16 %v5684
    %v6204 = vunpack.c.l.b16 %v5685
    %v6205 = vunpack.c.l.b16 %v5686
    %v6206 = vunpack.c.l.b16 %v5687
    %v6207 = vunpack.c.l.b16 %v5688
    %v6208 = vunpack.c.l.b16 %v5689
    %v6209 = vunpack.c.l.b16 %v5690
    %v6210 = vunpack.c.l.b16 %v5691
    %v6211 = vunpack.c.l.b16 %v5692
    %v6212 = vunpack.c.l.b16 %v5693
    %v6213 = vunpack.c.l.b16 %v5694
    %v6214 = vunpack.c.l.b16 %v5695
    %v6215 = vunpack.c.l.b16 %v5696
    %v6216 = vunpack.c.l.b16 %v5697
    %v6217 = vunpack.c.l.b16 %v5698
    %v6218 = vunpack.c.l.b16 %v5699
    %v6219 = vunpack.c.l.b16 %v5700
    %v6220 = vunpack.c.l.b16 %v5701
    %v6221 = vunpack.c.l.b16 %v5702
    %v6222 = vunpack.c.l.b16 %v5703
    %v6223 = vunpack.c.l.b16 %v5704
    %v6224 = vunpack.c.l.b16 %v5705
    %v6225 = vunpack.c.l.b16 %v5706
    %v6226 = vunpack.c.l.b16 %v5707
    %v6227 = vunpack.c.l.b16 %v5708
    %v6228 = vunpack.c.l.b16 %v5709
    %v6229 = vunpack.c.l.b16 %v5710
    %v6230 = vunpack.c.l.b16 %v5711
    %v6231 = vunpack.c.l.b16 %v5712
    %v6232 = vunpack.c.l.b16 %v5713
    %v6233 = vunpack.c.l.b16 %v5714
    %v6234 = vunpack.c.l.b16 %v5715
    %v6235 = vunpack.c.l.b16 %v5716
    %v6236 = vunpack.c.l.b16 %v5717
    %v6237 = vunpack.c.l.b16 %v5718
    %v6238 = vunpack.c.l.b16 %v5719
    %v6239 = vunpack.c.l.b16 %v5720
    %v6240 = vunpack.c.l.b16 %v5721
    %v6241 = vunpack.c.l.b16 %v5722
    %v6242 = vunpack.c.l.b16 %v5723
    %v6243 = vunpack.c.l.b16 %v5724
    %v6244 = vunpack.c.l.b16 %v5725
    %v6245 = vunpack.c.l.b16 %v5726
    %v6246 = vunpack.c.l.b16 %v5727
    %v6247 = vunpack.c.l.b16 %v5728
    %v6248 = vunpack.c.l.b16 %v5729
    %v6249 = vunpack.c.l.b16 %v5730
    %v6250 = vunpack.c.l.b16 %v5731
    %v6251 = vunpack.c.l.b16 %v5732
    %v6252 = vunpack.c.l.b16 %v5733
    %v6253 = vunpack.c.l.b16 %v5734
    %v6254 = vunpack.c.l.b16 %v5735
    %v6255 = vunpack.c.l.b16 %v5736
    %v6256 = vunpack.c.l.b16 %v5737
    %v6257 = vunpack.c.l.b16 %v5738
    %v6258 = vunpack.c.l.b16 %v5739
    %v6259 = vunpack.c.l.b16 %v5740
    %v6260 = vunpack.c.l.b16 %v5741
    %v6261 = vunpack.c.l.b16 %v5742
    %v6262 = vunpack.c.l.b16 %v5743
    %v6263 = vunpack.c.l.b16 %v5744
    %v6264 = vunpack.c.l.b16 %v5745
    %v6265 = vunpack.c.l.b16 %v5746
    %v6266 = vunpack.c.l.b16 %v5747
    %v6267 = vunpack.c.l.b16 %v5748
    %v6268 = vunpack.c.l.b16 %v5749
    %v6269 = vunpack.c.l.b16 %v5750
    %v6270 = vunpack.c.l.b16 %v5751
    %v6271 = vunpack.c.l.b16 %v5752
    %v6272 = vunpack.c.l.b16 %v5753
    %v6273 = vunpack.c.l.b16 %v5754
    %v6274 = vunpack.c.l.b16 %v5755
    %v6275 = vunpack.c.l.b16 %v5756
    %v6276 = vunpack.c.l.b16 %v5757
    %v6277 = vunpack.c.l.b16 %v5758
    %v6278 = vunpack.c.l.b16 %v5759
    %v6279 = vunpack.c.l.b16 %v5760
    %v6280 = vunpack.c.l.b16 %v5761
    %v6281 = vunpack.c.l.b16 %v5762
    %v6282 = vunpack.c.l.b16 %v5763
    %v6283 = vunpack.c.l.b16 %v5764
    %v6284 = vunpack.c.l.b16 %v5765
    %v6285 = vunpack.c.l.b16 %v5766
    %v6286 = vunpack.c.l.b16 %v5767
    %v6287 = vunpack.c.l.b16 %v5768
    %v6288 = vunpack.c.l.b16 %v5769
    %v6289 = vunpack.c.l.b16 %v5770
    %v6290 = vunpack.c.l.b16 %v5771
    %v6291 = vunpack.c.l.b16 %v5772
    %v6292 = vunpack.c.l.b16 %v5773
    %v6293 = vunpack.c.l.b16 %v5774
    %v6294 = vunpack.c.l.b16 %v5775
    %v6295 = vunpack.c.l.b16 %v5776
    %v6296 = vunpack.c.l.b16 %v5777
    %v6297 = vunpack.c.l.b16 %v5778
    %v6298 = vunpack.c.l.b16 %v5779
    %v6299 = vunpack.c.l.b16 %v5780
    %v6300 = vunpack.c.l.b16 %v5781
    %v6301 = vunpack.c.l.b16 %v5782
    %v6302 = vunpack.c.l.b16 %v5783
    %v6303 = vunpack.c.l.b16 %v5784
    %v6304 = vunpack.c.l.b16 %v5785
    %v6305 = vunpack.c.l.b16 %v5786
    %v6306 = vunpack.c.l.b16 %v5787
    %v6307 = vunpack.c.l.b16 %v5788
    %v6308 = vunpack.c.l.b16 %v5789
    %v6309 = vunpack.c.l.b16 %v5790
    %v6310 = vunpack.c.l.b16 %v5791
    %v6311 = vunpack.c.l.b16 %v5792
    %v6312 = vunpack.c.l.b16 %v5793
    %v6313 = vunpack.c.l.b16 %v5794
    %v6314 = vunpack.c.l.b16 %v5795
    %v6315 = vunpack.c.l.b16 %v5796
    %v6316 = vunpack.c.l.b16 %v5797
    %v6317 = vunpack.c.l.b16 %v5798
    %v6318 = vunpack.c.l.b16 %v5799
    %v6319 = vunpack.c.l.b16 %v5800
    %v6320 = vunpack.c.l.b16 %v5801
    %v6321 = vunpack.c.l.b16 %v5802
    %v6322 = vunpack.c.l.b16 %v5803
    %v6323 = vunpack.c.l.b16 %v5804
    %v6324 = vunpack.c.l.b16 %v5805
    %v6325 = vunpack.c.l.b16 %v5806
    %v6326 = vunpack.c.l.b16 %v5807
    %v6327 = vunpack.c.l.b16 %v5808
    %v6328 = vunpack.c.l.b16 %v5809
    %v6329 = vunpack.c.l.b16 %v5810
    %v6330 = vunpack.c.l.b16 %v5811
    %v6331 = vunpack.c.l.b16 %v5812
    %v6332 = vunpack.c.l.b16 %v5813
    %v6333 = vunpack.c.l.b16 %v5814
    %v6334 = vunpack.c.l.b16 %v5815
    %v6335 = vunpack.c.l.b16 %v5816
    %v6336 = vunpack.c.l.b16 %v5817
    %v6337 = vunpack.c.l.b16 %v5818
    %v6338 = vunpack.c.l.b16 %v5819
    %v6339 = vunpack.c.l.b16 %v5820
    %v6340 = vunpack.c.l.b16 %v5821
    %v6341 = vunpack.c.l.b16 %v5822
    %v6342 = vunpack.c.l.b16 %v5823
    %v6343 = vunpack.c.l.b16 %v5824
    %v6344 = vunpack.c.l.b16 %v5825
    %v6345 = vunpack.c.l.b16 %v5826
    %v6346 = vunpack.c.l.b16 %v5827
    %v6347 = vunpack.c.l.b16 %v5828
    %v6348 = vunpack.c.l.b16 %v5829
    %v6349 = vunpack.c.l.b16 %v5830
    %v6350 = vunpack.c.l.b16 %v5831
    %v6351 = vunpack.c.l.b16 %v5832
    %v6352 = vunpack.c.l.b16 %v5833
    %v6353 = vunpack.c.l.b16 %v5834
    %v6354 = vunpack.c.l.b16 %v5835
    %v6355 = vunpack.c.l.b16 %v5836
    %v6356 = vunpack.c.l.b16 %v5837
    %v6357 = vunpack.c.l.b16 %v5838
    %v6358 = vunpack.c.l.b16 %v5839
    %v6359 = vunpack.c.l.b16 %v5840
    %v6360 = vunpack.c.l.b16 %v5841
    %v6361 = vunpack.c.l.b16 %v5842
    %v6362 = vunpack.c.l.b16 %v5843
    %v6363 = vunpack.c.l.b16 %v5844
    %v6364 = vunpack.c.l.b16 %v5845
    %v6365 = vunpack.c.l.b16 %v5846
    %v6366 = vunpack.c.l.b16 %v5847
    %v6367 = vunpack.c.l.b16 %v5848
    %v6368 = vunpack.c.l.b16 %v5849
    %v6369 = vunpack.c.l.b16 %v5850
    %v6370 = vunpack.c.l.b16 %v5851
    %v6371 = vunpack.c.l.b16 %v5852
    %v6372 = vunpack.c.l.b16 %v5853
    %v6373 = vunpack.c.l.b16 %v5854
    %v6374 = vunpack.c.l.b16 %v5855
    %v6375 = vunpack.c.l.b16 %v5856
    %v6376 = vunpack.c.l.b16 %v5857
    %v6377 = vunpack.c.l.b16 %v5858
    %v6378 = vunpack.c.l.b16 %v5859
    %v6379 = vunpack.c.l.b16 %v5860
    %v6380 = vunpack.c.l.b16 %v5861
    %v6381 = vunpack.c.l.b16 %v5862
    %v6382 = vunpack.c.l.b16 %v5863
    %v6383 = vunpack.c.l.b16 %v5864
    %v6384 = vunpack.c.l.b16 %v5865
    %v6385 = vunpack.c.l.b16 %v5866
    %v6386 = vunpack.c.l.b16 %v5867
    %v6387 = vunpack.c.l.b16 %v5868
    %v6388 = vunpack.c.l.b16 %v5869
    %v6389 = vunpack.c.l.b16 %v5870
    %v6390 = vunpack.c.l.b16 %v5871
    %v6391 = vunpack.c.l.b16 %v5872
    %v6392 = vunpack.c.l.b16 %v5873
    %v6393 = vunpack.c.l.b16 %v5874
    %v6394 = vunpack.c.l.b16 %v5875
    %v6395 = vunpack.c.l.b16 %v5876
    %v6396 = vunpack.c.l.b16 %v5877
    %v6397 = vunpack.c.l.b16 %v5878
    %v6398 = vunpack.c.l.b16 %v5879
    %v6399 = vunpack.c.l.b16 %v5880
    %v6400 = vunpack.c.l.b16 %v5881
    %v6401 = vunpack.c.l.b16 %v5882
    %v6402 = vunpack.c.l.b16 %v5883
    %v6403 = vunpack.c.l.b16 %v5884
    %v6404 = vunpack.c.l.b16 %v5885
    %v6405 = vunpack.c.l.b16 %v5886
    %v6406 = vunpack.c.l.b16 %v5887
    %v6407 = vunpack.c.l.b16 %v5888
    %v6408 = vunpack.c.l.b16 %v5889
    %v6409 = vunpack.c.l.b16 %v5890
    %v6410 = vunpack.c.l.b16 %v5891
    %v6411 = vunpack.c.l.b16 %v5892
    %v6412 = vunpack.c.l.b16 %v5893
    %v6413 = vunpack.c.l.b16 %v5894
    %v6414 = vunpack.c.l.b16 %v5895
    %v6415 = vunpack.c.l.b16 %v5896
    %v6416 = vunpack.c.l.b16 %v5897
    %v6417 = vunpack.c.l.b16 %v5898
    %v6418 = vunpack.c.l.b16 %v5899
    %v6419 = vunpack.c.l.b16 %v5900
    %v6420 = vunpack.c.l.b16 %v5901
    %v6421 = vunpack.c.l.b16 %v5902
    %v6422 = vunpack.c.l.b16 %v5903
    %v6423 = vunpack.c.l.b16 %v5904
    %v6424 = vunpack.c.l.b16 %v5905
    %v6425 = vunpack.c.l.b16 %v5906
    %v6426 = vunpack.c.l.b16 %v5907
    %v6427 = vunpack.c.l.b16 %v5908
    %v6428 = vunpack.c.l.b16 %v5909
    %v6429 = vunpack.c.l.b16 %v5910
    %v6430 = vunpack.c.l.b16 %v5911
    %v6431 = vunpack.c.l.b16 %v5912
    %v6432 = vunpack.c.l.b16 %v5913
    %v6433 = vunpack.c.l.b16 %v5914
    %v6434 = vunpack.c.l.b16 %v5915
    %v6435 = vunpack.c.l.b16 %v5916
    %v6436 = vpack.c.b16 %v6181, %v6180
    %v6437 = vpack.c.b16 %v6183, %v6182
    %v6438 = vpack.c.b16 %v6185, %v6184
    %v6439 = vpack.c.b16 %v6187, %v6186
    %v6440 = vpack.c.b16 %v6189, %v6188
    %v6441 = vpack.c.b16 %v6191, %v6190
    %v6442 = vpack.c.b16 %v6193, %v6192
    %v6443 = vpack.c.b16 %v6195, %v6194
    %v6444 = vpack.c.b16 %v6197, %v6196
    %v6445 = vpack.c.b16 %v6199, %v6198
    %v6446 = vpack.c.b16 %v6201, %v6200
    %v6447 = vpack.c.b16 %v6203, %v6202
    %v6448 = vpack.c.b16 %v6205, %v6204
    %v6449 = vpack.c.b16 %v6207, %v6206
    %v6450 = vpack.c.b16 %v6209, %v6208
    %v6451 = vpack.c.b16 %v6211, %v6210
    %v6452 = vpack.c.b16 %v6213, %v6212
    %v6453 = vpack.c.b16 %v6215, %v6214
    %v6454 = vpack.c.b16 %v6217, %v6216
    %v6455 = vpack.c.b16 %v6219, %v6218
    %v6456 = vpack.c.b16 %v6221, %v6220
    %v6457 = vpack.c.b16 %v6223, %v6222
    %v6458 = vpack.c.b16 %v6225, %v6224
    %v6459 = vpack.c.b16 %v6227, %v6226
    %v6460 = vpack.c.b16 %v6229, %v6228
    %v6461 = vpack.c.b16 %v6231, %v6230
    %v6462 = vpack.c.b16 %v6233, %v6232
    %v6463 = vpack.c.b16 %v6235, %v6234
    %v6464 = vpack.c.b16 %v6237, %v6236
    %v6465 = vpack.c.b16 %v6239, %v6238
    %v6466 = vpack.c.b16 %v6241, %v6240
    %v6467 = vpack.c.b16 %v6243, %v6242
    %v6468 = vpack.c.b16 %v6245, %v6244
    %v6469 = vpack.c.b16 %v6247, %v6246
    %v6470 = vpack.c.b16 %v6249, %v6248
    %v6471 = vpack.c.b16 %v6251, %v6250
    %v6472 = vpack.c.b16 %v6253, %v6252
    %v6473 = vpack.c.b16 %v6255, %v6254
    %v6474 = vpack.c.b16 %v6257, %v6256
    %v6475 = vpack.c.b16 %v6259, %v6258
    %v6476 = vpack.c.b16 %v6261, %v6260
    %v6477 = vpack.c.b16 %v6263, %v6262
    %v6478 = vpack.c.b16 %v6265, %v6264
    %v6479 = vpack.c.b16 %v6267, %v6266
    %v6480 = vpack.c.b16 %v6269, %v6268
    %v6481 = vpack.c.b16 %v6271, %v6270
    %v6482 = vpack.c.b16 %v6273, %v6272
    %v6483 = vpack.c.b16 %v6275, %v6274
    %v6484 = vpack.c.b16 %v6277, %v6276
    %v6485 = vpack.c.b16 %v6279, %v6278
    %v6486 = vpack.c.b16 %v6281, %v6280
    %v6487 = vpack.c.b16 %v6283, %v6282
    %v6488 = vpack.c.b16 %v6285, %v6284
    %v6489 = vpack.c.b16 %v6287, %v6286
    %v6490 = vpack.c.b16 %v6289, %v6288
    %v6491 = vpack.c.b16 %v6291, %v6290
    %v6492 = vpack.c.b16 %v6293, %v6292
    %v6493 = vpack.c.b16 %v6295, %v6294
    %v6494 = vpack.c.b16 %v6297, %v6296
    %v6495 = vpack.c.b16 %v6299, %v6298
    %v6496 = vpack.c.b16 %v6301, %v6300
    %v6497 = vpack.c.b16 %v6303, %v6302
    %v6498 = vpack.c.b16 %v6305, %v6304
    %v6499 = vpack.c.b16 %v6307, %v6306
    %v6500 = vpack.c.b16 %v6309, %v6308
    %v6501 = vpack.c.b16 %v6311, %v6310
    %v6502 = vpack.c.b16 %v6313, %v6312
    %v6503 = vpack.c.b16 %v6315, %v6314
    %v6504 = vpack.c.b16 %v6317, %v6316
    %v6505 = vpack.c.b16 %v6319, %v6318
    %v6506 = vpack.c.b16 %v6321, %v6320
    %v6507 = vpack.c.b16 %v6323, %v6322
    %v6508 = vpack.c.b16 %v6325, %v6324
    %v6509 = vpack.c.b16 %v6327, %v6326
    %v6510 = vpack.c.b16 %v6329, %v6328
    %v6511 = vpack.c.b16 %v6331, %v6330
    %v6512 = vpack.c.b16 %v6333, %v6332
    %v6513 = vpack.c.b16 %v6335, %v6334
    %v6514 = vpack.c.b16 %v6337, %v6336
    %v6515 = vpack.c.b16 %v6339, %v6338
    %v6516 = vpack.c.b16 %v6341, %v6340
    %v6517 = vpack.c.b16 %v6343, %v6342
    %v6518 = vpack.c.b16 %v6345, %v6344
    %v6519 = vpack.c.b16 %v6347, %v6346
    %v6520 = vpack.c.b16 %v6349, %v6348
    %v6521 = vpack.c.b16 %v6351, %v6350
    %v6522 = vpack.c.b16 %v6353, %v6352
    %v6523 = vpack.c.b16 %v6355, %v6354
    %v6524 = vpack.c.b16 %v6357, %v6356
    %v6525 = vpack.c.b16 %v6359, %v6358
    %v6526 = vpack.c.b16 %v6361, %v6360
    %v6527 = vpack.c.b16 %v6363, %v6362
    %v6528 = vpack.c.b16 %v6365, %v6364
    %v6529 = vpack.c.b16 %v6367, %v6366
    %v6530 = vpack.c.b16 %v6369, %v6368
    %v6531 = vpack.c.b16 %v6371, %v6370
    %v6532 = vpack.c.b16 %v6373, %v6372
    %v6533 = vpack.c.b16 %v6375, %v6374
    %v6534 = vpack.c.b16 %v6377, %v6376
    %v6535 = vpack.c.b16 %v6379, %v6378
    %v6536 = vpack.c.b16 %v6381, %v6380
    %v6537 = vpack.c.b16 %v6383, %v6382
    %v6538 = vpack.c.b16 %v6385, %v6384
    %v6539 = vpack.c.b16 %v6387, %v6386
    %v6540 = vpack.c.b16 %v6389, %v6388
    %v6541 = vpack.c.b16 %v6391, %v6390
    %v6542 = vpack.c.b16 %v6393, %v6392
    %v6543 = vpack.c.b16 %v6395, %v6394
    %v6544 = vpack.c.b16 %v6397, %v6396
    %v6545 = vpack.c.b16 %v6399, %v6398
    %v6546 = vpack.c.b16 %v6401, %v6400
    %v6547 = vpack.c.b16 %v6403, %v6402
    %v6548 = vpack.c.b16 %v6405, %v6404
    %v6549 = vpack.c.b16 %v6407, %v6406
    %v6550 = vpack.c.b16 %v6409, %v6408
    %v6551 = vpack.c.b16 %v6411, %v6410
    %v6552 = vpack.c.b16 %v6413, %v6412
    %v6553 = vpack.c.b16 %v6415, %v6414
    %v6554 = vpack.c.b16 %v6417, %v6416
    %v6555 = vpack.c.b16 %v6419, %v6418
    %v6556 = vpack.c.b16 %v6421, %v6420
    %v6557 = vpack.c.b16 %v6423, %v6422
    %v6558 = vpack.c.b16 %v6425, %v6424
    %v6559 = vpack.c.b16 %v6427, %v6426
    %v6560 = vpack.c.b16 %v6429, %v6428
    %v6561 = vpack.c.b16 %v6431, %v6430
    %v6562 = vpack.c.b16 %v6433, %v6432
    %v6563 = vpack.c.b16 %v6435, %v6434
    %6692 = vmatprep.subr.bf16.mxu0 0
    %6693 = vmatpush1.bf16.msra.mxu0 %v6436
    %6694 = vmatprep.subr.bf16.mxu0 0
    %6695 = vmatpush1.bf16.msra.mxu0 %v6437
    %6696 = vmatprep.subr.bf16.mxu0 0
    %6697 = vmatpush1.bf16.msra.mxu0 %v6438
    %6698 = vmatprep.subr.bf16.mxu0 0
    %6699 = vmatpush1.bf16.msra.mxu0 %v6439
    %6700 = vmatprep.subr.bf16.mxu0 0
    %6701 = vmatpush1.bf16.msra.mxu0 %v6440
    %6702 = vmatprep.subr.bf16.mxu0 0
    %6703 = vmatpush1.bf16.msra.mxu0 %v6441
    %6704 = vmatprep.subr.bf16.mxu0 0
    %6705 = vmatpush1.bf16.msra.mxu0 %v6442
    %6706 = vmatprep.subr.bf16.mxu0 0
    %6707 = vmatpush1.bf16.msra.mxu0 %v6443
    %6708 = vmatprep.subr.bf16.mxu0 0
    %6709 = vmatpush1.bf16.msra.mxu0 %v6444
    %6710 = vmatprep.subr.bf16.mxu0 0
    %6711 = vmatpush1.bf16.msra.mxu0 %v6445
    %6712 = vmatprep.subr.bf16.mxu0 0
    %6713 = vmatpush1.bf16.msra.mxu0 %v6446
    %6714 = vmatprep.subr.bf16.mxu0 0
    %6715 = vmatpush1.bf16.msra.mxu0 %v6447
    %6716 = vmatprep.subr.bf16.mxu0 0
    %6717 = vmatpush1.bf16.msra.mxu0 %v6448
    %6718 = vmatprep.subr.bf16.mxu0 0
    %6719 = vmatpush1.bf16.msra.mxu0 %v6449
    %6720 = vmatprep.subr.bf16.mxu0 0
    %6721 = vmatpush1.bf16.msra.mxu0 %v6450
    %6722 = vmatprep.subr.bf16.mxu0 0
    %6723 = vmatpush1.bf16.msra.mxu0 %v6451
    %6724 = vmatprep.mubr.bf16.mxu0 %v5646
    %6725 = vmatmul.mubr.bf16.gmra.mrb[0].mxu0 %v5645
    %v6726 = vpop.f32.mrb[0].mxu0
    %v6727 = vadd.f32 %v5922, %v6726
    %v6728 = vpop.f32.mrb[0].mxu0
    %v6729 = vpop.f32.mrb[0].mxu0
    %v6730 = vpop.f32.mrb[0].mxu0
    %6731 = vdwg.mxu0
    %6732 = vmatprep.subr.bf16.mxu0 0
    %6733 = vmatpush1.bf16.msra.mxu0 %v6452
    %6734 = vmatprep.subr.bf16.mxu0 0
    %6735 = vmatpush1.bf16.msra.mxu0 %v6453
    %6736 = vmatprep.subr.bf16.mxu0 0
    %6737 = vmatpush1.bf16.msra.mxu0 %v6454
    %6738 = vmatprep.subr.bf16.mxu0 0
    %6739 = vmatpush1.bf16.msra.mxu0 %v6455
    %6740 = vmatprep.subr.bf16.mxu0 0
    %6741 = vmatpush1.bf16.msra.mxu0 %v6456
    %6742 = vmatprep.subr.bf16.mxu0 0
    %6743 = vmatpush1.bf16.msra.mxu0 %v6457
    %6744 = vmatprep.subr.bf16.mxu0 0
    %6745 = vmatpush1.bf16.msra.mxu0 %v6458
    %6746 = vmatprep.subr.bf16.mxu0 0
    %6747 = vmatpush1.bf16.msra.mxu0 %v6459
    %6748 = vmatprep.subr.bf16.mxu0 0
    %6749 = vmatpush1.bf16.msra.mxu0 %v6460
    %6750 = vmatprep.subr.bf16.mxu0 0
    %6751 = vmatpush1.bf16.msra.mxu0 %v6461
    %6752 = vmatprep.subr.bf16.mxu0 0
    %6753 = vmatpush1.bf16.msra.mxu0 %v6462
    %6754 = vmatprep.subr.bf16.mxu0 0
    %6755 = vmatpush1.bf16.msra.mxu0 %v6463
    %6756 = vmatprep.subr.bf16.mxu0 0
    %6757 = vmatpush1.bf16.msra.mxu0 %v6464
    %6758 = vmatprep.subr.bf16.mxu0 0
    %6759 = vmatpush1.bf16.msra.mxu0 %v6465
    %6760 = vmatprep.subr.bf16.mxu0 0
    %6761 = vmatpush1.bf16.msra.mxu0 %v6466
    %6762 = vmatprep.subr.bf16.mxu0 0
    %6763 = vmatpush1.bf16.msra.mxu0 %v6467
    %6764 = vmatprep.mubr.bf16.mxu0 %v5648
    %6765 = vmatmul.mubr.bf16.gmra.mrb[0].mxu0 %v5647
    %v6766 = vpop.f32.mrb[0].mxu0
    %v6767 = vadd.f32 %v6727, %v6766
    %v6768 = vpop.f32.mrb[0].mxu0
    %v6769 = vpop.f32.mrb[0].mxu0
    %v6770 = vpop.f32.mrb[0].mxu0
    %6771 = vdwg.mxu0
    %6772 = vmatprep.subr.bf16.mxu0 0
    %6773 = vmatpush1.bf16.msra.mxu0 %v6468
    %6774 = vmatprep.subr.bf16.mxu0 0
    %6775 = vmatpush1.bf16.msra.mxu0 %v6469
    %6776 = vmatprep.subr.bf16.mxu0 0
    %6777 = vmatpush1.bf16.msra.mxu0 %v6470
    %6778 = vmatprep.subr.bf16.mxu0 0
    %6779 = vmatpush1.bf16.msra.mxu0 %v6471
    %6780 = vmatprep.subr.bf16.mxu0 0
    %6781 = vmatpush1.bf16.msra.mxu0 %v6472
    %6782 = vmatprep.subr.bf16.mxu0 0
    %6783 = vmatpush1.bf16.msra.mxu0 %v6473
    %6784 = vmatprep.subr.bf16.mxu0 0
    %6785 = vmatpush1.bf16.msra.mxu0 %v6474
    %6786 = vmatprep.subr.bf16.mxu0 0
    %6787 = vmatpush1.bf16.msra.mxu0 %v6475
    %6788 = vmatprep.subr.bf16.mxu0 0
    %6789 = vmatpush1.bf16.msra.mxu0 %v6476
    %6790 = vmatprep.subr.bf16.mxu0 0
    %6791 = vmatpush1.bf16.msra.mxu0 %v6477
    %6792 = vmatprep.subr.bf16.mxu0 0
    %6793 = vmatpush1.bf16.msra.mxu0 %v6478
    %6794 = vmatprep.subr.bf16.mxu0 0
    %6795 = vmatpush1.bf16.msra.mxu0 %v6479
    %6796 = vmatprep.subr.bf16.mxu0 0
    %6797 = vmatpush1.bf16.msra.mxu0 %v6480
    %6798 = vmatprep.subr.bf16.mxu0 0
    %6799 = vmatpush1.bf16.msra.mxu0 %v6481
    %6800 = vmatprep.subr.bf16.mxu0 0
    %6801 = vmatpush1.bf16.msra.mxu0 %v6482
    %6802 = vmatprep.subr.bf16.mxu0 0
    %6803 = vmatpush1.bf16.msra.mxu0 %v6483
    %6804 = vmatprep.mubr.bf16.mxu0 %v5650
    %6805 = vmatmul.mubr.bf16.gmra.mrb[0].mxu0 %v5649
    %v6806 = vpop.f32.mrb[0].mxu0
    %v6807 = vadd.f32 %v6767, %v6806
    %v6808 = vpop.f32.mrb[0].mxu0
    %v6809 = vpop.f32.mrb[0].mxu0
    %v6810 = vpop.f32.mrb[0].mxu0
    %6811 = vdwg.mxu0
    %6812 = vmatprep.subr.bf16.mxu0 0
    %6813 = vmatpush1.bf16.msra.mxu0 %v6484
    %6814 = vmatprep.subr.bf16.mxu0 0
    %6815 = vmatpush1.bf16.msra.mxu0 %v6485
    %6816 = vmatprep.subr.bf16.mxu0 0
    %6817 = vmatpush1.bf16.msra.mxu0 %v6486
    %6818 = vmatprep.subr.bf16.mxu0 0
    %6819 = vmatpush1.bf16.msra.mxu0 %v6487
    %6820 = vmatprep.subr.bf16.mxu0 0
    %6821 = vmatpush1.bf16.msra.mxu0 %v6488
    %6822 = vmatprep.subr.bf16.mxu0 0
    %6823 = vmatpush1.bf16.msra.mxu0 %v6489
    %6824 = vmatprep.subr.bf16.mxu0 0
    %6825 = vmatpush1.bf16.msra.mxu0 %v6490
    %6826 = vmatprep.subr.bf16.mxu0 0
    %6827 = vmatpush1.bf16.msra.mxu0 %v6491
    %6828 = vmatprep.subr.bf16.mxu0 0
    %6829 = vmatpush1.bf16.msra.mxu0 %v6492
    %6830 = vmatprep.subr.bf16.mxu0 0
    %6831 = vmatpush1.bf16.msra.mxu0 %v6493
    %6832 = vmatprep.subr.bf16.mxu0 0
    %6833 = vmatpush1.bf16.msra.mxu0 %v6494
    %6834 = vmatprep.subr.bf16.mxu0 0
    %6835 = vmatpush1.bf16.msra.mxu0 %v6495
    %6836 = vmatprep.subr.bf16.mxu0 0
    %6837 = vmatpush1.bf16.msra.mxu0 %v6496
    %6838 = vmatprep.subr.bf16.mxu0 0
    %6839 = vmatpush1.bf16.msra.mxu0 %v6497
    %6840 = vmatprep.subr.bf16.mxu0 0
    %6841 = vmatpush1.bf16.msra.mxu0 %v6498
    %6842 = vmatprep.subr.bf16.mxu0 0
    %6843 = vmatpush1.bf16.msra.mxu0 %v6499
    %6844 = vmatprep.mubr.bf16.mxu0 %v5652
    %6845 = vmatmul.mubr.bf16.gmra.mrb[0].mxu0 %v5651
    %v6846 = vpop.f32.mrb[0].mxu0
    %v6847 = vadd.f32 %v6807, %v6846
    %v6848 = vpop.f32.mrb[0].mxu0
    %v6849 = vpop.f32.mrb[0].mxu0
    %v6850 = vpop.f32.mrb[0].mxu0
    %6851 = vdwg.mxu0
    %6852 = vmatprep.subr.bf16.mxu0 0
    %6853 = vmatpush1.bf16.msra.mxu0 %v6500
    %6854 = vmatprep.subr.bf16.mxu0 0
    %6855 = vmatpush1.bf16.msra.mxu0 %v6501
    %6856 = vmatprep.subr.bf16.mxu0 0
    %6857 = vmatpush1.bf16.msra.mxu0 %v6502
    %6858 = vmatprep.subr.bf16.mxu0 0
    %6859 = vmatpush1.bf16.msra.mxu0 %v6503
    %6860 = vmatprep.subr.bf16.mxu0 0
    %6861 = vmatpush1.bf16.msra.mxu0 %v6504
    %6862 = vmatprep.subr.bf16.mxu0 0
    %6863 = vmatpush1.bf16.msra.mxu0 %v6505
    %6864 = vmatprep.subr.bf16.mxu0 0
    %6865 = vmatpush1.bf16.msra.mxu0 %v6506
    %6866 = vmatprep.subr.bf16.mxu0 0
    %6867 = vmatpush1.bf16.msra.mxu0 %v6507
    %6868 = vmatprep.subr.bf16.mxu0 0
    %6869 = vmatpush1.bf16.msra.mxu0 %v6508
    %6870 = vmatprep.subr.bf16.mxu0 0
    %6871 = vmatpush1.bf16.msra.mxu0 %v6509
    %6872 = vmatprep.subr.bf16.mxu0 0
    %6873 = vmatpush1.bf16.msra.mxu0 %v6510
    %6874 = vmatprep.subr.bf16.mxu0 0
    %6875 = vmatpush1.bf16.msra.mxu0 %v6511
    %6876 = vmatprep.subr.bf16.mxu0 0
    %6877 = vmatpush1.bf16.msra.mxu0 %v6512
    %6878 = vmatprep.subr.bf16.mxu0 0
    %6879 = vmatpush1.bf16.msra.mxu0 %v6513
    %6880 = vmatprep.subr.bf16.mxu0 0
    %6881 = vmatpush1.bf16.msra.mxu0 %v6514
    %6882 = vmatprep.subr.bf16.mxu0 0
    %6883 = vmatpush1.bf16.msra.mxu0 %v6515
    %6884 = vmatprep.mubr.bf16.mxu0 %v5654
    %6885 = vmatmul.mubr.bf16.gmra.mrb[0].mxu0 %v5653
    %v6886 = vpop.f32.mrb[0].mxu0
    %v6887 = vadd.f32 %v6847, %v6886
    %v6888 = vpop.f32.mrb[0].mxu0
    %v6889 = vpop.f32.mrb[0].mxu0
    %v6890 = vpop.f32.mrb[0].mxu0
    %6891 = vdwg.mxu0
    %6892 = vmatprep.subr.bf16.mxu0 0
    %6893 = vmatpush1.bf16.msra.mxu0 %v6516
    %6894 = vmatprep.subr.bf16.mxu0 0
    %6895 = vmatpush1.bf16.msra.mxu0 %v6517
    %6896 = vmatprep.subr.bf16.mxu0 0
    %6897 = vmatpush1.bf16.msra.mxu0 %v6518
    %6898 = vmatprep.subr.bf16.mxu0 0
    %6899 = vmatpush1.bf16.msra.mxu0 %v6519
    %6900 = vmatprep.subr.bf16.mxu0 0
    %6901 = vmatpush1.bf16.msra.mxu0 %v6520
    %6902 = vmatprep.subr.bf16.mxu0 0
    %6903 = vmatpush1.bf16.msra.mxu0 %v6521
    %6904 = vmatprep.subr.bf16.mxu0 0
    %6905 = vmatpush1.bf16.msra.mxu0 %v6522
    %6906 = vmatprep.subr.bf16.mxu0 0
    %6907 = vmatpush1.bf16.msra.mxu0 %v6523
    %6908 = vmatprep.subr.bf16.mxu0 0
    %6909 = vmatpush1.bf16.msra.mxu0 %v6524
    %6910 = vmatprep.subr.bf16.mxu0 0
    %6911 = vmatpush1.bf16.msra.mxu0 %v6525
    %6912 = vmatprep.subr.bf16.mxu0 0
    %6913 = vmatpush1.bf16.msra.mxu0 %v6526
    %6914 = vmatprep.subr.bf16.mxu0 0
    %6915 = vmatpush1.bf16.msra.mxu0 %v6527
    %6916 = vmatprep.subr.bf16.mxu0 0
    %6917 = vmatpush1.bf16.msra.mxu0 %v6528
    %6918 = vmatprep.subr.bf16.mxu0 0
    %6919 = vmatpush1.bf16.msra.mxu0 %v6529
    %6920 = vmatprep.subr.bf16.mxu0 0
    %6921 = vmatpush1.bf16.msra.mxu0 %v6530
    %6922 = vmatprep.subr.bf16.mxu0 0
    %6923 = vmatpush1.bf16.msra.mxu0 %v6531
    %6924 = vmatprep.mubr.bf16.mxu0 %v5656
    %6925 = vmatmul.mubr.bf16.gmra.mrb[0].mxu0 %v5655
    %v6926 = vpop.f32.mrb[0].mxu0
    %v6927 = vadd.f32 %v6887, %v6926
    %v6928 = vpop.f32.mrb[0].mxu0
    %v6929 = vpop.f32.mrb[0].mxu0
    %v6930 = vpop.f32.mrb[0].mxu0
    %6931 = vdwg.mxu0
    %6932 = vmatprep.subr.bf16.mxu0 0
    %6933 = vmatpush1.bf16.msra.mxu0 %v6532
    %6934 = vmatprep.subr.bf16.mxu0 0
    %6935 = vmatpush1.bf16.msra.mxu0 %v6533
    %6936 = vmatprep.subr.bf16.mxu0 0
    %6937 = vmatpush1.bf16.msra.mxu0 %v6534
    %6938 = vmatprep.subr.bf16.mxu0 0
    %6939 = vmatpush1.bf16.msra.mxu0 %v6535
    %6940 = vmatprep.subr.bf16.mxu0 0
    %6941 = vmatpush1.bf16.msra.mxu0 %v6536
    %6942 = vmatprep.subr.bf16.mxu0 0
    %6943 = vmatpush1.bf16.msra.mxu0 %v6537
    %6944 = vmatprep.subr.bf16.mxu0 0
    %6945 = vmatpush1.bf16.msra.mxu0 %v6538
    %6946 = vmatprep.subr.bf16.mxu0 0
    %6947 = vmatpush1.bf16.msra.mxu0 %v6539
    %6948 = vmatprep.subr.bf16.mxu0 0
    %6949 = vmatpush1.bf16.msra.mxu0 %v6540
    %6950 = vmatprep.subr.bf16.mxu0 0
    %6951 = vmatpush1.bf16.msra.mxu0 %v6541
    %6952 = vmatprep.subr.bf16.mxu0 0
    %6953 = vmatpush1.bf16.msra.mxu0 %v6542
    %6954 = vmatprep.subr.bf16.mxu0 0
    %6955 = vmatpush1.bf16.msra.mxu0 %v6543
    %6956 = vmatprep.subr.bf16.mxu0 0
    %6957 = vmatpush1.bf16.msra.mxu0 %v6544
    %6958 = vmatprep.subr.bf16.mxu0 0
    %6959 = vmatpush1.bf16.msra.mxu0 %v6545
    %6960 = vmatprep.subr.bf16.mxu0 0
    %6961 = vmatpush1.bf16.msra.mxu0 %v6546
    %6962 = vmatprep.subr.bf16.mxu0 0
    %6963 = vmatpush1.bf16.msra.mxu0 %v6547
    %6964 = vmatprep.mubr.bf16.mxu0 %v5658
    %6965 = vmatmul.mubr.bf16.gmra.mrb[0].mxu0 %v5657
    %v6966 = vpop.f32.mrb[0].mxu0
    %v6967 = vadd.f32 %v6927, %v6966
    %v6968 = vpop.f32.mrb[0].mxu0
    %v6969 = vpop.f32.mrb[0].mxu0
    %v6970 = vpop.f32.mrb[0].mxu0
    %6971 = vdwg.mxu0
    %6972 = vmatprep.subr.bf16.mxu0 0
    %6973 = vmatpush1.bf16.msra.mxu0 %v6548
    %6974 = vmatprep.subr.bf16.mxu0 0
    %6975 = vmatpush1.bf16.msra.mxu0 %v6549
    %6976 = vmatprep.subr.bf16.mxu0 0
    %6977 = vmatpush1.bf16.msra.mxu0 %v6550
    %6978 = vmatprep.subr.bf16.mxu0 0
    %6979 = vmatpush1.bf16.msra.mxu0 %v6551
    %6980 = vmatprep.subr.bf16.mxu0 0
    %6981 = vmatpush1.bf16.msra.mxu0 %v6552
    %6982 = vmatprep.subr.bf16.mxu0 0
    %6983 = vmatpush1.bf16.msra.mxu0 %v6553
    %6984 = vmatprep.subr.bf16.mxu0 0
    %6985 = vmatpush1.bf16.msra.mxu0 %v6554
    %6986 = vmatprep.subr.bf16.mxu0 0
    %6987 = vmatpush1.bf16.msra.mxu0 %v6555
    %6988 = vmatprep.subr.bf16.mxu0 0
    %6989 = vmatpush1.bf16.msra.mxu0 %v6556
    %6990 = vmatprep.subr.bf16.mxu0 0
    %6991 = vmatpush1.bf16.msra.mxu0 %v6557
    %6992 = vmatprep.subr.bf16.mxu0 0
    %6993 = vmatpush1.bf16.msra.mxu0 %v6558
    %6994 = vmatprep.subr.bf16.mxu0 0
    %6995 = vmatpush1.bf16.msra.mxu0 %v6559
    %6996 = vmatprep.subr.bf16.mxu0 0
    %6997 = vmatpush1.bf16.msra.mxu0 %v6560
    %6998 = vmatprep.subr.bf16.mxu0 0
    %6999 = vmatpush1.bf16.msra.mxu0 %v6561
    %7000 = vmatprep.subr.bf16.mxu0 0
    %7001 = vmatpush1.bf16.msra.mxu0 %v6562
    %7002 = vmatprep.subr.bf16.mxu0 0
    %7003 = vmatpush1.bf16.msra.mxu0 %v6563
    %7004 = vmatprep.mubr.bf16.mxu0 %v5660
    %7005 = vmatmul.mubr.bf16.gmra.mrb[0].mxu0 %v5659
    %v7006 = vpop.f32.mrb[0].mxu0
    %v7007 = vadd.f32 %v6967, %v7006
    %v7008 = vpop.f32.mrb[0].mxu0
    %v7009 = vpop.f32.mrb[0].mxu0
    %v7010 = vpop.f32.mrb[0].mxu0
    %7011 = vdwg.mxu0
    %7012 = vst [vmem:[#allocation2] sm:$0x3] %v7007
    // Predicated region
    $region30: #{net_forward.1} parent=1 // pred_check
      _
    $region31: #{net_forward.1} parent=1 // pred_check_branch
      %7014 = sbr.rel (0) target = $region33
    $region32: #{net_forward.1} parent=1 // pred_region
      %s7016 = ssub.s32 32, 32
      %7017 = vsyncadd [#allocation3], %s7016
      %s7019 = sshll.u32 [#allocation2], 4
      %s7020 = int_to_ptr.vmem [resolvable:$true] %s7019
      %7022 = dma.vmem_to_hbm [thread:$0]  %s7020, 32, %s7, [#allocation3]
    $region33: #{net_forward.1} parent=1 // pred_fallthru
      _
    // Predicated region
    $region34: #{net_forward.1} parent=1 // pred_check
      _
    $region35: #{net_forward.1} parent=1 // pred_check_branch
      %7024 = sbr.rel (0) target = $region37
    $region36: #{net_forward.1} parent=1 // pred_region
      %7025 = dma.done [#allocation3], 32
    $region37: #{net_forward.1} parent=1 // pred_fallthru
      _
    %7026 = vsyncpa [#allocation3], 1

</llo_original>
